<compile_context>
chip_gen: v6e
topology: v6e:2x2x1
jax: 0.10.0
libtpu: 0.0.40
codegen_flags: <defaults>
</compile_context>

<pallas_src>
import jax
import jax.numpy as jnp
from jax.experimental import pallas as pl
from jax.experimental.pallas import tpu as pltpu


# -----------------------------------------------------------------------------
# Fused kernel: conv1+pool1 -> conv2+pool2 -> split/concat -> BiLSTM -> FC
# -----------------------------------------------------------------------------
def _fused_kernel(xcat_ref, w1_ref, b1_ref, w2_ref, b2_ref,
                  wih_ref, bih_ref, whh_ref, wfc_ref, bfc_ref, o_ref):
    Bb = xcat_ref.shape[0]            # 2*hb strand samples in this block
    hb = Bb // 2                      # LSTM sequences in this block
    M1 = xcat_ref.shape[1]            # packed pool1 rows (8)
    T = wfc_ref.shape[0]              # pool2 length (5)
    H = 128                           # LSTM hidden size

    # ---- conv1 + ReLU + pool1: ONE matmul (Bb*M1, 180) @ (180, 256) ---------
    x1 = xcat_ref[...].reshape(Bb * M1, xcat_ref.shape[2])          # bf16
    z1 = jnp.dot(x1, w1_ref[...], preferred_element_type=jnp.float32) + b1_ref[...]
    y1 = jnp.maximum(jnp.maximum(z1[:, :128], z1[:, 128:]), 0.0)    # pool-phase max, ReLU
    y1 = y1.reshape(Bb, M1, 128).astype(jnp.bfloat16)               # single bf16 cast

    # ---- conv2 + ReLU + pool2: ONE matmul (Bb*T, 512) @ (512, 256) ----------
    x2 = jnp.concatenate([y1[:, u:u + T, :] for u in range(4)], axis=-1)
    x2 = x2.reshape(Bb * T, 4 * 128)
    z2 = jnp.dot(x2, w2_ref[...], preferred_element_type=jnp.float32) + b2_ref[...]
    y2 = jnp.maximum(jnp.maximum(z2[:, :128], z2[:, 128:]), 0.0)
    y2 = y2.reshape(Bb, T, 128)

    # ---- strand split + channel concat -> (hb, T, 256); reversed copy -------
    seq = jnp.concatenate([y2[:hb], y2[hb:]], axis=-1).astype(jnp.bfloat16)
    seq_rev = jnp.concatenate([seq[:, T - 1 - t:T - t, :] for t in range(T)], axis=1)
    sf = jnp.concatenate([seq, seq_rev], axis=-1).reshape(hb * T, 4 * H)   # (hb*T, 512)

    # ---- LSTM input projection: both directions, all steps, one matmul ------
    proj = jnp.dot(sf, wih_ref[...], preferred_element_type=jnp.float32)
    proj = (proj + bih_ref[...]).reshape(hb, T, 8 * H)

    # ---- fused bidirectional recurrence (fwd & bwd in lockstep) -------------
    # column layout: [i_f, i_b, f_f, f_b, o_f, o_b, g_f, g_b]; h/c = [fwd|bwd]
    whh = whh_ref[...]                                              # bf16 (256, 1024)
    wfc = jnp.broadcast_to(wfc_ref[...].reshape(T, 1, 2 * H), (T, hb, 2 * H))
    h = jnp.zeros((hb, 2 * H), jnp.float32)
    c = jnp.zeros((hb, 2 * H), jnp.float32)
    acc = jnp.zeros((hb, 2 * H), jnp.float32)
    for s in range(T):                                              # static unroll, T=5
        gates = proj[:, s, :] + jnp.dot(h.astype(jnp.bfloat16), whh,
                                        preferred_element_type=jnp.float32)
        sig = 0.5 * jnp.tanh(0.5 * gates[:, :6 * H]) + 0.5          # sigmoid, one EUP slab
        i = sig[:, 0 * H:2 * H]
        f = sig[:, 2 * H:4 * H]
        o = sig[:, 4 * H:6 * H]
        g = jnp.tanh(gates[:, 6 * H:8 * H])
        c = f * c + i * g
        h = o * jnp.tanh(c)
        acc = acc + h * wfc[s]                                      # Linear(1280,1) folded in
    res = jnp.sum(acc, axis=-1, keepdims=True) + bfc_ref[...]       # (hb, 1)
    o_ref[...] = res.reshape(1, 1, hb)                              # lane-dense store


# -----------------------------------------------------------------------------
# One-time weight packing (hoisted out of the jitted forward)
# -----------------------------------------------------------------------------
_P1 = 12   # conv1 input time-packing: stride(3) * pool(2) * 2 output phases


def _pack_conv1_weights(w1):
    """w1 (64, 5, 16) -> (180, 256):
    W[u*60 + w*5 + c, ph*128 + s*64 + o] = w1[o, c, 12u + w - 6s - 3ph] (0 if OOB)."""
    O, C, K = w1.shape
    U = 3
    u = jnp.arange(U)[:, None, None, None]
    w = jnp.arange(_P1)[None, :, None, None]
    s = jnp.arange(2)[None, None, :, None]
    ph = jnp.arange(2)[None, None, None, :]
    k = _P1 * u + w - 6 * s - 3 * ph                     # (U, 12, 2, 2)
    valid = (k >= 0) & (k < K)
    g = w1[:, :, jnp.clip(k, 0, K - 1)]                  # (O, C, U, 12, 2, 2)
    g = jnp.where(valid[None, None], g, 0.0)
    g = jnp.transpose(g, (2, 3, 1, 5, 4, 0))             # (U, w, C, ph, s, O)
    return g.reshape(U * _P1 * C, 2 * 2 * O)             # (180, 256)


def _pack_conv2_weights(w2):
    """w2 (128, 64, 6) -> (512, 256):
    W[u*128 + s*64 + c, ph*128 + o] = w2[o, c, 2u + s - ph] (0 if OOB)."""
    O, C, K = w2.shape
    U = 4
    u = jnp.arange(U)[:, None, None]
    s = jnp.arange(2)[None, :, None]
    ph = jnp.arange(2)[None, None, :]
    k = 2 * u + s - ph                                   # (U, 2, 2)
    valid = (k >= 0) & (k < K)
    g = w2[:, :, jnp.clip(k, 0, K - 1)]                  # (O, C, U, 2, 2)
    g = jnp.where(valid[None, None], g, 0.0)
    g = jnp.transpose(g, (2, 3, 1, 4, 0))                # (U, s, C, ph, O)
    return g.reshape(U * 2 * C, 2 * O)                   # (512, 256)


def _fuse_gate_cols(mat_f, mat_b, H):
    """PyTorch gate order (i, f, g, o) on last axis of mat_f / mat_b (each 4H wide)
    -> fused layout [i_f, i_b, f_f, f_b, o_f, o_b, g_f, g_b] (8H wide)."""
    def blk(m, k):
        return m[..., k * H:(k + 1) * H]
    return jnp.concatenate(
        [blk(mat_f, 0), blk(mat_b, 0),     # i
         blk(mat_f, 1), blk(mat_b, 1),     # f
         blk(mat_f, 3), blk(mat_b, 3),     # o
         blk(mat_f, 2), blk(mat_b, 2)],    # g
        axis=-1)


def prepare_params(p):
    """One-time packing of PyTorch-shaped params into kernel layouts."""
    H = 128
    bf16 = lambda a: a.astype(jnp.bfloat16)

    w1 = _pack_conv1_weights(p["conv1_w"])                          # (180, 256)
    w2 = _pack_conv2_weights(p["conv2_w"])                          # (512, 256)
    b1 = jnp.tile(p["conv1_b"], 4).reshape(1, 256)
    b2 = jnp.tile(p["conv2_b"], 2).reshape(1, 256)

    # input projection: rows 0:256 multiply seq(t), rows 256:512 multiply seq(T-1-t)
    z2h = jnp.zeros((2 * H, 4 * H), jnp.float32)
    wih = _fuse_gate_cols(jnp.concatenate([p["lstm_wih_f"].T, z2h], axis=0),
                          jnp.concatenate([z2h, p["lstm_wih_b"].T], axis=0), H)   # (512,1024)
    zh = jnp.zeros((H, 4 * H), jnp.float32)
    whh = _fuse_gate_cols(jnp.concatenate([p["lstm_whh_f"].T, zh], axis=0),
                          jnp.concatenate([zh, p["lstm_whh_b"].T], axis=0), H)    # (256,1024)
    bih = _fuse_gate_cols((p["lstm_bih_f"] + p["lstm_bhh_f"])[None, :],
                          (p["lstm_bih_b"] + p["lstm_bhh_b"])[None, :], H)        # (1,1024)

    T = p["fc_w"].shape[1] // (2 * H)                               # 5
    wfc = p["fc_w"].reshape(T, 2 * H)                               # row t = [fwd | bwd]
    wfc_fused = jnp.concatenate([wfc[:, :H], wfc[::-1, H:]], axis=-1)   # step-aligned
    bfc = p["fc_b"].reshape(1, 1)

    return {"w1": bf16(w1), "b1": b1, "w2": bf16(w2), "b2": b2,
            "wih": bf16(wih), "bih": bih, "whh": bf16(whh),
            "wfc": wfc_fused, "bfc": bfc}


# -----------------------------------------------------------------------------
# Parameters (deterministic synthetic init, PyTorch shapes)
# -----------------------------------------------------------------------------
def init_params(key):
    ks = jax.random.split(key, 14)
    n = jax.random.normal
    return {
        "conv1_w": n(ks[0], (64, 5, 16), jnp.float32) * 0.10,
        "conv1_b": n(ks[1], (64,), jnp.float32) * 0.10,
        "conv2_w": n(ks[2], (128, 64, 6), jnp.float32) * 0.05,
        "conv2_b": n(ks[3], (128,), jnp.float32) * 0.10,
        "lstm_wih_f": n(ks[4], (512, 256), jnp.float32) * 0.05,
        "lstm_whh_f": n(ks[5], (512, 128), jnp.float32) * 0.05,
        "lstm_bih_f": n(ks[6], (512,), jnp.float32) * 0.05,
        "lstm_bhh_f": n(ks[7], (512,), jnp.float32) * 0.05,
        "lstm_wih_b": n(ks[8], (512, 256), jnp.float32) * 0.05,
        "lstm_whh_b": n(ks[9], (512, 128), jnp.float32) * 0.05,
        "lstm_bih_b": n(ks[10], (512,), jnp.float32) * 0.05,
        "lstm_bhh_b": n(ks[11], (512,), jnp.float32) * 0.05,
        "fc_w": n(ks[12], (1, 1280), jnp.float32) * 0.05,
        "fc_b": n(ks[13], (1,), jnp.float32) * 0.05,
    }


# -----------------------------------------------------------------------------
# Forward pass (single fused Pallas kernel, grid over sequence blocks)
# -----------------------------------------------------------------------------
def promoter_net_forward(x, pk):
    B, C, L = x.shape                          # PyTorch NCW input (B, 5, L)
    assert C == 5 and B % 2 == 0
    K1, S1, K2 = 16, 3, 6

    L1 = (L - K1) // S1 + 1                    # conv1 length
    T1 = L1 // 2                               # pool1 length
    T2 = (T1 - K2 + 1) // 2                    # pool2 length
    half = B // 2
    T = pk["wfc"].shape[0]
    assert T2 == T and T1 == 2 * T2 + K2       # geometry the packed weights assume

    M1 = T1 // 2                               # packed pool1 rows
    MP = M1 + 2                                # packed input rows needed

    # block size: each grid step handles hb sequences (= 2*hb strand samples).
    # Capped so the activation tile stays tiny vs v7x's 64 MiB VMEM.
    hb = next(d for d in range(min(half, 32), 0, -1) if half % d == 0)
    G = half // hb

    # reorder batch so block g holds [fwd samples g*hb:(g+1)*hb | their complements]
    xg = jnp.concatenate(
        [x[:half].reshape(G, hb, C, L), x[half:].reshape(G, hb, C, L)],
        axis=1).reshape(G * 2 * hb, C, L)

    # channels-last, zero-pad, pack time by 12, build conv1 LHS, bf16 once (no gathers)
    x_cl = jnp.transpose(xg, (0, 2, 1))
    x_cl = jnp.pad(x_cl, ((0, 0), (0, _P1 * MP - L), (0, 0)))
    xp = x_cl.reshape(G * 2 * hb, MP, _P1 * C)                      # (.., 10, 60)
    xcat = jnp.concatenate([xp[:, u:u + M1, :] for u in range(3)],
                           axis=-1).astype(jnp.bfloat16)            # (.., 8, 180)

    def full_spec(a):
        n = a.ndim
        return pl.BlockSpec(a.shape, lambda g: (0,) * n)

    out = pl.pallas_call(
        _fused_kernel,
        out_shape=jax.ShapeDtypeStruct((G, 1, hb), jnp.float32),
        grid=(G,),
        in_specs=[pl.BlockSpec((2 * hb, M1, 3 * _P1 * C), lambda g: (g, 0, 0)),
                  full_spec(pk["w1"]), full_spec(pk["b1"]),
                  full_spec(pk["w2"]), full_spec(pk["b2"]),
                  full_spec(pk["wih"]), full_spec(pk["bih"]),
                  full_spec(pk["whh"]),
                  full_spec(pk["wfc"]), full_spec(pk["bfc"])],
        out_specs=pl.BlockSpec((1, 1, hb), lambda g: (g, 0, 0)),
        compiler_params=pltpu.CompilerParams(
            dimension_semantics=("parallel",)),
    )(xcat, pk["w1"], pk["b1"], pk["w2"], pk["b2"],
      pk["wih"], pk["bih"], pk["whh"], pk["wfc"], pk["bfc"])

    return jnp.squeeze(out.reshape(half))     # == torch.squeeze(out)


# -----------------------------------------------------------------------------
# Pure-JAX reference (mirrors the PyTorch forward) for verification
# -----------------------------------------------------------------------------
def _sigmoid(x):
    return 1.0 / (1.0 + jnp.exp(-x))


def reference_forward(x, p):
    def conv1d(x, w, b, stride):
        y = jax.lax.conv_general_dilated(
            x, w, window_strides=(stride,), padding="VALID",
            dimension_numbers=("NCH", "OIH", "NCH"))
        return y + b[None, :, None]

    def maxpool(y):
        B, C, L = y.shape
        L2 = L // 2
        return y[:, :, : 2 * L2].reshape(B, C, L2, 2).max(axis=-1)

    y = maxpool(jnp.maximum(conv1d(x, p["conv1_w"], p["conv1_b"], 3), 0.0))
    y = maxpool(jnp.maximum(conv1d(y, p["conv2_w"], p["conv2_b"], 1), 0.0))

    half = y.shape[0] // 2
    fm = jnp.concatenate([y[:half], y[half:]], axis=1)      # (half, 256, T)
    seq = jnp.transpose(fm, (0, 2, 1))                      # (half, T, 256)
    T = seq.shape[1]
    H = 128

    def run_lstm(wih, whh, bih, bhh, reverse):
        h = jnp.zeros((half, H), jnp.float32)
        c = jnp.zeros((half, H), jnp.float32)
        hs = [None] * T
        order = range(T - 1, -1, -1) if reverse else range(T)
        for t in order:
            gates = seq[:, t, :] @ wih.T + bih + h @ whh.T + bhh
            i = _sigmoid(gates[:, :H])
            f = _sigmoid(gates[:, H:2 * H])
            g = jnp.tanh(gates[:, 2 * H:3 * H])
            o = _sigmoid(gates[:, 3 * H:])
            c = f * c + i * g
            h = o * jnp.tanh(c)
            hs[t] = h
        return jnp.stack(hs, axis=1)                        # (half, T, H)

    out_f = run_lstm(p["lstm_wih_f"], p["lstm_whh_f"], p["lstm_bih_f"], p["lstm_bhh_f"], False)
    out_b = run_lstm(p["lstm_wih_b"], p["lstm_whh_b"], p["lstm_bih_b"], p["lstm_bhh_b"], True)
    out = jnp.concatenate([out_f, out_b], axis=-1)          # (half, T, 256)
    flat = out.reshape(half, -1)                            # (half, 1280)
    res = flat @ p["fc_w"].T + p["fc_b"]
    return jnp.squeeze(res)


if __name__ == "__main__":
    # L=109 -> conv1: 32 -> pool: 16 -> conv2: 11 -> pool: 5 ; 5 * 256 = 1280 (fc in)
    B, C, L = 4, 5, 109
    x = jax.random.normal(jax.random.PRNGKey(0), (B, C, L), jnp.float32)
    params = init_params(jax.random.PRNGKey(1))

    packed = prepare_params(params)              # one-time weight packing (outside jit)
    fwd = jax.jit(promoter_net_forward)
    out = jax.block_until_ready(fwd(x, packed))

    ref = jax.block_until_ready(reference_forward(x, params))
    assert out.shape == (B // 2,), out.shape
    err = float(jnp.max(jnp.abs(out - ref)))
    scale = max(1.0, float(jnp.max(jnp.abs(ref))))
    if err / scale > 5e-2:    # bf16 MXU operands, f32 accumulation
        raise AssertionError(f"Pallas/reference mismatch: max abs err {err}, scale {scale}")

    print("KERNEL_OK")
</pallas_src>

<mosaic_0001>
module attributes {stable_mosaic.version = 11 : i64} {
  func.func @_fused_kernel(%arg0: i32, %arg1: memref<4x8x180xbf16, #tpu.memory_space<vmem>>, %arg2: memref<180x256xbf16, #tpu.memory_space<vmem>>, %arg3: memref<1x256xf32, #tpu.memory_space<vmem>>, %arg4: memref<512x256xbf16, #tpu.memory_space<vmem>>, %arg5: memref<1x256xf32, #tpu.memory_space<vmem>>, %arg6: memref<512x1024xbf16, #tpu.memory_space<vmem>>, %arg7: memref<1x1024xf32, #tpu.memory_space<vmem>>, %arg8: memref<256x1024xbf16, #tpu.memory_space<vmem>>, %arg9: memref<5x256xf32, #tpu.memory_space<vmem>>, %arg10: memref<1x1xf32, #tpu.memory_space<vmem>>, %arg11: memref<1x1x2xf32, #tpu.memory_space<vmem>>) attributes {dimension_semantics = [#tpu.dimension_semantics<parallel>], iteration_bounds = array<i64: 1>, scalar_prefetch = 0 : i64, scratch_operands = 0 : i64, tpu.core_type = #tpu.core_type<tc>, window_params = [{transform_indices = @transform_0, window_bounds = array<i64: 4, 8, 180>}, {pipeline_mode = #tpu.pipeline_mode<synchronous>, transform_indices = @transform_1, window_bounds = array<i64: 180, 256>}, {pipeline_mode = #tpu.pipeline_mode<synchronous>, transform_indices = @transform_2, window_bounds = array<i64: 1, 256>}, {pipeline_mode = #tpu.pipeline_mode<synchronous>, transform_indices = @transform_3, window_bounds = array<i64: 512, 256>}, {pipeline_mode = #tpu.pipeline_mode<synchronous>, transform_indices = @transform_4, window_bounds = array<i64: 1, 256>}, {pipeline_mode = #tpu.pipeline_mode<synchronous>, transform_indices = @transform_5, window_bounds = array<i64: 512, 1024>}, {pipeline_mode = #tpu.pipeline_mode<synchronous>, transform_indices = @transform_6, window_bounds = array<i64: 1, 1024>}, {pipeline_mode = #tpu.pipeline_mode<synchronous>, transform_indices = @transform_7, window_bounds = array<i64: 256, 1024>}, {pipeline_mode = #tpu.pipeline_mode<synchronous>, transform_indices = @transform_8, window_bounds = array<i64: 5, 256>}, {pipeline_mode = #tpu.pipeline_mode<synchronous>, transform_indices = @transform_9, window_bounds = array<i64: 1, 1>}, {transform_indices = @transform_10, window_bounds = array<i64: 1, 1, 2>}]} {
    %c0 = arith.constant 0 : index
    %c0_0 = arith.constant 0 : index
    %c0_1 = arith.constant 0 : index
    %0 = vector.load %arg1[%c0, %c0_0, %c0_1] : memref<4x8x180xbf16, #tpu.memory_space<vmem>>, vector<4x8x180xbf16>
    %1 = vector.shape_cast %0 : vector<4x8x180xbf16> to vector<32x180xbf16>
    %c0_2 = arith.constant 0 : index
    %c0_3 = arith.constant 0 : index
    %2 = vector.load %arg2[%c0_2, %c0_3] : memref<180x256xbf16, #tpu.memory_space<vmem>>, vector<180x256xbf16>
    %cst = arith.constant dense<0.000000e+00> : vector<32x256xf32>
    %3 = tpu.matmul %1, %2, %cst {dimension_numbers = #tpu.dot_dimension_numbers<[1], [0], [0], [1], [0, 0, 1, 1], [], []>} : vector<32x180xbf16>, vector<180x256xbf16>, vector<32x256xf32> -> vector<32x256xf32>
    %c0_4 = arith.constant 0 : index
    %c0_5 = arith.constant 0 : index
    %4 = vector.load %arg3[%c0_4, %c0_5] : memref<1x256xf32, #tpu.memory_space<vmem>>, vector<1x256xf32>
    %5 = vector.broadcast %4 : vector<1x256xf32> to vector<32x256xf32>
    %6 = arith.addf %3, %5 : vector<32x256xf32>
    %7 = vector.extract_strided_slice %6 {offsets = [0, 0], sizes = [32, 128], strides = [1, 1]} : vector<32x256xf32> to vector<32x128xf32>
    %8 = vector.extract_strided_slice %6 {offsets = [0, 128], sizes = [32, 128], strides = [1, 1]} : vector<32x256xf32> to vector<32x128xf32>
    %9 = arith.maximumf %7, %8 : vector<32x128xf32>
    %cst_6 = arith.constant 0.000000e+00 : f32
    %10 = vector.broadcast %cst_6 : f32 to vector<32x128xf32>
    %11 = arith.maximumf %9, %10 : vector<32x128xf32>
    %12 = vector.shape_cast %11 : vector<32x128xf32> to vector<4x8x128xf32>
    %13 = arith.truncf %12 : vector<4x8x128xf32> to vector<4x8x128xbf16>
    %14 = vector.extract_strided_slice %13 {offsets = [0, 0, 0], sizes = [4, 5, 128], strides = [1, 1, 1]} : vector<4x8x128xbf16> to vector<4x5x128xbf16>
    %15 = vector.extract_strided_slice %13 {offsets = [0, 1, 0], sizes = [4, 5, 128], strides = [1, 1, 1]} : vector<4x8x128xbf16> to vector<4x5x128xbf16>
    %16 = vector.extract_strided_slice %13 {offsets = [0, 2, 0], sizes = [4, 5, 128], strides = [1, 1, 1]} : vector<4x8x128xbf16> to vector<4x5x128xbf16>
    %17 = vector.extract_strided_slice %13 {offsets = [0, 3, 0], sizes = [4, 5, 128], strides = [1, 1, 1]} : vector<4x8x128xbf16> to vector<4x5x128xbf16>
    %18 = tpu.concatenate %14, %15, %16, %17 in 2 : vector<4x5x128xbf16>, vector<4x5x128xbf16>, vector<4x5x128xbf16>, vector<4x5x128xbf16> -> vector<4x5x512xbf16>
    %19 = vector.shape_cast %18 : vector<4x5x512xbf16> to vector<20x512xbf16>
    %c0_7 = arith.constant 0 : index
    %c0_8 = arith.constant 0 : index
    %20 = vector.load %arg4[%c0_7, %c0_8] : memref<512x256xbf16, #tpu.memory_space<vmem>>, vector<512x256xbf16>
    %cst_9 = arith.constant dense<0.000000e+00> : vector<20x256xf32>
    %21 = tpu.matmul %19, %20, %cst_9 {dimension_numbers = #tpu.dot_dimension_numbers<[1], [0], [0], [1], [0, 0, 1, 1], [], []>} : vector<20x512xbf16>, vector<512x256xbf16>, vector<20x256xf32> -> vector<20x256xf32>
    %c0_10 = arith.constant 0 : index
    %c0_11 = arith.constant 0 : index
    %22 = vector.load %arg5[%c0_10, %c0_11] : memref<1x256xf32, #tpu.memory_space<vmem>>, vector<1x256xf32>
    %23 = vector.broadcast %22 : vector<1x256xf32> to vector<20x256xf32>
    %24 = arith.addf %21, %23 : vector<20x256xf32>
    %25 = vector.extract_strided_slice %24 {offsets = [0, 0], sizes = [20, 128], strides = [1, 1]} : vector<20x256xf32> to vector<20x128xf32>
    %26 = vector.extract_strided_slice %24 {offsets = [0, 128], sizes = [20, 128], strides = [1, 1]} : vector<20x256xf32> to vector<20x128xf32>
    %27 = arith.maximumf %25, %26 : vector<20x128xf32>
    %cst_12 = arith.constant 0.000000e+00 : f32
    %28 = vector.broadcast %cst_12 : f32 to vector<20x128xf32>
    %29 = arith.maximumf %27, %28 : vector<20x128xf32>
    %30 = vector.shape_cast %29 : vector<20x128xf32> to vector<4x5x128xf32>
    %31 = vector.extract_strided_slice %30 {offsets = [0, 0, 0], sizes = [2, 5, 128], strides = [1, 1, 1]} : vector<4x5x128xf32> to vector<2x5x128xf32>
    %32 = vector.extract_strided_slice %30 {offsets = [2, 0, 0], sizes = [2, 5, 128], strides = [1, 1, 1]} : vector<4x5x128xf32> to vector<2x5x128xf32>
    %33 = tpu.concatenate %31, %32 in 2 : vector<2x5x128xf32>, vector<2x5x128xf32> -> vector<2x5x256xf32>
    %34 = arith.truncf %33 : vector<2x5x256xf32> to vector<2x5x256xbf16>
    %35 = vector.extract_strided_slice %34 {offsets = [0, 4, 0], sizes = [2, 1, 256], strides = [1, 1, 1]} : vector<2x5x256xbf16> to vector<2x1x256xbf16>
    %36 = vector.extract_strided_slice %34 {offsets = [0, 3, 0], sizes = [2, 1, 256], strides = [1, 1, 1]} : vector<2x5x256xbf16> to vector<2x1x256xbf16>
    %37 = vector.extract_strided_slice %34 {offsets = [0, 2, 0], sizes = [2, 1, 256], strides = [1, 1, 1]} : vector<2x5x256xbf16> to vector<2x1x256xbf16>
    %38 = vector.extract_strided_slice %34 {offsets = [0, 1, 0], sizes = [2, 1, 256], strides = [1, 1, 1]} : vector<2x5x256xbf16> to vector<2x1x256xbf16>
    %39 = vector.extract_strided_slice %34 {offsets = [0, 0, 0], sizes = [2, 1, 256], strides = [1, 1, 1]} : vector<2x5x256xbf16> to vector<2x1x256xbf16>
    %40 = tpu.concatenate %35, %36, %37, %38, %39 in 1 : vector<2x1x256xbf16>, vector<2x1x256xbf16>, vector<2x1x256xbf16>, vector<2x1x256xbf16>, vector<2x1x256xbf16> -> vector<2x5x256xbf16>
    %41 = tpu.concatenate %34, %40 in 2 : vector<2x5x256xbf16>, vector<2x5x256xbf16> -> vector<2x5x512xbf16>
    %42 = vector.shape_cast %41 : vector<2x5x512xbf16> to vector<10x512xbf16>
    %c0_13 = arith.constant 0 : index
    %c0_14 = arith.constant 0 : index
    %43 = vector.load %arg6[%c0_13, %c0_14] : memref<512x1024xbf16, #tpu.memory_space<vmem>>, vector<512x1024xbf16>
    %cst_15 = arith.constant dense<0.000000e+00> : vector<10x1024xf32>
    %44 = tpu.matmul %42, %43, %cst_15 {dimension_numbers = #tpu.dot_dimension_numbers<[1], [0], [0], [1], [0, 0, 1, 1], [], []>} : vector<10x512xbf16>, vector<512x1024xbf16>, vector<10x1024xf32> -> vector<10x1024xf32>
    %c0_16 = arith.constant 0 : index
    %c0_17 = arith.constant 0 : index
    %45 = vector.load %arg7[%c0_16, %c0_17] : memref<1x1024xf32, #tpu.memory_space<vmem>>, vector<1x1024xf32>
    %46 = vector.broadcast %45 : vector<1x1024xf32> to vector<10x1024xf32>
    %47 = arith.addf %44, %46 : vector<10x1024xf32>
    %48 = vector.shape_cast %47 : vector<10x1024xf32> to vector<2x5x1024xf32>
    %c0_18 = arith.constant 0 : index
    %c0_19 = arith.constant 0 : index
    %49 = vector.load %arg8[%c0_18, %c0_19] : memref<256x1024xbf16, #tpu.memory_space<vmem>>, vector<256x1024xbf16>
    %c0_20 = arith.constant 0 : index
    %c0_21 = arith.constant 0 : index
    %50 = vector.load %arg9[%c0_20, %c0_21] : memref<5x256xf32, #tpu.memory_space<vmem>>, vector<5x256xf32>
    %51 = vector.shape_cast %50 : vector<5x256xf32> to vector<5x1x256xf32>
    %52 = vector.shape_cast %51 : vector<5x1x256xf32> to vector<5x1x256xf32>
    %53 = vector.broadcast %52 : vector<5x1x256xf32> to vector<5x2x256xf32>
    %cst_22 = arith.constant 0.000000e+00 : f32
    %54 = vector.broadcast %cst_22 : f32 to vector<2x256xf32>
    %cst_23 = arith.constant 0.000000e+00 : f32
    %55 = vector.broadcast %cst_23 : f32 to vector<2x256xf32>
    %cst_24 = arith.constant 0.000000e+00 : f32
    %56 = vector.broadcast %cst_24 : f32 to vector<2x256xf32>
    %57 = vector.extract_strided_slice %48 {offsets = [0, 0, 0], sizes = [2, 1, 1024], strides = [1, 1, 1]} : vector<2x5x1024xf32> to vector<2x1x1024xf32>
    %58 = vector.shape_cast %57 : vector<2x1x1024xf32> to vector<2x1024xf32>
    %59 = arith.truncf %54 : vector<2x256xf32> to vector<2x256xbf16>
    %cst_25 = arith.constant dense<0.000000e+00> : vector<2x1024xf32>
    %60 = tpu.matmul %59, %49, %cst_25 {dimension_numbers = #tpu.dot_dimension_numbers<[1], [0], [0], [1], [0, 0, 1, 1], [], []>} : vector<2x256xbf16>, vector<256x1024xbf16>, vector<2x1024xf32> -> vector<2x1024xf32>
    %61 = arith.addf %58, %60 : vector<2x1024xf32>
    %62 = vector.extract_strided_slice %61 {offsets = [0, 0], sizes = [2, 768], strides = [1, 1]} : vector<2x1024xf32> to vector<2x768xf32>
    %cst_26 = arith.constant 5.000000e-01 : f32
    %63 = vector.broadcast %cst_26 : f32 to vector<2x768xf32>
    %64 = arith.mulf %63, %62 : vector<2x768xf32>
    %65 = math.tanh %64 : vector<2x768xf32>
    %cst_27 = arith.constant 5.000000e-01 : f32
    %66 = vector.broadcast %cst_27 : f32 to vector<2x768xf32>
    %67 = arith.mulf %66, %65 : vector<2x768xf32>
    %cst_28 = arith.constant 5.000000e-01 : f32
    %68 = vector.broadcast %cst_28 : f32 to vector<2x768xf32>
    %69 = arith.addf %67, %68 : vector<2x768xf32>
    %70 = vector.extract_strided_slice %69 {offsets = [0, 0], sizes = [2, 256], strides = [1, 1]} : vector<2x768xf32> to vector<2x256xf32>
    %71 = vector.extract_strided_slice %69 {offsets = [0, 256], sizes = [2, 256], strides = [1, 1]} : vector<2x768xf32> to vector<2x256xf32>
    %72 = vector.extract_strided_slice %69 {offsets = [0, 512], sizes = [2, 256], strides = [1, 1]} : vector<2x768xf32> to vector<2x256xf32>
    %73 = vector.extract_strided_slice %61 {offsets = [0, 768], sizes = [2, 256], strides = [1, 1]} : vector<2x1024xf32> to vector<2x256xf32>
    %74 = math.tanh %73 : vector<2x256xf32>
    %75 = arith.mulf %71, %55 : vector<2x256xf32>
    %76 = arith.mulf %70, %74 : vector<2x256xf32>
    %77 = arith.addf %75, %76 : vector<2x256xf32>
    %78 = math.tanh %77 : vector<2x256xf32>
    %79 = arith.mulf %72, %78 : vector<2x256xf32>
    %80 = vector.extract_strided_slice %53 {offsets = [0, 0, 0], sizes = [1, 2, 256], strides = [1, 1, 1]} : vector<5x2x256xf32> to vector<1x2x256xf32>
    %81 = vector.shape_cast %80 : vector<1x2x256xf32> to vector<2x256xf32>
    %82 = arith.mulf %79, %81 : vector<2x256xf32>
    %83 = arith.addf %56, %82 : vector<2x256xf32>
    %84 = vector.extract_strided_slice %48 {offsets = [0, 1, 0], sizes = [2, 1, 1024], strides = [1, 1, 1]} : vector<2x5x1024xf32> to vector<2x1x1024xf32>
    %85 = vector.shape_cast %84 : vector<2x1x1024xf32> to vector<2x1024xf32>
    %86 = arith.truncf %79 : vector<2x256xf32> to vector<2x256xbf16>
    %cst_29 = arith.constant dense<0.000000e+00> : vector<2x1024xf32>
    %87 = tpu.matmul %86, %49, %cst_29 {dimension_numbers = #tpu.dot_dimension_numbers<[1], [0], [0], [1], [0, 0, 1, 1], [], []>} : vector<2x256xbf16>, vector<256x1024xbf16>, vector<2x1024xf32> -> vector<2x1024xf32>
    %88 = arith.addf %85, %87 : vector<2x1024xf32>
    %89 = vector.extract_strided_slice %88 {offsets = [0, 0], sizes = [2, 768], strides = [1, 1]} : vector<2x1024xf32> to vector<2x768xf32>
    %cst_30 = arith.constant 5.000000e-01 : f32
    %90 = vector.broadcast %cst_30 : f32 to vector<2x768xf32>
    %91 = arith.mulf %90, %89 : vector<2x768xf32>
    %92 = math.tanh %91 : vector<2x768xf32>
    %cst_31 = arith.constant 5.000000e-01 : f32
    %93 = vector.broadcast %cst_31 : f32 to vector<2x768xf32>
    %94 = arith.mulf %93, %92 : vector<2x768xf32>
    %cst_32 = arith.constant 5.000000e-01 : f32
    %95 = vector.broadcast %cst_32 : f32 to vector<2x768xf32>
    %96 = arith.addf %94, %95 : vector<2x768xf32>
    %97 = vector.extract_strided_slice %96 {offsets = [0, 0], sizes = [2, 256], strides = [1, 1]} : vector<2x768xf32> to vector<2x256xf32>
    %98 = vector.extract_strided_slice %96 {offsets = [0, 256], sizes = [2, 256], strides = [1, 1]} : vector<2x768xf32> to vector<2x256xf32>
    %99 = vector.extract_strided_slice %96 {offsets = [0, 512], sizes = [2, 256], strides = [1, 1]} : vector<2x768xf32> to vector<2x256xf32>
    %100 = vector.extract_strided_slice %88 {offsets = [0, 768], sizes = [2, 256], strides = [1, 1]} : vector<2x1024xf32> to vector<2x256xf32>
    %101 = math.tanh %100 : vector<2x256xf32>
    %102 = arith.mulf %98, %77 : vector<2x256xf32>
    %103 = arith.mulf %97, %101 : vector<2x256xf32>
    %104 = arith.addf %102, %103 : vector<2x256xf32>
    %105 = math.tanh %104 : vector<2x256xf32>
    %106 = arith.mulf %99, %105 : vector<2x256xf32>
    %107 = vector.extract_strided_slice %53 {offsets = [1, 0, 0], sizes = [1, 2, 256], strides = [1, 1, 1]} : vector<5x2x256xf32> to vector<1x2x256xf32>
    %108 = vector.shape_cast %107 : vector<1x2x256xf32> to vector<2x256xf32>
    %109 = arith.mulf %106, %108 : vector<2x256xf32>
    %110 = arith.addf %83, %109 : vector<2x256xf32>
    %111 = vector.extract_strided_slice %48 {offsets = [0, 2, 0], sizes = [2, 1, 1024], strides = [1, 1, 1]} : vector<2x5x1024xf32> to vector<2x1x1024xf32>
    %112 = vector.shape_cast %111 : vector<2x1x1024xf32> to vector<2x1024xf32>
    %113 = arith.truncf %106 : vector<2x256xf32> to vector<2x256xbf16>
    %cst_33 = arith.constant dense<0.000000e+00> : vector<2x1024xf32>
    %114 = tpu.matmul %113, %49, %cst_33 {dimension_numbers = #tpu.dot_dimension_numbers<[1], [0], [0], [1], [0, 0, 1, 1], [], []>} : vector<2x256xbf16>, vector<256x1024xbf16>, vector<2x1024xf32> -> vector<2x1024xf32>
    %115 = arith.addf %112, %114 : vector<2x1024xf32>
    %116 = vector.extract_strided_slice %115 {offsets = [0, 0], sizes = [2, 768], strides = [1, 1]} : vector<2x1024xf32> to vector<2x768xf32>
    %cst_34 = arith.constant 5.000000e-01 : f32
    %117 = vector.broadcast %cst_34 : f32 to vector<2x768xf32>
    %118 = arith.mulf %117, %116 : vector<2x768xf32>
    %119 = math.tanh %118 : vector<2x768xf32>
    %cst_35 = arith.constant 5.000000e-01 : f32
    %120 = vector.broadcast %cst_35 : f32 to vector<2x768xf32>
    %121 = arith.mulf %120, %119 : vector<2x768xf32>
    %cst_36 = arith.constant 5.000000e-01 : f32
    %122 = vector.broadcast %cst_36 : f32 to vector<2x768xf32>
    %123 = arith.addf %121, %122 : vector<2x768xf32>
    %124 = vector.extract_strided_slice %123 {offsets = [0, 0], sizes = [2, 256], strides = [1, 1]} : vector<2x768xf32> to vector<2x256xf32>
    %125 = vector.extract_strided_slice %123 {offsets = [0, 256], sizes = [2, 256], strides = [1, 1]} : vector<2x768xf32> to vector<2x256xf32>
    %126 = vector.extract_strided_slice %123 {offsets = [0, 512], sizes = [2, 256], strides = [1, 1]} : vector<2x768xf32> to vector<2x256xf32>
    %127 = vector.extract_strided_slice %115 {offsets = [0, 768], sizes = [2, 256], strides = [1, 1]} : vector<2x1024xf32> to vector<2x256xf32>
    %128 = math.tanh %127 : vector<2x256xf32>
    %129 = arith.mulf %125, %104 : vector<2x256xf32>
    %130 = arith.mulf %124, %128 : vector<2x256xf32>
    %131 = arith.addf %129, %130 : vector<2x256xf32>
    %132 = math.tanh %131 : vector<2x256xf32>
    %133 = arith.mulf %126, %132 : vector<2x256xf32>
    %134 = vector.extract_strided_slice %53 {offsets = [2, 0, 0], sizes = [1, 2, 256], strides = [1, 1, 1]} : vector<5x2x256xf32> to vector<1x2x256xf32>
    %135 = vector.shape_cast %134 : vector<1x2x256xf32> to vector<2x256xf32>
    %136 = arith.mulf %133, %135 : vector<2x256xf32>
    %137 = arith.addf %110, %136 : vector<2x256xf32>
    %138 = vector.extract_strided_slice %48 {offsets = [0, 3, 0], sizes = [2, 1, 1024], strides = [1, 1, 1]} : vector<2x5x1024xf32> to vector<2x1x1024xf32>
    %139 = vector.shape_cast %138 : vector<2x1x1024xf32> to vector<2x1024xf32>
    %140 = arith.truncf %133 : vector<2x256xf32> to vector<2x256xbf16>
    %cst_37 = arith.constant dense<0.000000e+00> : vector<2x1024xf32>
    %141 = tpu.matmul %140, %49, %cst_37 {dimension_numbers = #tpu.dot_dimension_numbers<[1], [0], [0], [1], [0, 0, 1, 1], [], []>} : vector<2x256xbf16>, vector<256x1024xbf16>, vector<2x1024xf32> -> vector<2x1024xf32>
    %142 = arith.addf %139, %141 : vector<2x1024xf32>
    %143 = vector.extract_strided_slice %142 {offsets = [0, 0], sizes = [2, 768], strides = [1, 1]} : vector<2x1024xf32> to vector<2x768xf32>
    %cst_38 = arith.constant 5.000000e-01 : f32
    %144 = vector.broadcast %cst_38 : f32 to vector<2x768xf32>
    %145 = arith.mulf %144, %143 : vector<2x768xf32>
    %146 = math.tanh %145 : vector<2x768xf32>
    %cst_39 = arith.constant 5.000000e-01 : f32
    %147 = vector.broadcast %cst_39 : f32 to vector<2x768xf32>
    %148 = arith.mulf %147, %146 : vector<2x768xf32>
    %cst_40 = arith.constant 5.000000e-01 : f32
    %149 = vector.broadcast %cst_40 : f32 to vector<2x768xf32>
    %150 = arith.addf %148, %149 : vector<2x768xf32>
    %151 = vector.extract_strided_slice %150 {offsets = [0, 0], sizes = [2, 256], strides = [1, 1]} : vector<2x768xf32> to vector<2x256xf32>
    %152 = vector.extract_strided_slice %150 {offsets = [0, 256], sizes = [2, 256], strides = [1, 1]} : vector<2x768xf32> to vector<2x256xf32>
    %153 = vector.extract_strided_slice %150 {offsets = [0, 512], sizes = [2, 256], strides = [1, 1]} : vector<2x768xf32> to vector<2x256xf32>
    %154 = vector.extract_strided_slice %142 {offsets = [0, 768], sizes = [2, 256], strides = [1, 1]} : vector<2x1024xf32> to vector<2x256xf32>
    %155 = math.tanh %154 : vector<2x256xf32>
    %156 = arith.mulf %152, %131 : vector<2x256xf32>
    %157 = arith.mulf %151, %155 : vector<2x256xf32>
    %158 = arith.addf %156, %157 : vector<2x256xf32>
    %159 = math.tanh %158 : vector<2x256xf32>
    %160 = arith.mulf %153, %159 : vector<2x256xf32>
    %161 = vector.extract_strided_slice %53 {offsets = [3, 0, 0], sizes = [1, 2, 256], strides = [1, 1, 1]} : vector<5x2x256xf32> to vector<1x2x256xf32>
    %162 = vector.shape_cast %161 : vector<1x2x256xf32> to vector<2x256xf32>
    %163 = arith.mulf %160, %162 : vector<2x256xf32>
    %164 = arith.addf %137, %163 : vector<2x256xf32>
    %165 = vector.extract_strided_slice %48 {offsets = [0, 4, 0], sizes = [2, 1, 1024], strides = [1, 1, 1]} : vector<2x5x1024xf32> to vector<2x1x1024xf32>
    %166 = vector.shape_cast %165 : vector<2x1x1024xf32> to vector<2x1024xf32>
    %167 = arith.truncf %160 : vector<2x256xf32> to vector<2x256xbf16>
    %cst_41 = arith.constant dense<0.000000e+00> : vector<2x1024xf32>
    %168 = tpu.matmul %167, %49, %cst_41 {dimension_numbers = #tpu.dot_dimension_numbers<[1], [0], [0], [1], [0, 0, 1, 1], [], []>} : vector<2x256xbf16>, vector<256x1024xbf16>, vector<2x1024xf32> -> vector<2x1024xf32>
    %169 = arith.addf %166, %168 : vector<2x1024xf32>
    %170 = vector.extract_strided_slice %169 {offsets = [0, 0], sizes = [2, 768], strides = [1, 1]} : vector<2x1024xf32> to vector<2x768xf32>
    %cst_42 = arith.constant 5.000000e-01 : f32
    %171 = vector.broadcast %cst_42 : f32 to vector<2x768xf32>
    %172 = arith.mulf %171, %170 : vector<2x768xf32>
    %173 = math.tanh %172 : vector<2x768xf32>
    %cst_43 = arith.constant 5.000000e-01 : f32
    %174 = vector.broadcast %cst_43 : f32 to vector<2x768xf32>
    %175 = arith.mulf %174, %173 : vector<2x768xf32>
    %cst_44 = arith.constant 5.000000e-01 : f32
    %176 = vector.broadcast %cst_44 : f32 to vector<2x768xf32>
    %177 = arith.addf %175, %176 : vector<2x768xf32>
    %178 = vector.extract_strided_slice %177 {offsets = [0, 0], sizes = [2, 256], strides = [1, 1]} : vector<2x768xf32> to vector<2x256xf32>
    %179 = vector.extract_strided_slice %177 {offsets = [0, 256], sizes = [2, 256], strides = [1, 1]} : vector<2x768xf32> to vector<2x256xf32>
    %180 = vector.extract_strided_slice %177 {offsets = [0, 512], sizes = [2, 256], strides = [1, 1]} : vector<2x768xf32> to vector<2x256xf32>
    %181 = vector.extract_strided_slice %169 {offsets = [0, 768], sizes = [2, 256], strides = [1, 1]} : vector<2x1024xf32> to vector<2x256xf32>
    %182 = math.tanh %181 : vector<2x256xf32>
    %183 = arith.mulf %179, %158 : vector<2x256xf32>
    %184 = arith.mulf %178, %182 : vector<2x256xf32>
    %185 = arith.addf %183, %184 : vector<2x256xf32>
    %186 = math.tanh %185 : vector<2x256xf32>
    %187 = arith.mulf %180, %186 : vector<2x256xf32>
    %188 = vector.extract_strided_slice %53 {offsets = [4, 0, 0], sizes = [1, 2, 256], strides = [1, 1, 1]} : vector<5x2x256xf32> to vector<1x2x256xf32>
    %189 = vector.shape_cast %188 : vector<1x2x256xf32> to vector<2x256xf32>
    %190 = arith.mulf %187, %189 : vector<2x256xf32>
    %191 = arith.addf %164, %190 : vector<2x256xf32>
    %cst_45 = arith.constant dense<0.000000e+00> : vector<2xf32>
    %192 = vector.multi_reduction <add>, %191, %cst_45 [1] : vector<2x256xf32> to vector<2xf32>
    %193 = vector.shape_cast %192 : vector<2xf32> to vector<2x1xf32>
    %c0_46 = arith.constant 0 : index
    %c0_47 = arith.constant 0 : index
    %194 = vector.load %arg10[%c0_46, %c0_47] : memref<1x1xf32, #tpu.memory_space<vmem>>, vector<1x1xf32>
    %195 = vector.broadcast %194 : vector<1x1xf32> to vector<2x1xf32>
    %196 = arith.addf %193, %195 : vector<2x1xf32>
    %197 = vector.shape_cast %196 : vector<2x1xf32> to vector<1x1x2xf32>
    %c0_48 = arith.constant 0 : index
    %c0_49 = arith.constant 0 : index
    %c0_50 = arith.constant 0 : index
    %198 = vector.load %arg11[%c0_48, %c0_49, %c0_50] : memref<1x1x2xf32, #tpu.memory_space<vmem>>, vector<1x1x2xf32>
    tpu.vector_store %arg11[%c0_48, %c0_49, %c0_50], %197 {strides = array<i32>} : memref<1x1x2xf32, #tpu.memory_space<vmem>>, vector<1x1x2xf32>,
    return
  }
  func.func @transform_0(%arg0: i32) -> (i32, i32, i32) {
    %c0_i32 = arith.constant 0 : i32
    %c0_i32_0 = arith.constant 0 : i32
    %c0_i32_1 = arith.constant 0 : i32
    return %arg0, %c0_i32, %c0_i32_0 : i32, i32, i32
  }
  func.func @transform_1(%arg0: i32) -> (i32, i32) {
    %c0_i32 = arith.constant 0 : i32
    %c0_i32_0 = arith.constant 0 : i32
    %c0_i32_1 = arith.constant 0 : i32
    return %c0_i32, %c0_i32_0 : i32, i32
  }
  func.func @transform_2(%arg0: i32) -> (i32, i32) {
    %c0_i32 = arith.constant 0 : i32
    %c0_i32_0 = arith.constant 0 : i32
    %c0_i32_1 = arith.constant 0 : i32
    return %c0_i32, %c0_i32_0 : i32, i32
  }
  func.func @transform_3(%arg0: i32) -> (i32, i32) {
    %c0_i32 = arith.constant 0 : i32
    %c0_i32_0 = arith.constant 0 : i32
    %c0_i32_1 = arith.constant 0 : i32
    return %c0_i32, %c0_i32_0 : i32, i32
  }
  func.func @transform_4(%arg0: i32) -> (i32, i32) {
    %c0_i32 = arith.constant 0 : i32
    %c0_i32_0 = arith.constant 0 : i32
    %c0_i32_1 = arith.constant 0 : i32
    return %c0_i32, %c0_i32_0 : i32, i32
  }
  func.func @transform_5(%arg0: i32) -> (i32, i32) {
    %c0_i32 = arith.constant 0 : i32
    %c0_i32_0 = arith.constant 0 : i32
    %c0_i32_1 = arith.constant 0 : i32
    return %c0_i32, %c0_i32_0 : i32, i32
  }
  func.func @transform_6(%arg0: i32) -> (i32, i32) {
    %c0_i32 = arith.constant 0 : i32
    %c0_i32_0 = arith.constant 0 : i32
    %c0_i32_1 = arith.constant 0 : i32
    return %c0_i32, %c0_i32_0 : i32, i32
  }
  func.func @transform_7(%arg0: i32) -> (i32, i32) {
    %c0_i32 = arith.constant 0 : i32
    %c0_i32_0 = arith.constant 0 : i32
    %c0_i32_1 = arith.constant 0 : i32
    return %c0_i32, %c0_i32_0 : i32, i32
  }
  func.func @transform_8(%arg0: i32) -> (i32, i32) {
    %c0_i32 = arith.constant 0 : i32
    %c0_i32_0 = arith.constant 0 : i32
    %c0_i32_1 = arith.constant 0 : i32
    return %c0_i32, %c0_i32_0 : i32, i32
  }
  func.func @transform_9(%arg0: i32) -> (i32, i32) {
    %c0_i32 = arith.constant 0 : i32
    %c0_i32_0 = arith.constant 0 : i32
    %c0_i32_1 = arith.constant 0 : i32
    return %c0_i32, %c0_i32_0 : i32, i32
  }
  func.func @transform_10(%arg0: i32) -> (i32, i32, i32) {
    %c0_i32 = arith.constant 0 : i32
    %c0_i32_0 = arith.constant 0 : i32
    %c0_i32_1 = arith.constant 0 : i32
    return %arg0, %c0_i32, %c0_i32_0 : i32, i32, i32
  }
}

</mosaic_0001>

<llo_original>
// kernel: promoter_net_forward.1
$region0: #{promoter_net_forward.1}
  #allocation0 [shape = 'u32[]', space=smem, size = 0x4, offset = 0x4, fixed_abs, tag = 'smem constant byte address 0x4 - core index']
  #allocation1 [shape = 'u32[144,128]{1,0:T(1,128)}', space=vmem, size = 0x12000, scoped, tag = 'internal scratch']
  #allocation2 [shape = 'f32[1,1]{1,0:T(1,128)S(1)}', space=vmem, size = 0x200, scoped, tag = 'scoped memory for promoter_net_forward.1']
  %s0 = inlined_call_operand.vmem [shape: bf16[4,8,180], index: 0, kind: input, shape index: {}]
  %s1 = inlined_call_operand.vmem [shape: bf16[180,256], index: 1, kind: input, shape index: {}]
  %s2 = inlined_call_operand.vmem [shape: f32[1,256], index: 2, kind: input, shape index: {}]
  %s3 = inlined_call_operand.vmem [shape: bf16[512,256], index: 3, kind: input, shape index: {}]
  %s4 = inlined_call_operand.vmem [shape: f32[1,256], index: 4, kind: input, shape index: {}]
  %s5 = inlined_call_operand.hbm [shape: bf16[512,1024], index: 5, kind: input, shape index: {}]
  %s6 = inlined_call_operand.vmem [shape: f32[1,1024], index: 6, kind: input, shape index: {}]
  %s7 = inlined_call_operand.hbm [shape: bf16[256,1024], index: 7, kind: input, shape index: {}]
  %s8 = inlined_call_operand.vmem [shape: f32[5,256], index: 8, kind: input, shape index: {}]
  %s9 = inlined_call_operand.<no memory space> [shape: f32[1,1], index: 9, kind: input, shape index: {}]
  %s10 = inlined_call_operand.hbm [shape: f32[1,1,2], index: 10, kind: output, shape index: {}]
  %s11 = sld [smem:[#allocation0]]
  $region58: #{promoter_net_forward.1} parent=0
    _
  %s13 = ssub.s32 1, %s11
  %s14 = scalar_select 0, %s13, %s11
  %v15 = vstv %s9
  %16 = vst [vmem:[#allocation2] sm:$0x1] %v15
  $region1: #{promoter_net_forward.1} parent=0
    #allocation3 [shape = 'u8[1048576]{0}', space=vmem, size = 0x100000, scoped, tag = 'input window, operand 5, single buffered']
    #allocation4 [shape = 's32[1]{0}', space=sflag, size = 0x4, scoped, tag = 'scoped memory for promoter_net_forward.1']
    #allocation5 [shape = 's32[1]{0}', space=sflag, size = 0x4, scoped, tag = 'scoped memory for promoter_net_forward.1']
    #allocation6 [shape = 'u8[524288]{0}', space=vmem, size = 0x80000, scoped, tag = 'input window, operand 7, single buffered']
    #allocation7 [shape = 's32[1]{0}', space=sflag, size = 0x4, scoped, tag = 'scoped memory for promoter_net_forward.1']
    #allocation8 [shape = 'u8[512]{0}', space=vmem, size = 0x400, scoped, tag = 'output window, operand 0, single buffered']
    %17 = vsyncpa [#allocation4], 0
    %18 = vsyncpa [#allocation7], 0
    %19 = vsyncpa [#allocation5], 0
    // Predicated region
    $region2: #{promoter_net_forward.1} parent=1 // pred_check
      _
    $region3: #{promoter_net_forward.1} parent=1 // pred_check_branch
      %21 = sbr.rel (0) target = $region5
    $region4: #{promoter_net_forward.1} parent=1 // pred_region
      _
    $region5: #{promoter_net_forward.1} parent=1 // pred_fallthru
      _
    // Predicated region
    $region6: #{promoter_net_forward.1} parent=1 // pred_check
      _
    $region7: #{promoter_net_forward.1} parent=1 // pred_check_branch
      %23 = sbr.rel (0) target = $region9
    $region8: #{promoter_net_forward.1} parent=1 // pred_region
      _
    $region9: #{promoter_net_forward.1} parent=1 // pred_fallthru
      _
    // Predicated region
    $region10: #{promoter_net_forward.1} parent=1 // pred_check
      _
    $region11: #{promoter_net_forward.1} parent=1 // pred_check_branch
      %25 = sbr.rel (0) target = $region13
    $region12: #{promoter_net_forward.1} parent=1 // pred_region
      _
    $region13: #{promoter_net_forward.1} parent=1 // pred_fallthru
      _
    // Predicated region
    $region14: #{promoter_net_forward.1} parent=1 // pred_check
      _
    $region15: #{promoter_net_forward.1} parent=1 // pred_check_branch
      %27 = sbr.rel (0) target = $region17
    $region16: #{promoter_net_forward.1} parent=1 // pred_region
      _
    $region17: #{promoter_net_forward.1} parent=1 // pred_fallthru
      _
    // Predicated region
    $region18: #{promoter_net_forward.1} parent=1 // pred_check
      _
    $region19: #{promoter_net_forward.1} parent=1 // pred_check_branch
      %29 = sbr.rel (0) target = $region21
    $region20: #{promoter_net_forward.1} parent=1 // pred_region
      _
    $region21: #{promoter_net_forward.1} parent=1 // pred_fallthru
      _
    // Predicated region
    $region22: #{promoter_net_forward.1} parent=1 // pred_check
      _
    $region23: #{promoter_net_forward.1} parent=1 // pred_check_branch
      %31 = sbr.rel (0) target = $region25
    $region24: #{promoter_net_forward.1} parent=1 // pred_region
      %s33 = ssub.s32 32768, 32768
      %34 = vsyncadd [#allocation4], %s33
      %s35 = sshll.u32 [#allocation3], 4
      %s36 = int_to_ptr.vmem [resolvable:$true] %s35
      %41 = dma.hbm_to_vmem [thread:$0]  %s5, 32768, %s36, [#allocation4], 512, 512, 32
    $region25: #{promoter_net_forward.1} parent=1 // pred_fallthru
      _
    // Predicated region
    $region26: #{promoter_net_forward.1} parent=1 // pred_check
      _
    $region27: #{promoter_net_forward.1} parent=1 // pred_check_branch
      %43 = sbr.rel (0) target = $region29
    $region28: #{promoter_net_forward.1} parent=1 // pred_region
      _
    $region29: #{promoter_net_forward.1} parent=1 // pred_fallthru
      _
    // Predicated region
    $region30: #{promoter_net_forward.1} parent=1 // pred_check
      _
    $region31: #{promoter_net_forward.1} parent=1 // pred_check_branch
      %45 = sbr.rel (0) target = $region33
    $region32: #{promoter_net_forward.1} parent=1 // pred_region
      %s47 = ssub.s32 16384, 16384
      %48 = vsyncadd [#allocation7], %s47
      %s49 = sshll.u32 [#allocation6], 4
      %s50 = int_to_ptr.vmem [resolvable:$true] %s49
      %55 = dma.hbm_to_vmem [thread:$0]  %s7, 16384, %s50, [#allocation7], 512, 512, 32
    $region33: #{promoter_net_forward.1} parent=1 // pred_fallthru
      _
    // Predicated region
    $region34: #{promoter_net_forward.1} parent=1 // pred_check
      _
    $region35: #{promoter_net_forward.1} parent=1 // pred_check_branch
      %57 = sbr.rel (0) target = $region37
    $region36: #{promoter_net_forward.1} parent=1 // pred_region
      _
    $region37: #{promoter_net_forward.1} parent=1 // pred_fallthru
      _
    // Predicated region
    $region38: #{promoter_net_forward.1} parent=1 // pred_check
      _
    $region39: #{promoter_net_forward.1} parent=1 // pred_check_branch
      %59 = sbr.rel (0) target = $region41
    $region40: #{promoter_net_forward.1} parent=1 // pred_region
      _
    $region41: #{promoter_net_forward.1} parent=1 // pred_fallthru
      _
    // Predicated region
    $region42: #{promoter_net_forward.1} parent=1 // pred_check
      _
    $region43: #{promoter_net_forward.1} parent=1 // pred_check_branch
      %61 = sbr.rel (0) target = $region45
    $region44: #{promoter_net_forward.1} parent=1 // pred_region
      %62 = dma.done [#allocation4], 32768
    $region45: #{promoter_net_forward.1} parent=1 // pred_fallthru
      _
    // Predicated region
    $region46: #{promoter_net_forward.1} parent=1 // pred_check
      _
    $region47: #{promoter_net_forward.1} parent=1 // pred_check_branch
      %64 = sbr.rel (0) target = $region49
    $region48: #{promoter_net_forward.1} parent=1 // pred_region
      %65 = dma.done [#allocation7], 16384
    $region49: #{promoter_net_forward.1} parent=1 // pred_fallthru
      _
    %v67 = vld [vmem:[%s0] sm:$0xff]
    %v68 = vld [vmem:[%s0 + $0x8] sm:$0xff]
    %v69 = vld [vmem:[%s0 + $0x10] sm:$0xff]
    %v70 = vld [vmem:[%s0 + $0x18] sm:$0xff]
    %v71 = vld [vmem:[%s1] sm:$0xff]
    %v72 = vld [vmem:[%s1 + $0x8] sm:$0xff]
    %v73 = vld [vmem:[%s1 + $0x10] sm:$0xff]
    %v74 = vld [vmem:[%s1 + $0x18] sm:$0xff]
    %v75 = vld [vmem:[%s1 + $0x20] sm:$0xff]
    %v76 = vld [vmem:[%s1 + $0x28] sm:$0xff]
    %v77 = vld [vmem:[%s1 + $0x30] sm:$0xff]
    %v78 = vld [vmem:[%s1 + $0x38] sm:$0xff]
    %v79 = vld [vmem:[%s1 + $0x40] sm:$0xff]
    %v80 = vld [vmem:[%s1 + $0x48] sm:$0xff]
    %v81 = vld [vmem:[%s1 + $0x50] sm:$0xff]
    %v82 = vld [vmem:[%s1 + $0x58] sm:$0xff]
    %v83 = vld [vmem:[%s1 + $0x60] sm:$0xff]
    %v84 = vld [vmem:[%s1 + $0x68] sm:$0xff]
    %v85 = vld [vmem:[%s1 + $0x70] sm:$0xff]
    %v86 = vld [vmem:[%s1 + $0x78] sm:$0xff]
    %v87 = vld [vmem:[%s1 + $0x80] sm:$0xff]
    %v88 = vld [vmem:[%s1 + $0x88] sm:$0xff]
    %v89 = vld [vmem:[%s1 + $0x90] sm:$0xff]
    %v90 = vld [vmem:[%s1 + $0x98] sm:$0xff]
    %v91 = vld [vmem:[%s1 + $0xa0] sm:$0xff]
    %v92 = vld [vmem:[%s1 + $0xa8] sm:$0xff]
    %v93 = vld [vmem:[%s1 + $0xb0] sm:$0x33]
    %v94 = vld [vmem:[%s2] sm:$0x3]
    %v96 = vlaneseq
    %v97 = vshrl.u32 %v96, 7
    %v98 = vsub.s32 0, %v97
    %v99 = vrot.slane %v94, %v98
    %v100 = vlaneseq
    %v101 = vshrl.u32 %v100, 7
    %v102 = vsub.s32 1, %v101
    %v103 = vrot.slane %v94, %v102
    %v110 = vunpack.c.l.b16 %v67
    %v111 = vunpack.c.h.b16 %v67
    %v112 = vunpack.c.l.b16 %v68
    %v113 = vunpack.c.h.b16 %v68
    %v114 = vunpack.c.l.b16 %v69
    %v115 = vunpack.c.h.b16 %v69
    %v116 = vunpack.c.l.b16 %v70
    %v117 = vunpack.c.h.b16 %v70
    %v118 = vpack.c.b16 %v112, %v110
    %v119 = vpack.c.b16 %v113, %v111
    %v120 = vpack.c.b16 %v116, %v114
    %v121 = vpack.c.b16 %v117, %v115
    %v147 = vunpack.c.l.b16 %v71
    %v148 = vunpack.c.h.b16 %v71
    %v149 = vunpack.c.l.b16 %v72
    %v150 = vunpack.c.h.b16 %v72
    %v151 = vunpack.c.l.b16 %v73
    %v152 = vunpack.c.h.b16 %v73
    %v153 = vunpack.c.l.b16 %v74
    %v154 = vunpack.c.h.b16 %v74
    %v155 = vunpack.c.l.b16 %v75
    %v156 = vunpack.c.h.b16 %v75
    %v157 = vunpack.c.l.b16 %v76
    %v158 = vunpack.c.h.b16 %v76
    %v159 = vunpack.c.l.b16 %v77
    %v160 = vunpack.c.h.b16 %v77
    %v161 = vunpack.c.l.b16 %v78
    %v162 = vunpack.c.h.b16 %v78
    %v163 = vunpack.c.l.b16 %v79
    %v164 = vunpack.c.h.b16 %v79
    %v165 = vunpack.c.l.b16 %v80
    %v166 = vunpack.c.h.b16 %v80
    %v167 = vunpack.c.l.b16 %v81
    %v168 = vunpack.c.h.b16 %v81
    %v169 = vunpack.c.l.b16 %v82
    %v170 = vunpack.c.h.b16 %v82
    %v171 = vunpack.c.l.b16 %v83
    %v172 = vunpack.c.h.b16 %v83
    %v173 = vunpack.c.l.b16 %v84
    %v174 = vunpack.c.h.b16 %v84
    %v175 = vunpack.c.l.b16 %v85
    %v176 = vunpack.c.h.b16 %v85
    %v177 = vunpack.c.l.b16 %v86
    %v178 = vunpack.c.h.b16 %v86
    %v179 = vunpack.c.l.b16 %v87
    %v180 = vunpack.c.h.b16 %v87
    %v181 = vunpack.c.l.b16 %v88
    %v182 = vunpack.c.h.b16 %v88
    %v183 = vunpack.c.l.b16 %v89
    %v184 = vunpack.c.h.b16 %v89
    %v185 = vunpack.c.l.b16 %v90
    %v186 = vunpack.c.h.b16 %v90
    %v187 = vunpack.c.l.b16 %v91
    %v188 = vunpack.c.h.b16 %v91
    %v189 = vunpack.c.l.b16 %v92
    %v190 = vunpack.c.h.b16 %v92
    %v191 = vunpack.c.l.b16 %v93
    %v192 = vunpack.c.h.b16 %v93
    %v193 = vpack.c.b16 %v149, %v147
    %v194 = vpack.c.b16 %v150, %v148
    %v195 = vpack.c.b16 %v153, %v151
    %v196 = vpack.c.b16 %v154, %v152
    %v197 = vpack.c.b16 %v157, %v155
    %v198 = vpack.c.b16 %v158, %v156
    %v199 = vpack.c.b16 %v161, %v159
    %v200 = vpack.c.b16 %v162, %v160
    %v201 = vpack.c.b16 %v165, %v163
    %v202 = vpack.c.b16 %v166, %v164
    %v203 = vpack.c.b16 %v169, %v167
    %v204 = vpack.c.b16 %v170, %v168
    %v205 = vpack.c.b16 %v173, %v171
    %v206 = vpack.c.b16 %v174, %v172
    %v207 = vpack.c.b16 %v177, %v175
    %v208 = vpack.c.b16 %v178, %v176
    %v209 = vpack.c.b16 %v181, %v179
    %v210 = vpack.c.b16 %v182, %v180
    %v211 = vpack.c.b16 %v185, %v183
    %v212 = vpack.c.b16 %v186, %v184
    %v213 = vpack.c.b16 %v189, %v187
    %v214 = vpack.c.b16 %v190, %v188
    %v215 = vpack.c.b16 %v191, %v191
    %v216 = vpack.c.b16 %v192, %v192
    %vm239 = vcmask 424960
    %v241 = vsel %vm239, %v119, 0
    %v244 = vsel %vm239, %v121, 0
    %vm246 = vcmask 1041408
    %v248 = vsel %vm246, %v215, 0
    %v251 = vsel %vm246, %v216, 0
    %253 = vmatprep.subr.bf16.mxu0 %v208
    %254 = vmatpush1.bf16.msra.mxu0 %v207
    %255 = vmatprep.subr.bf16.mxu0 %v206
    %256 = vmatpush1.bf16.msra.mxu0 %v205
    %257 = vmatprep.subr.bf16.mxu0 %v204
    %258 = vmatpush1.bf16.msra.mxu0 %v203
    %259 = vmatprep.subr.bf16.mxu0 %v202
    %260 = vmatpush1.bf16.msra.mxu0 %v201
    %261 = vmatprep.subr.bf16.mxu0 %v200
    %262 = vmatpush1.bf16.msra.mxu0 %v199
    %263 = vmatprep.subr.bf16.mxu0 %v198
    %264 = vmatpush1.bf16.msra.mxu0 %v197
    %265 = vmatprep.subr.bf16.mxu0 %v196
    %266 = vmatpush1.bf16.msra.mxu0 %v195
    %267 = vmatprep.subr.bf16.mxu0 %v194
    %268 = vmatpush1.bf16.msra.mxu0 %v193
    %269 = vmatprep.subr.bf16.mxu0 0
    %270 = vmatpush2.bf16.msra.mxu0 0
    %271 = vmatprep.subr.bf16.mxu0 0
    %272 = vmatpush2.bf16.msra.mxu0 0
    %273 = vmatprep.subr.bf16.mxu0 0
    %274 = vmatpush2.bf16.msra.mxu0 0
    %275 = vmatprep.subr.bf16.mxu0 0
    %276 = vmatpush2.bf16.msra.mxu0 0
    %277 = vmatprep.subr.bf16.mxu0 %v251
    %278 = vmatpush2.bf16.msra.mxu0 %v248
    %279 = vmatprep.subr.bf16.mxu0 %v214
    %280 = vmatpush2.bf16.msra.mxu0 %v213
    %281 = vmatprep.subr.bf16.mxu0 %v212
    %282 = vmatpush2.bf16.msra.mxu0 %v211
    %283 = vmatprep.subr.bf16.mxu0 %v210
    %284 = vmatpush2.bf16.msra.mxu0 %v209
    %285 = vmatprep.mubr.bf16.mxu0 %v241
    %286 = vmatmul.mubr.bf16.gmra.mxu0 %v118
    %v287 = vpop.f32.mrf.mxu0
    %v288 = vadd.f32 %v99, %v287
    %v289 = vpop.f32.mrf.mxu0
    %v290 = vadd.f32 %v103, %v289
    %v291 = vpop.f32.mrf.mxu0
    %v292 = vadd.f32 %v99, %v291
    %v293 = vpop.f32.mrf.mxu0
    %v294 = vadd.f32 %v103, %v293
    %295 = vmatprep.mubr.bf16.mxu0 %v244
    %296 = vmatmul.mubr.bf16.gmra.mxu0 %v120
    %v297 = vpop.f32.mrf.mxu0
    %v298 = vadd.f32 %v99, %v297
    %v299 = vpop.f32.mrf.mxu0
    %v300 = vadd.f32 %v103, %v299
    %v301 = vpop.f32.mrf.mxu0
    %v302 = vadd.f32 %v99, %v301
    %v303 = vpop.f32.mrf.mxu0
    %v304 = vadd.f32 %v103, %v303
    %305 = vdwg.mxu0
    %v306 = vmax.f32 %v288, %v290
    %v307 = vmax.f32 %v292, %v294
    %v308 = vmax.f32 %v298, %v300
    %v309 = vmax.f32 %v302, %v304
    %v310 = vmax.f32 %v306, 0.0
    %v311 = vmax.f32 %v307, 0.0
    %v312 = vmax.f32 %v308, 0.0
    %v313 = vmax.f32 %v309, 0.0
    %v314 = vpack.c.bf16 %v310, %v310
    %v315 = vpack.c.bf16 %v311, %v311
    %v316 = vpack.c.bf16 %v312, %v312
    %v317 = vpack.c.bf16 %v313, %v313
    %v319 = vshrl.u32 %v314, 16
    %v321 = vshll.u32 %v314, 16
    %v323 = vrot.slane %v321, 1
    %v324 = vor.u32 %v319, %v323
    %v326 = vshrl.u32 %v315, 16
    %v328 = vshll.u32 %v315, 16
    %v330 = vrot.slane %v328, 1
    %v331 = vor.u32 %v326, %v330
    %v333 = vshrl.u32 %v316, 16
    %v335 = vshll.u32 %v316, 16
    %v337 = vrot.slane %v335, 1
    %v338 = vor.u32 %v333, %v337
    %v340 = vshrl.u32 %v317, 16
    %v342 = vshll.u32 %v317, 16
    %v344 = vrot.slane %v342, 1
    %v345 = vor.u32 %v340, %v344
    %v350 = vrot.slane %v314, 1
    %v351 = vrot.slane %v315, 1
    %v352 = vrot.slane %v316, 1
    %v353 = vrot.slane %v317, 1
    %v354 = vrot.slane %v319, 1
    %v355 = vrot.slane %v321, 2
    %v356 = vor.u32 %v354, %v355
    %v357 = vrot.slane %v326, 1
    %v358 = vrot.slane %v328, 2
    %v359 = vor.u32 %v357, %v358
    %v360 = vrot.slane %v333, 1
    %v361 = vrot.slane %v335, 2
    %v362 = vor.u32 %v360, %v361
    %v363 = vrot.slane %v340, 1
    %v364 = vrot.slane %v342, 2
    %v365 = vor.u32 %v363, %v364
    %v366 = vcombine.low %v314, %v324
    %v367 = vcombine.low %v350, %v356
    %v369 = vunpack.c.l.s4 1966171168
    %v370 = vunpack.c.0.s8 %v369
    %v371 = vlaneseq
    %v372 = vshrl.u32 %v371, 7
    %v373 = vsub.s32 %v370, %v372
    %v374 = vrot.slane %v366, %v373
    %v376 = vunpack.c.l.s4 1966171168
    %v377 = vunpack.c.0.s8 %v376
    %v378 = vlaneseq
    %v379 = vshrl.u32 %v378, 7
    %v380 = vsub.s32 %v377, %v379
    %v381 = vrot.slane %v367, %v380
    %v382 = vcombine.low %v374, %v381
    %v383 = vcombine.high %v374, %v381
    %v385 = vunpack.c.l.s4 1966171168
    %v386 = vunpack.c.0.s8 %v385
    %v387 = vlaneseq
    %v388 = vshrl.u32 %v387, 7
    %v389 = vsub.s32 %v386, %v388
    %v390 = vrot.slane %v382, %v389
    %v392 = vunpack.c.l.s4 1966171168
    %v393 = vunpack.c.0.s8 %v392
    %v394 = vlaneseq
    %v395 = vshrl.u32 %v394, 7
    %v396 = vsub.s32 %v393, %v395
    %v397 = vrot.slane %v383, %v396
    %v398 = vcombine.high %v390, %v390
    %v399 = vcombine.low %v315, %v331
    %v400 = vcombine.low %v351, %v359
    %v402 = vunpack.c.l.s4 1966171168
    %v403 = vunpack.c.0.s8 %v402
    %v404 = vlaneseq
    %v405 = vshrl.u32 %v404, 7
    %v406 = vsub.s32 %v403, %v405
    %v407 = vrot.slane %v399, %v406
    %v409 = vunpack.c.l.s4 1966171168
    %v410 = vunpack.c.0.s8 %v409
    %v411 = vlaneseq
    %v412 = vshrl.u32 %v411, 7
    %v413 = vsub.s32 %v410, %v412
    %v414 = vrot.slane %v400, %v413
    %v415 = vcombine.low %v407, %v414
    %v416 = vcombine.high %v407, %v414
    %v418 = vunpack.c.l.s4 1966171168
    %v419 = vunpack.c.0.s8 %v418
    %v420 = vlaneseq
    %v421 = vshrl.u32 %v420, 7
    %v422 = vsub.s32 %v419, %v421
    %v423 = vrot.slane %v415, %v422
    %v425 = vunpack.c.l.s4 1966171168
    %v426 = vunpack.c.0.s8 %v425
    %v427 = vlaneseq
    %v428 = vshrl.u32 %v427, 7
    %v429 = vsub.s32 %v426, %v428
    %v430 = vrot.slane %v416, %v429
    %v431 = vcombine.high %v423, %v423
    %v432 = vcombine.low %v316, %v338
    %v433 = vcombine.low %v352, %v362
    %v435 = vunpack.c.l.s4 1966171168
    %v436 = vunpack.c.0.s8 %v435
    %v437 = vlaneseq
    %v438 = vshrl.u32 %v437, 7
    %v439 = vsub.s32 %v436, %v438
    %v440 = vrot.slane %v432, %v439
    %v442 = vunpack.c.l.s4 1966171168
    %v443 = vunpack.c.0.s8 %v442
    %v444 = vlaneseq
    %v445 = vshrl.u32 %v444, 7
    %v446 = vsub.s32 %v443, %v445
    %v447 = vrot.slane %v433, %v446
    %v448 = vcombine.low %v440, %v447
    %v449 = vcombine.high %v440, %v447
    %v451 = vunpack.c.l.s4 1966171168
    %v452 = vunpack.c.0.s8 %v451
    %v453 = vlaneseq
    %v454 = vshrl.u32 %v453, 7
    %v455 = vsub.s32 %v452, %v454
    %v456 = vrot.slane %v448, %v455
    %v458 = vunpack.c.l.s4 1966171168
    %v459 = vunpack.c.0.s8 %v458
    %v460 = vlaneseq
    %v461 = vshrl.u32 %v460, 7
    %v462 = vsub.s32 %v459, %v461
    %v463 = vrot.slane %v449, %v462
    %v464 = vcombine.high %v456, %v456
    %v465 = vcombine.low %v317, %v345
    %v466 = vcombine.low %v353, %v365
    %v468 = vunpack.c.l.s4 1966171168
    %v469 = vunpack.c.0.s8 %v468
    %v470 = vlaneseq
    %v471 = vshrl.u32 %v470, 7
    %v472 = vsub.s32 %v469, %v471
    %v473 = vrot.slane %v465, %v472
    %v475 = vunpack.c.l.s4 1966171168
    %v476 = vunpack.c.0.s8 %v475
    %v477 = vlaneseq
    %v478 = vshrl.u32 %v477, 7
    %v479 = vsub.s32 %v476, %v478
    %v480 = vrot.slane %v466, %v479
    %v481 = vcombine.low %v473, %v480
    %v482 = vcombine.high %v473, %v480
    %v484 = vunpack.c.l.s4 1966171168
    %v485 = vunpack.c.0.s8 %v484
    %v486 = vlaneseq
    %v487 = vshrl.u32 %v486, 7
    %v488 = vsub.s32 %v485, %v487
    %v489 = vrot.slane %v481, %v488
    %v491 = vunpack.c.l.s4 1966171168
    %v492 = vunpack.c.0.s8 %v491
    %v493 = vlaneseq
    %v494 = vshrl.u32 %v493, 7
    %v495 = vsub.s32 %v492, %v494
    %v496 = vrot.slane %v482, %v495
    %v497 = vcombine.high %v489, %v489
    %v498 = vunpack.i.l.s16 %v390
    %v499 = vunpack.i.h.s16 %v390
    %v500 = vunpack.i.l.s16 %v397
    %v501 = vunpack.i.h.s16 %v397
    %v502 = vunpack.i.l.s16 %v398
    %v503 = vunpack.i.l.s16 %v423
    %v504 = vunpack.i.h.s16 %v423
    %v505 = vunpack.i.l.s16 %v430
    %v506 = vunpack.i.h.s16 %v430
    %v507 = vunpack.i.l.s16 %v431
    %v508 = vunpack.i.l.s16 %v456
    %v509 = vunpack.i.h.s16 %v456
    %v510 = vunpack.i.l.s16 %v463
    %v511 = vunpack.i.h.s16 %v463
    %v512 = vunpack.i.l.s16 %v464
    %v513 = vunpack.i.l.s16 %v489
    %v514 = vunpack.i.h.s16 %v489
    %v515 = vunpack.i.l.s16 %v496
    %v516 = vunpack.i.h.s16 %v496
    %v517 = vunpack.i.l.s16 %v497
    %v518 = vld [vmem:[%s3] sm:$0xff]
    %v519 = vld [vmem:[%s3 + $0x8] sm:$0xff]
    %v520 = vld [vmem:[%s3 + $0x10] sm:$0xff]
    %v521 = vld [vmem:[%s3 + $0x18] sm:$0xff]
    %v522 = vld [vmem:[%s3 + $0x20] sm:$0xff]
    %v523 = vld [vmem:[%s3 + $0x28] sm:$0xff]
    %v524 = vld [vmem:[%s3 + $0x30] sm:$0xff]
    %v525 = vld [vmem:[%s3 + $0x38] sm:$0xff]
    %v526 = vld [vmem:[%s3 + $0x40] sm:$0xff]
    %v527 = vld [vmem:[%s3 + $0x48] sm:$0xff]
    %v528 = vld [vmem:[%s3 + $0x50] sm:$0xff]
    %v529 = vld [vmem:[%s3 + $0x58] sm:$0xff]
    %v530 = vld [vmem:[%s3 + $0x60] sm:$0xff]
    %v531 = vld [vmem:[%s3 + $0x68] sm:$0xff]
    %v532 = vld [vmem:[%s3 + $0x70] sm:$0xff]
    %v533 = vld [vmem:[%s3 + $0x78] sm:$0xff]
    %v534 = vld [vmem:[%s3 + $0x80] sm:$0xff]
    %v535 = vld [vmem:[%s3 + $0x88] sm:$0xff]
    %v536 = vld [vmem:[%s3 + $0x90] sm:$0xff]
    %v537 = vld [vmem:[%s3 + $0x98] sm:$0xff]
    %v538 = vld [vmem:[%s3 + $0xa0] sm:$0xff]
    %v539 = vld [vmem:[%s3 + $0xa8] sm:$0xff]
    %v540 = vld [vmem:[%s3 + $0xb0] sm:$0xff]
    %v541 = vld [vmem:[%s3 + $0xb8] sm:$0xff]
    %v542 = vld [vmem:[%s3 + $0xc0] sm:$0xff]
    %v543 = vld [vmem:[%s3 + $0xc8] sm:$0xff]
    %v544 = vld [vmem:[%s3 + $0xd0] sm:$0xff]
    %v545 = vld [vmem:[%s3 + $0xd8] sm:$0xff]
    %v546 = vld [vmem:[%s3 + $0xe0] sm:$0xff]
    %v547 = vld [vmem:[%s3 + $0xe8] sm:$0xff]
    %v548 = vld [vmem:[%s3 + $0xf0] sm:$0xff]
    %v549 = vld [vmem:[%s3 + $0xf8] sm:$0xff]
    %v550 = vld [vmem:[%s3 + $0x100] sm:$0xff]
    %v551 = vld [vmem:[%s3 + $0x108] sm:$0xff]
    %v552 = vld [vmem:[%s3 + $0x110] sm:$0xff]
    %v553 = vld [vmem:[%s3 + $0x118] sm:$0xff]
    %v554 = vld [vmem:[%s3 + $0x120] sm:$0xff]
    %v555 = vld [vmem:[%s3 + $0x128] sm:$0xff]
    %v556 = vld [vmem:[%s3 + $0x130] sm:$0xff]
    %v557 = vld [vmem:[%s3 + $0x138] sm:$0xff]
    %v558 = vld [vmem:[%s3 + $0x140] sm:$0xff]
    %v559 = vld [vmem:[%s3 + $0x148] sm:$0xff]
    %v560 = vld [vmem:[%s3 + $0x150] sm:$0xff]
    %v561 = vld [vmem:[%s3 + $0x158] sm:$0xff]
    %v562 = vld [vmem:[%s3 + $0x160] sm:$0xff]
    %v563 = vld [vmem:[%s3 + $0x168] sm:$0xff]
    %v564 = vld [vmem:[%s3 + $0x170] sm:$0xff]
    %v565 = vld [vmem:[%s3 + $0x178] sm:$0xff]
    %v566 = vld [vmem:[%s3 + $0x180] sm:$0xff]
    %v567 = vld [vmem:[%s3 + $0x188] sm:$0xff]
    %v568 = vld [vmem:[%s3 + $0x190] sm:$0xff]
    %v569 = vld [vmem:[%s3 + $0x198] sm:$0xff]
    %v570 = vld [vmem:[%s3 + $0x1a0] sm:$0xff]
    %v571 = vld [vmem:[%s3 + $0x1a8] sm:$0xff]
    %v572 = vld [vmem:[%s3 + $0x1b0] sm:$0xff]
    %v573 = vld [vmem:[%s3 + $0x1b8] sm:$0xff]
    %v574 = vld [vmem:[%s3 + $0x1c0] sm:$0xff]
    %v575 = vld [vmem:[%s3 + $0x1c8] sm:$0xff]
    %v576 = vld [vmem:[%s3 + $0x1d0] sm:$0xff]
    %v577 = vld [vmem:[%s3 + $0x1d8] sm:$0xff]
    %v578 = vld [vmem:[%s3 + $0x1e0] sm:$0xff]
    %v579 = vld [vmem:[%s3 + $0x1e8] sm:$0xff]
    %v580 = vld [vmem:[%s3 + $0x1f0] sm:$0xff]
    %v581 = vld [vmem:[%s3 + $0x1f8] sm:$0xff]
    %v582 = vld [vmem:[%s4] sm:$0x3]
    %v584 = vlaneseq
    %v585 = vshrl.u32 %v584, 7
    %v586 = vsub.s32 0, %v585
    %v587 = vrot.slane %v582, %v586
    %v588 = vlaneseq
    %v589 = vshrl.u32 %v588, 7
    %v590 = vsub.s32 1, %v589
    %v591 = vrot.slane %v582, %v590
    %v594 = vpack.i.b16 %v499, %v498
    %v595 = vpack.i.b16 %v501, %v500
    %v596 = vpack.i.b16 %v503, %v502
    %v597 = vpack.i.b16 %v505, %v504
    %v598 = vpack.i.b16 %v507, %v506
    %v599 = vpack.i.b16 %v509, %v508
    %v600 = vpack.i.b16 %v511, %v510
    %v601 = vpack.i.b16 %v513, %v512
    %v602 = vpack.i.b16 %v515, %v514
    %v603 = vpack.i.b16 %v517, %v516
    %v604 = vcombine.low %v594, %v595
    %v605 = vcombine.low %v596, %v597
    %v606 = vcombine.low %v598, %v599
    %v607 = vcombine.low %v600, %v601
    %v609 = vunpack.c.l.s4 1966171168
    %v610 = vunpack.c.0.s8 %v609
    %v611 = vlaneseq
    %v612 = vshrl.u32 %v611, 7
    %v613 = vsub.s32 %v610, %v612
    %v614 = vrot.slane %v604, %v613
    %v616 = vunpack.c.l.s4 1966171168
    %v617 = vunpack.c.0.s8 %v616
    %v618 = vlaneseq
    %v619 = vshrl.u32 %v618, 7
    %v620 = vsub.s32 %v617, %v619
    %v621 = vrot.slane %v605, %v620
    %v623 = vunpack.c.l.s4 1966171168
    %v624 = vunpack.c.0.s8 %v623
    %v625 = vlaneseq
    %v626 = vshrl.u32 %v625, 7
    %v627 = vsub.s32 %v624, %v626
    %v628 = vrot.slane %v606, %v627
    %v630 = vunpack.c.l.s4 1966171168
    %v631 = vunpack.c.0.s8 %v630
    %v632 = vlaneseq
    %v633 = vshrl.u32 %v632, 7
    %v634 = vsub.s32 %v631, %v633
    %v635 = vrot.slane %v607, %v634
    %v636 = vcombine.low %v614, %v621
    %v637 = vcombine.high %v614, %v621
    %v638 = vcombine.low %v628, %v635
    %v639 = vcombine.high %v628, %v635
    %v641 = vunpack.c.l.s4 1966171168
    %v642 = vunpack.c.0.s8 %v641
    %v643 = vlaneseq
    %v644 = vshrl.u32 %v643, 7
    %v645 = vsub.s32 %v642, %v644
    %v646 = vrot.slane %v636, %v645
    %v648 = vunpack.c.l.s4 1966171168
    %v649 = vunpack.c.0.s8 %v648
    %v650 = vlaneseq
    %v651 = vshrl.u32 %v650, 7
    %v652 = vsub.s32 %v649, %v651
    %v653 = vrot.slane %v637, %v652
    %v655 = vunpack.c.l.s4 1966171168
    %v656 = vunpack.c.0.s8 %v655
    %v657 = vlaneseq
    %v658 = vshrl.u32 %v657, 7
    %v659 = vsub.s32 %v656, %v658
    %v660 = vrot.slane %v638, %v659
    %v662 = vunpack.c.l.s4 1966171168
    %v663 = vunpack.c.0.s8 %v662
    %v664 = vlaneseq
    %v665 = vshrl.u32 %v664, 7
    %v666 = vsub.s32 %v663, %v665
    %v667 = vrot.slane %v639, %v666
    %v668 = vcombine.low %v646, %v660
    %v669 = vcombine.high %v646, %v660
    %v670 = vcombine.low %v653, %v667
    %v671 = vcombine.high %v653, %v667
    %v672 = vcombine.low %v602, %v603
    %v674 = vunpack.c.l.s4 1966171168
    %v675 = vunpack.c.0.s8 %v674
    %v676 = vlaneseq
    %v677 = vshrl.u32 %v676, 7
    %v678 = vsub.s32 %v675, %v677
    %v679 = vrot.slane %v672, %v678
    %v680 = vcombine.high %v679, %v679
    %v682 = vunpack.c.l.s4 1966171168
    %v683 = vunpack.c.0.s8 %v682
    %v684 = vlaneseq
    %v685 = vshrl.u32 %v684, 7
    %v686 = vsub.s32 %v683, %v685
    %v687 = vrot.slane %v679, %v686
    %v689 = vunpack.c.l.s4 1966171168
    %v690 = vunpack.c.0.s8 %v689
    %v691 = vlaneseq
    %v692 = vshrl.u32 %v691, 7
    %v693 = vsub.s32 %v690, %v692
    %v694 = vrot.slane %v680, %v693
    %v695 = vcombine.high %v687, %v687
    %v696 = vcombine.high %v694, %v694
    %v769 = vunpack.c.l.b16 %v518
    %v770 = vunpack.c.h.b16 %v518
    %v771 = vunpack.c.l.b16 %v519
    %v772 = vunpack.c.h.b16 %v519
    %v773 = vunpack.c.l.b16 %v520
    %v774 = vunpack.c.h.b16 %v520
    %v775 = vunpack.c.l.b16 %v521
    %v776 = vunpack.c.h.b16 %v521
    %v777 = vunpack.c.l.b16 %v522
    %v778 = vunpack.c.h.b16 %v522
    %v779 = vunpack.c.l.b16 %v523
    %v780 = vunpack.c.h.b16 %v523
    %v781 = vunpack.c.l.b16 %v524
    %v782 = vunpack.c.h.b16 %v524
    %v783 = vunpack.c.l.b16 %v525
    %v784 = vunpack.c.h.b16 %v525
    %v785 = vunpack.c.l.b16 %v526
    %v786 = vunpack.c.h.b16 %v526
    %v787 = vunpack.c.l.b16 %v527
    %v788 = vunpack.c.h.b16 %v527
    %v789 = vunpack.c.l.b16 %v528
    %v790 = vunpack.c.h.b16 %v528
    %v791 = vunpack.c.l.b16 %v529
    %v792 = vunpack.c.h.b16 %v529
    %v793 = vunpack.c.l.b16 %v530
    %v794 = vunpack.c.h.b16 %v530
    %v795 = vunpack.c.l.b16 %v531
    %v796 = vunpack.c.h.b16 %v531
    %v797 = vunpack.c.l.b16 %v532
    %v798 = vunpack.c.h.b16 %v532
    %v799 = vunpack.c.l.b16 %v533
    %v800 = vunpack.c.h.b16 %v533
    %v801 = vunpack.c.l.b16 %v534
    %v802 = vunpack.c.h.b16 %v534
    %v803 = vunpack.c.l.b16 %v535
    %v804 = vunpack.c.h.b16 %v535
    %v805 = vunpack.c.l.b16 %v536
    %v806 = vunpack.c.h.b16 %v536
    %v807 = vunpack.c.l.b16 %v537
    %v808 = vunpack.c.h.b16 %v537
    %v809 = vunpack.c.l.b16 %v538
    %v810 = vunpack.c.h.b16 %v538
    %v811 = vunpack.c.l.b16 %v539
    %v812 = vunpack.c.h.b16 %v539
    %v813 = vunpack.c.l.b16 %v540
    %v814 = vunpack.c.h.b16 %v540
    %v815 = vunpack.c.l.b16 %v541
    %v816 = vunpack.c.h.b16 %v541
    %v817 = vunpack.c.l.b16 %v542
    %v818 = vunpack.c.h.b16 %v542
    %v819 = vunpack.c.l.b16 %v543
    %v820 = vunpack.c.h.b16 %v543
    %v821 = vunpack.c.l.b16 %v544
    %v822 = vunpack.c.h.b16 %v544
    %v823 = vunpack.c.l.b16 %v545
    %v824 = vunpack.c.h.b16 %v545
    %v825 = vunpack.c.l.b16 %v546
    %v826 = vunpack.c.h.b16 %v546
    %v827 = vunpack.c.l.b16 %v547
    %v828 = vunpack.c.h.b16 %v547
    %v829 = vunpack.c.l.b16 %v548
    %v830 = vunpack.c.h.b16 %v548
    %v831 = vunpack.c.l.b16 %v549
    %v832 = vunpack.c.h.b16 %v549
    %v833 = vunpack.c.l.b16 %v550
    %v834 = vunpack.c.h.b16 %v550
    %v835 = vunpack.c.l.b16 %v551
    %v836 = vunpack.c.h.b16 %v551
    %v837 = vunpack.c.l.b16 %v552
    %v838 = vunpack.c.h.b16 %v552
    %v839 = vunpack.c.l.b16 %v553
    %v840 = vunpack.c.h.b16 %v553
    %v841 = vunpack.c.l.b16 %v554
    %v842 = vunpack.c.h.b16 %v554
    %v843 = vunpack.c.l.b16 %v555
    %v844 = vunpack.c.h.b16 %v555
    %v845 = vunpack.c.l.b16 %v556
    %v846 = vunpack.c.h.b16 %v556
    %v847 = vunpack.c.l.b16 %v557
    %v848 = vunpack.c.h.b16 %v557
    %v849 = vunpack.c.l.b16 %v558
    %v850 = vunpack.c.h.b16 %v558
    %v851 = vunpack.c.l.b16 %v559
    %v852 = vunpack.c.h.b16 %v559
    %v853 = vunpack.c.l.b16 %v560
    %v854 = vunpack.c.h.b16 %v560
    %v855 = vunpack.c.l.b16 %v561
    %v856 = vunpack.c.h.b16 %v561
    %v857 = vunpack.c.l.b16 %v562
    %v858 = vunpack.c.h.b16 %v562
    %v859 = vunpack.c.l.b16 %v563
    %v860 = vunpack.c.h.b16 %v563
    %v861 = vunpack.c.l.b16 %v564
    %v862 = vunpack.c.h.b16 %v564
    %v863 = vunpack.c.l.b16 %v565
    %v864 = vunpack.c.h.b16 %v565
    %v865 = vunpack.c.l.b16 %v566
    %v866 = vunpack.c.h.b16 %v566
    %v867 = vunpack.c.l.b16 %v567
    %v868 = vunpack.c.h.b16 %v567
    %v869 = vunpack.c.l.b16 %v568
    %v870 = vunpack.c.h.b16 %v568
    %v871 = vunpack.c.l.b16 %v569
    %v872 = vunpack.c.h.b16 %v569
    %v873 = vunpack.c.l.b16 %v570
    %v874 = vunpack.c.h.b16 %v570
    %v875 = vunpack.c.l.b16 %v571
    %v876 = vunpack.c.h.b16 %v571
    %v877 = vunpack.c.l.b16 %v572
    %v878 = vunpack.c.h.b16 %v572
    %v879 = vunpack.c.l.b16 %v573
    %v880 = vunpack.c.h.b16 %v573
    %v881 = vunpack.c.l.b16 %v574
    %v882 = vunpack.c.h.b16 %v574
    %v883 = vunpack.c.l.b16 %v575
    %v884 = vunpack.c.h.b16 %v575
    %v885 = vunpack.c.l.b16 %v576
    %v886 = vunpack.c.h.b16 %v576
    %v887 = vunpack.c.l.b16 %v577
    %v888 = vunpack.c.h.b16 %v577
    %v889 = vunpack.c.l.b16 %v578
    %v890 = vunpack.c.h.b16 %v578
    %v891 = vunpack.c.l.b16 %v579
    %v892 = vunpack.c.h.b16 %v579
    %v893 = vunpack.c.l.b16 %v580
    %v894 = vunpack.c.h.b16 %v580
    %v895 = vunpack.c.l.b16 %v581
    %v896 = vunpack.c.h.b16 %v581
    %v897 = vpack.c.b16 %v771, %v769
    %v898 = vpack.c.b16 %v772, %v770
    %v899 = vpack.c.b16 %v775, %v773
    %v900 = vpack.c.b16 %v776, %v774
    %v901 = vpack.c.b16 %v779, %v777
    %v902 = vpack.c.b16 %v780, %v778
    %v903 = vpack.c.b16 %v783, %v781
    %v904 = vpack.c.b16 %v784, %v782
    %v905 = vpack.c.b16 %v787, %v785
    %v906 = vpack.c.b16 %v788, %v786
    %v907 = vpack.c.b16 %v791, %v789
    %v908 = vpack.c.b16 %v792, %v790
    %v909 = vpack.c.b16 %v795, %v793
    %v910 = vpack.c.b16 %v796, %v794
    %v911 = vpack.c.b16 %v799, %v797
    %v912 = vpack.c.b16 %v800, %v798
    %v913 = vpack.c.b16 %v803, %v801
    %v914 = vpack.c.b16 %v804, %v802
    %v915 = vpack.c.b16 %v807, %v805
    %v916 = vpack.c.b16 %v808, %v806
    %v917 = vpack.c.b16 %v811, %v809
    %v918 = vpack.c.b16 %v812, %v810
    %v919 = vpack.c.b16 %v815, %v813
    %v920 = vpack.c.b16 %v816, %v814
    %v921 = vpack.c.b16 %v819, %v817
    %v922 = vpack.c.b16 %v820, %v818
    %v923 = vpack.c.b16 %v823, %v821
    %v924 = vpack.c.b16 %v824, %v822
    %v925 = vpack.c.b16 %v827, %v825
    %v926 = vpack.c.b16 %v828, %v826
    %v927 = vpack.c.b16 %v831, %v829
    %v928 = vpack.c.b16 %v832, %v830
    %v929 = vpack.c.b16 %v835, %v833
    %v930 = vpack.c.b16 %v836, %v834
    %v931 = vpack.c.b16 %v839, %v837
    %v932 = vpack.c.b16 %v840, %v838
    %v933 = vpack.c.b16 %v843, %v841
    %v934 = vpack.c.b16 %v844, %v842
    %v935 = vpack.c.b16 %v847, %v845
    %v936 = vpack.c.b16 %v848, %v846
    %v937 = vpack.c.b16 %v851, %v849
    %v938 = vpack.c.b16 %v852, %v850
    %v939 = vpack.c.b16 %v855, %v853
    %v940 = vpack.c.b16 %v856, %v854
    %v941 = vpack.c.b16 %v859, %v857
    %v942 = vpack.c.b16 %v860, %v858
    %v943 = vpack.c.b16 %v863, %v861
    %v944 = vpack.c.b16 %v864, %v862
    %v945 = vpack.c.b16 %v867, %v865
    %v946 = vpack.c.b16 %v868, %v866
    %v947 = vpack.c.b16 %v871, %v869
    %v948 = vpack.c.b16 %v872, %v870
    %v949 = vpack.c.b16 %v875, %v873
    %v950 = vpack.c.b16 %v876, %v874
    %v951 = vpack.c.b16 %v879, %v877
    %v952 = vpack.c.b16 %v880, %v878
    %v953 = vpack.c.b16 %v883, %v881
    %v954 = vpack.c.b16 %v884, %v882
    %v955 = vpack.c.b16 %v887, %v885
    %v956 = vpack.c.b16 %v888, %v886
    %v957 = vpack.c.b16 %v891, %v889
    %v958 = vpack.c.b16 %v892, %v890
    %v959 = vpack.c.b16 %v895, %v893
    %v960 = vpack.c.b16 %v896, %v894
    %1025 = vmatprep.subr.bf16.mxu0 %v912
    %1026 = vmatpush1.bf16.msra.mxu0 %v911
    %1027 = vmatprep.subr.bf16.mxu0 %v910
    %1028 = vmatpush1.bf16.msra.mxu0 %v909
    %1029 = vmatprep.subr.bf16.mxu0 %v908
    %1030 = vmatpush1.bf16.msra.mxu0 %v907
    %1031 = vmatprep.subr.bf16.mxu0 %v906
    %1032 = vmatpush1.bf16.msra.mxu0 %v905
    %1033 = vmatprep.subr.bf16.mxu0 %v904
    %1034 = vmatpush1.bf16.msra.mxu0 %v903
    %1035 = vmatprep.subr.bf16.mxu0 %v902
    %1036 = vmatpush1.bf16.msra.mxu0 %v901
    %1037 = vmatprep.subr.bf16.mxu0 %v900
    %1038 = vmatpush1.bf16.msra.mxu0 %v899
    %1039 = vmatprep.subr.bf16.mxu0 %v898
    %1040 = vmatpush1.bf16.msra.mxu0 %v897
    %1041 = vmatprep.subr.bf16.mxu0 %v928
    %1042 = vmatpush2.bf16.msra.mxu0 %v927
    %1043 = vmatprep.subr.bf16.mxu0 %v926
    %1044 = vmatpush2.bf16.msra.mxu0 %v925
    %1045 = vmatprep.subr.bf16.mxu0 %v924
    %1046 = vmatpush2.bf16.msra.mxu0 %v923
    %1047 = vmatprep.subr.bf16.mxu0 %v922
    %1048 = vmatpush2.bf16.msra.mxu0 %v921
    %1049 = vmatprep.subr.bf16.mxu0 %v920
    %1050 = vmatpush2.bf16.msra.mxu0 %v919
    %1051 = vmatprep.subr.bf16.mxu0 %v918
    %1052 = vmatpush2.bf16.msra.mxu0 %v917
    %1053 = vmatprep.subr.bf16.mxu0 %v916
    %1054 = vmatpush2.bf16.msra.mxu0 %v915
    %1055 = vmatprep.subr.bf16.mxu0 %v914
    %1056 = vmatpush2.bf16.msra.mxu0 %v913
    %1057 = vmatprep.mubr.bf16.mxu0 %v670
    %1058 = vmatmul.mubr.bf16.gmra.mxu0 %v668
    %v1059 = vpop.f32.mrf.mxu0
    %v1060 = vadd.f32 %v587, %v1059
    %v1061 = vpop.f32.mrf.mxu0
    %v1062 = vadd.f32 %v591, %v1061
    %v1063 = vpop.f32.mrf.mxu0
    %v1064 = vadd.f32 %v587, %v1063
    %v1065 = vpop.f32.mrf.mxu0
    %v1066 = vadd.f32 %v591, %v1065
    %1067 = vmatprep.mubr.bf16.mxu0 %v694
    %1068 = vmatmul.mubr.bf16.gmra.mxu0 %v687
    %v1069 = vpop.f32.mrf.mxu0
    %v1070 = vadd.f32 %v587, %v1069
    %v1071 = vpop.f32.mrf.mxu0
    %v1072 = vadd.f32 %v591, %v1071
    %v1073 = vpop.f32.mrf.mxu0
    %v1074 = vpop.f32.mrf.mxu0
    %1075 = vdwg.mxu0
    %1076 = vmatprep.subr.bf16.mxu0 %v944
    %1077 = vmatpush1.bf16.msra.mxu0 %v943
    %1078 = vmatprep.subr.bf16.mxu0 %v942
    %1079 = vmatpush1.bf16.msra.mxu0 %v941
    %1080 = vmatprep.subr.bf16.mxu0 %v940
    %1081 = vmatpush1.bf16.msra.mxu0 %v939
    %1082 = vmatprep.subr.bf16.mxu0 %v938
    %1083 = vmatpush1.bf16.msra.mxu0 %v937
    %1084 = vmatprep.subr.bf16.mxu0 %v936
    %1085 = vmatpush1.bf16.msra.mxu0 %v935
    %1086 = vmatprep.subr.bf16.mxu0 %v934
    %1087 = vmatpush1.bf16.msra.mxu0 %v933
    %1088 = vmatprep.subr.bf16.mxu0 %v932
    %1089 = vmatpush1.bf16.msra.mxu0 %v931
    %1090 = vmatprep.subr.bf16.mxu0 %v930
    %1091 = vmatpush1.bf16.msra.mxu0 %v929
    %1092 = vmatprep.subr.bf16.mxu0 %v960
    %1093 = vmatpush2.bf16.msra.mxu0 %v959
    %1094 = vmatprep.subr.bf16.mxu0 %v958
    %1095 = vmatpush2.bf16.msra.mxu0 %v957
    %1096 = vmatprep.subr.bf16.mxu0 %v956
    %1097 = vmatpush2.bf16.msra.mxu0 %v955
    %1098 = vmatprep.subr.bf16.mxu0 %v954
    %1099 = vmatpush2.bf16.msra.mxu0 %v953
    %1100 = vmatprep.subr.bf16.mxu0 %v952
    %1101 = vmatpush2.bf16.msra.mxu0 %v951
    %1102 = vmatprep.subr.bf16.mxu0 %v950
    %1103 = vmatpush2.bf16.msra.mxu0 %v949
    %1104 = vmatprep.subr.bf16.mxu0 %v948
    %1105 = vmatpush2.bf16.msra.mxu0 %v947
    %1106 = vmatprep.subr.bf16.mxu0 %v946
    %1107 = vmatpush2.bf16.msra.mxu0 %v945
    %1108 = vmatprep.mubr.bf16.mxu0 %v671
    %1109 = vmatmul.mubr.bf16.gmra.mxu0 %v669
    %v1110 = vpop.f32.mrf.mxu0
    %v1111 = vadd.f32 %v1060, %v1110
    %v1112 = vpop.f32.mrf.mxu0
    %v1113 = vadd.f32 %v1062, %v1112
    %v1114 = vpop.f32.mrf.mxu0
    %v1115 = vadd.f32 %v1064, %v1114
    %v1116 = vpop.f32.mrf.mxu0
    %v1117 = vadd.f32 %v1066, %v1116
    %1118 = vmatprep.mubr.bf16.mxu0 %v696
    %1119 = vmatmul.mubr.bf16.gmra.mxu0 %v695
    %v1120 = vpop.f32.mrf.mxu0
    %v1121 = vadd.f32 %v1070, %v1120
    %v1122 = vpop.f32.mrf.mxu0
    %v1123 = vadd.f32 %v1072, %v1122
    %v1124 = vpop.f32.mrf.mxu0
    %v1125 = vpop.f32.mrf.mxu0
    %1126 = vdwg.mxu0
    %v1127 = vmax.f32 %v1111, %v1113
    %v1128 = vmax.f32 %v1115, %v1117
    %v1129 = vmax.f32 %v1121, %v1123
    %v1130 = vmax.f32 %v1127, 0.0
    %v1131 = vmax.f32 %v1128, 0.0
    %v1132 = vmax.f32 %v1129, 0.0
    %v1136 = vcombine.high %v1130, %v1130
    %v1138 = vunpack.c.l.s4 1966171168
    %v1139 = vunpack.c.0.s8 %v1138
    %v1140 = vlaneseq
    %v1141 = vshrl.u32 %v1140, 7
    %v1142 = vsub.s32 %v1139, %v1141
    %v1143 = vrot.slane %v1130, %v1142
    %v1145 = vunpack.c.l.s4 1966171168
    %v1146 = vunpack.c.0.s8 %v1145
    %v1147 = vlaneseq
    %v1148 = vshrl.u32 %v1147, 7
    %v1149 = vsub.s32 %v1146, %v1148
    %v1150 = vrot.slane %v1136, %v1149
    %v1151 = vcombine.high %v1143, %v1143
    %v1152 = vcombine.high %v1150, %v1150
    %v1154 = vunpack.c.l.s4 1966171168
    %v1155 = vunpack.c.0.s8 %v1154
    %v1156 = vlaneseq
    %v1157 = vshrl.u32 %v1156, 7
    %v1158 = vsub.s32 %v1155, %v1157
    %v1159 = vrot.slane %v1143, %v1158
    %v1161 = vunpack.c.l.s4 1966171168
    %v1162 = vunpack.c.0.s8 %v1161
    %v1163 = vlaneseq
    %v1164 = vshrl.u32 %v1163, 7
    %v1165 = vsub.s32 %v1162, %v1164
    %v1166 = vrot.slane %v1150, %v1165
    %v1168 = vunpack.c.l.s4 1966171168
    %v1169 = vunpack.c.0.s8 %v1168
    %v1170 = vlaneseq
    %v1171 = vshrl.u32 %v1170, 7
    %v1172 = vsub.s32 %v1169, %v1171
    %v1173 = vrot.slane %v1151, %v1172
    %v1175 = vunpack.c.l.s4 1966171168
    %v1176 = vunpack.c.0.s8 %v1175
    %v1177 = vlaneseq
    %v1178 = vshrl.u32 %v1177, 7
    %v1179 = vsub.s32 %v1176, %v1178
    %v1180 = vrot.slane %v1152, %v1179
    %v1181 = vcombine.high %v1159, %v1159
    %v1182 = vcombine.high %v1166, %v1166
    %v1183 = vcombine.high %v1173, %v1173
    %v1184 = vcombine.high %v1180, %v1180
    %v1185 = vcombine.high %v1131, %v1131
    %v1187 = vunpack.c.l.s4 1966171168
    %v1188 = vunpack.c.0.s8 %v1187
    %v1189 = vlaneseq
    %v1190 = vshrl.u32 %v1189, 7
    %v1191 = vsub.s32 %v1188, %v1190
    %v1192 = vrot.slane %v1131, %v1191
    %v1194 = vunpack.c.l.s4 1966171168
    %v1195 = vunpack.c.0.s8 %v1194
    %v1196 = vlaneseq
    %v1197 = vshrl.u32 %v1196, 7
    %v1198 = vsub.s32 %v1195, %v1197
    %v1199 = vrot.slane %v1185, %v1198
    %v1200 = vcombine.high %v1192, %v1192
    %v1201 = vcombine.high %v1199, %v1199
    %v1203 = vunpack.c.l.s4 1966171168
    %v1204 = vunpack.c.0.s8 %v1203
    %v1205 = vlaneseq
    %v1206 = vshrl.u32 %v1205, 7
    %v1207 = vsub.s32 %v1204, %v1206
    %v1208 = vrot.slane %v1192, %v1207
    %v1210 = vunpack.c.l.s4 1966171168
    %v1211 = vunpack.c.0.s8 %v1210
    %v1212 = vlaneseq
    %v1213 = vshrl.u32 %v1212, 7
    %v1214 = vsub.s32 %v1211, %v1213
    %v1215 = vrot.slane %v1199, %v1214
    %v1217 = vunpack.c.l.s4 1966171168
    %v1218 = vunpack.c.0.s8 %v1217
    %v1219 = vlaneseq
    %v1220 = vshrl.u32 %v1219, 7
    %v1221 = vsub.s32 %v1218, %v1220
    %v1222 = vrot.slane %v1200, %v1221
    %v1224 = vunpack.c.l.s4 1966171168
    %v1225 = vunpack.c.0.s8 %v1224
    %v1226 = vlaneseq
    %v1227 = vshrl.u32 %v1226, 7
    %v1228 = vsub.s32 %v1225, %v1227
    %v1229 = vrot.slane %v1201, %v1228
    %v1230 = vcombine.high %v1208, %v1208
    %v1231 = vcombine.high %v1215, %v1215
    %v1232 = vcombine.high %v1222, %v1222
    %v1233 = vcombine.high %v1229, %v1229
    %v1235 = vunpack.c.l.s4 1966171168
    %v1236 = vunpack.c.0.s8 %v1235
    %v1237 = vlaneseq
    %v1238 = vshrl.u32 %v1237, 7
    %v1239 = vsub.s32 %v1236, %v1238
    %v1240 = vrot.slane %v1132, %v1239
    %v1241 = vcombine.high %v1240, %v1240
    %v1243 = vunpack.c.l.s4 1966171168
    %v1244 = vunpack.c.0.s8 %v1243
    %v1245 = vlaneseq
    %v1246 = vshrl.u32 %v1245, 7
    %v1247 = vsub.s32 %v1244, %v1246
    %v1248 = vrot.slane %v1240, %v1247
    %v1250 = vunpack.c.l.s4 1966171168
    %v1251 = vunpack.c.0.s8 %v1250
    %v1252 = vlaneseq
    %v1253 = vshrl.u32 %v1252, 7
    %v1254 = vsub.s32 %v1251, %v1253
    %v1255 = vrot.slane %v1241, %v1254
    %v1256 = vcombine.high %v1248, %v1248
    %v1257 = vcombine.high %v1255, %v1255
    %v1258 = vcombine.low %v1159, %v1173
    %v1259 = vcombine.low %v1181, %v1183
    %v1261 = vunpack.c.l.s4 1966171168
    %v1262 = vunpack.c.0.s8 %v1261
    %v1263 = vlaneseq
    %v1264 = vshrl.u32 %v1263, 7
    %v1265 = vsub.s32 %v1262, %v1264
    %v1266 = vrot.slane %v1258, %v1265
    %v1268 = vunpack.c.l.s4 1966171168
    %v1269 = vunpack.c.0.s8 %v1268
    %v1270 = vlaneseq
    %v1271 = vshrl.u32 %v1270, 7
    %v1272 = vsub.s32 %v1269, %v1271
    %v1273 = vrot.slane %v1259, %v1272
    %v1275 = vunpack.c.l.s4 1966171168
    %v1276 = vunpack.c.0.s8 %v1275
    %v1277 = vlaneseq
    %v1278 = vshrl.u32 %v1277, 7
    %v1279 = vsub.s32 %v1276, %v1278
    %v1280 = vrot.slane %v1166, %v1279
    %v1281 = vcombine.low %v1266, %v1273
    %v1283 = vunpack.c.l.s4 1966171168
    %v1284 = vunpack.c.0.s8 %v1283
    %v1285 = vlaneseq
    %v1286 = vshrl.u32 %v1285, 7
    %v1287 = vsub.s32 %v1284, %v1286
    %v1288 = vrot.slane %v1281, %v1287
    %v1290 = vunpack.c.l.s4 1966171168
    %v1291 = vunpack.c.0.s8 %v1290
    %v1292 = vlaneseq
    %v1293 = vshrl.u32 %v1292, 7
    %v1294 = vsub.s32 %v1291, %v1293
    %v1295 = vrot.slane %v1280, %v1294
    %v1296 = vcombine.low %v1288, %v1295
    %v1297 = vcombine.low %v1180, %v1182
    %v1298 = vcombine.low %v1184, %v1208
    %v1300 = vunpack.c.l.s4 1966171168
    %v1301 = vunpack.c.0.s8 %v1300
    %v1302 = vlaneseq
    %v1303 = vshrl.u32 %v1302, 7
    %v1304 = vsub.s32 %v1301, %v1303
    %v1305 = vrot.slane %v1297, %v1304
    %v1307 = vunpack.c.l.s4 1966171168
    %v1308 = vunpack.c.0.s8 %v1307
    %v1309 = vlaneseq
    %v1310 = vshrl.u32 %v1309, 7
    %v1311 = vsub.s32 %v1308, %v1310
    %v1312 = vrot.slane %v1298, %v1311
    %v1314 = vunpack.c.l.s4 1966171168
    %v1315 = vunpack.c.0.s8 %v1314
    %v1316 = vlaneseq
    %v1317 = vshrl.u32 %v1316, 7
    %v1318 = vsub.s32 %v1315, %v1317
    %v1319 = vrot.slane %v1222, %v1318
    %v1320 = vcombine.low %v1305, %v1312
    %v1322 = vunpack.c.l.s4 1966171168
    %v1323 = vunpack.c.0.s8 %v1322
    %v1324 = vlaneseq
    %v1325 = vshrl.u32 %v1324, 7
    %v1326 = vsub.s32 %v1323, %v1325
    %v1327 = vrot.slane %v1320, %v1326
    %v1329 = vunpack.c.l.s4 1966171168
    %v1330 = vunpack.c.0.s8 %v1329
    %v1331 = vlaneseq
    %v1332 = vshrl.u32 %v1331, 7
    %v1333 = vsub.s32 %v1330, %v1332
    %v1334 = vrot.slane %v1319, %v1333
    %v1335 = vcombine.low %v1327, %v1334
    %v1338 = vcombine.low %v1230, %v1232
    %v1339 = vcombine.low %v1215, %v1229
    %v1341 = vunpack.c.l.s4 1966171168
    %v1342 = vunpack.c.0.s8 %v1341
    %v1343 = vlaneseq
    %v1344 = vshrl.u32 %v1343, 7
    %v1345 = vsub.s32 %v1342, %v1344
    %v1346 = vrot.slane %v1338, %v1345
    %v1348 = vunpack.c.l.s4 1966171168
    %v1349 = vunpack.c.0.s8 %v1348
    %v1350 = vlaneseq
    %v1351 = vshrl.u32 %v1350, 7
    %v1352 = vsub.s32 %v1349, %v1351
    %v1353 = vrot.slane %v1339, %v1352
    %v1355 = vunpack.c.l.s4 1966171168
    %v1356 = vunpack.c.0.s8 %v1355
    %v1357 = vlaneseq
    %v1358 = vshrl.u32 %v1357, 7
    %v1359 = vsub.s32 %v1356, %v1358
    %v1360 = vrot.slane %v1231, %v1359
    %v1361 = vcombine.low %v1346, %v1353
    %v1363 = vunpack.c.l.s4 1966171168
    %v1364 = vunpack.c.0.s8 %v1363
    %v1365 = vlaneseq
    %v1366 = vshrl.u32 %v1365, 7
    %v1367 = vsub.s32 %v1364, %v1366
    %v1368 = vrot.slane %v1361, %v1367
    %v1370 = vunpack.c.l.s4 1966171168
    %v1371 = vunpack.c.0.s8 %v1370
    %v1372 = vlaneseq
    %v1373 = vshrl.u32 %v1372, 7
    %v1374 = vsub.s32 %v1371, %v1373
    %v1375 = vrot.slane %v1360, %v1374
    %v1376 = vcombine.low %v1368, %v1375
    %v1377 = vcombine.low %v1233, %v1248
    %v1378 = vcombine.low %v1255, %v1256
    %v1380 = vunpack.c.l.s4 1966171168
    %v1381 = vunpack.c.0.s8 %v1380
    %v1382 = vlaneseq
    %v1383 = vshrl.u32 %v1382, 7
    %v1384 = vsub.s32 %v1381, %v1383
    %v1385 = vrot.slane %v1377, %v1384
    %v1387 = vunpack.c.l.s4 1966171168
    %v1388 = vunpack.c.0.s8 %v1387
    %v1389 = vlaneseq
    %v1390 = vshrl.u32 %v1389, 7
    %v1391 = vsub.s32 %v1388, %v1390
    %v1392 = vrot.slane %v1378, %v1391
    %v1394 = vunpack.c.l.s4 1966171168
    %v1395 = vunpack.c.0.s8 %v1394
    %v1396 = vlaneseq
    %v1397 = vshrl.u32 %v1396, 7
    %v1398 = vsub.s32 %v1395, %v1397
    %v1399 = vrot.slane %v1257, %v1398
    %v1400 = vcombine.low %v1385, %v1392
    %v1402 = vunpack.c.l.s4 1966171168
    %v1403 = vunpack.c.0.s8 %v1402
    %v1404 = vlaneseq
    %v1405 = vshrl.u32 %v1404, 7
    %v1406 = vsub.s32 %v1403, %v1405
    %v1407 = vrot.slane %v1400, %v1406
    %v1409 = vunpack.c.l.s4 1966171168
    %v1410 = vunpack.c.0.s8 %v1409
    %v1411 = vlaneseq
    %v1412 = vshrl.u32 %v1411, 7
    %v1413 = vsub.s32 %v1410, %v1412
    %v1414 = vrot.slane %v1399, %v1413
    %v1415 = vcombine.low %v1407, %v1414
    %v1418 = vpack.c.bf16 %v1296, %v1296
    %v1419 = vpack.c.bf16 %v1376, %v1376
    %v1420 = vpack.c.bf16 %v1335, %v1335
    %v1421 = vpack.c.bf16 %v1415, %v1415
    %v1426 = vrot.slane %v1418, 2
    %v1427 = vrot.slane %v1419, 2
    %v1428 = vrot.slane %v1420, 2
    %v1429 = vrot.slane %v1421, 2
    %v1434 = vrot.slane %v1418, 1
    %v1435 = vrot.slane %v1419, 1
    %v1436 = vrot.slane %v1420, 1
    %v1437 = vrot.slane %v1421, 1
    %v1442 = vrot.slane %v1418, 7
    %v1443 = vrot.slane %v1419, 7
    %v1444 = vrot.slane %v1420, 7
    %v1445 = vrot.slane %v1421, 7
    %v1450 = vrot.slane %v1418, 6
    %v1451 = vrot.slane %v1419, 6
    %v1452 = vrot.slane %v1420, 6
    %v1453 = vrot.slane %v1421, 6
    %vm1454 = vcmask 1040384
    %vm1455 = vsmask.f32 256
    %vm1456 = vmand %vm1454, %vm1455
    %v1457 = vsel %vm1456, %v1426, %v1434
    %v1458 = vsel %vm1456, %v1427, %v1435
    %v1459 = vsel %vm1456, %v1428, %v1436
    %v1460 = vsel %vm1456, %v1429, %v1437
    %vm1461 = vcmask 1040384
    %v1464 = vsel %vm1461, %v1457, %v1418
    %v1468 = vsel %vm1461, %v1458, %v1419
    %v1472 = vsel %vm1461, %v1459, %v1420
    %v1476 = vsel %vm1461, %v1460, %v1421
    %vm1478 = vcmask 1041408
    %vm1479 = vsmask.f32 1280
    %vm1480 = vmand %vm1478, %vm1479
    %v1481 = vsel %vm1480, %v1464, %v1442
    %v1482 = vsel %vm1480, %v1468, %v1443
    %v1483 = vsel %vm1480, %v1472, %v1444
    %v1484 = vsel %vm1480, %v1476, %v1445
    %v1487 = vsel %vm246, %v1481, %v1450
    %v1490 = vsel %vm246, %v1482, %v1451
    %v1493 = vsel %vm246, %v1483, %v1452
    %v1496 = vsel %vm246, %v1484, %v1453
    %v1501 = vcombine.low %v1418, %v1419
    %v1502 = vcombine.low %v1487, %v1490
    %v1504 = vunpack.c.l.s4 1966171168
    %v1505 = vunpack.c.0.s8 %v1504
    %v1506 = vlaneseq
    %v1507 = vshrl.u32 %v1506, 7
    %v1508 = vsub.s32 %v1505, %v1507
    %v1509 = vrot.slane %v1501, %v1508
    %v1511 = vunpack.c.l.s4 1966171168
    %v1512 = vunpack.c.0.s8 %v1511
    %v1513 = vlaneseq
    %v1514 = vshrl.u32 %v1513, 7
    %v1515 = vsub.s32 %v1512, %v1514
    %v1516 = vrot.slane %v1502, %v1515
    %v1517 = vcombine.low %v1509, %v1516
    %v1518 = vcombine.high %v1509, %v1516
    %v1520 = vunpack.c.l.s4 1966171168
    %v1521 = vunpack.c.0.s8 %v1520
    %v1522 = vlaneseq
    %v1523 = vshrl.u32 %v1522, 7
    %v1524 = vsub.s32 %v1521, %v1523
    %v1525 = vrot.slane %v1517, %v1524
    %v1527 = vunpack.c.l.s4 1966171168
    %v1528 = vunpack.c.0.s8 %v1527
    %v1529 = vlaneseq
    %v1530 = vshrl.u32 %v1529, 7
    %v1531 = vsub.s32 %v1528, %v1530
    %v1532 = vrot.slane %v1518, %v1531
    %v1533 = vcombine.high %v1525, %v1525
    %v1534 = vcombine.low %v1420, %v1421
    %v1535 = vcombine.low %v1493, %v1496
    %v1537 = vunpack.c.l.s4 1966171168
    %v1538 = vunpack.c.0.s8 %v1537
    %v1539 = vlaneseq
    %v1540 = vshrl.u32 %v1539, 7
    %v1541 = vsub.s32 %v1538, %v1540
    %v1542 = vrot.slane %v1534, %v1541
    %v1544 = vunpack.c.l.s4 1966171168
    %v1545 = vunpack.c.0.s8 %v1544
    %v1546 = vlaneseq
    %v1547 = vshrl.u32 %v1546, 7
    %v1548 = vsub.s32 %v1545, %v1547
    %v1549 = vrot.slane %v1535, %v1548
    %v1550 = vcombine.low %v1542, %v1549
    %v1551 = vcombine.high %v1542, %v1549
    %v1553 = vunpack.c.l.s4 1966171168
    %v1554 = vunpack.c.0.s8 %v1553
    %v1555 = vlaneseq
    %v1556 = vshrl.u32 %v1555, 7
    %v1557 = vsub.s32 %v1554, %v1556
    %v1558 = vrot.slane %v1550, %v1557
    %v1560 = vunpack.c.l.s4 1966171168
    %v1561 = vunpack.c.0.s8 %v1560
    %v1562 = vlaneseq
    %v1563 = vshrl.u32 %v1562, 7
    %v1564 = vsub.s32 %v1561, %v1563
    %v1565 = vrot.slane %v1551, %v1564
    %v1566 = vcombine.high %v1558, %v1558
    %v1567 = vunpack.i.l.s16 %v1525
    %v1568 = vunpack.i.h.s16 %v1525
    %v1569 = vunpack.i.l.s16 %v1532
    %v1570 = vunpack.i.h.s16 %v1532
    %v1571 = vunpack.i.l.s16 %v1533
    %v1572 = vunpack.i.l.s16 %v1558
    %v1573 = vunpack.i.h.s16 %v1558
    %v1574 = vunpack.i.l.s16 %v1565
    %v1575 = vunpack.i.h.s16 %v1565
    %v1576 = vunpack.i.l.s16 %v1566
    %v1577 = vld [vmem:[#allocation3] sm:$0xff]
    %v1578 = vld [vmem:[#allocation3 + $0x8] sm:$0xff]
    %v1579 = vld [vmem:[#allocation3 + $0x10] sm:$0xff]
    %v1580 = vld [vmem:[#allocation3 + $0x18] sm:$0xff]
    %v1581 = vld [vmem:[#allocation3 + $0x20] sm:$0xff]
    %v1582 = vld [vmem:[#allocation3 + $0x28] sm:$0xff]
    %v1583 = vld [vmem:[#allocation3 + $0x30] sm:$0xff]
    %v1584 = vld [vmem:[#allocation3 + $0x38] sm:$0xff]
    %v1585 = vld [vmem:[#allocation3 + $0x40] sm:$0xff]
    %v1586 = vld [vmem:[#allocation3 + $0x48] sm:$0xff]
    %v1587 = vld [vmem:[#allocation3 + $0x50] sm:$0xff]
    %v1588 = vld [vmem:[#allocation3 + $0x58] sm:$0xff]
    %v1589 = vld [vmem:[#allocation3 + $0x60] sm:$0xff]
    %v1590 = vld [vmem:[#allocation3 + $0x68] sm:$0xff]
    %v1591 = vld [vmem:[#allocation3 + $0x70] sm:$0xff]
    %v1592 = vld [vmem:[#allocation3 + $0x78] sm:$0xff]
    %v1593 = vld [vmem:[#allocation3 + $0x80] sm:$0xff]
    %v1594 = vld [vmem:[#allocation3 + $0x88] sm:$0xff]
    %v1595 = vld [vmem:[#allocation3 + $0x90] sm:$0xff]
    %v1596 = vld [vmem:[#allocation3 + $0x98] sm:$0xff]
    %v1597 = vld [vmem:[#allocation3 + $0xa0] sm:$0xff]
    %v1598 = vld [vmem:[#allocation3 + $0xa8] sm:$0xff]
    %v1599 = vld [vmem:[#allocation3 + $0xb0] sm:$0xff]
    %v1600 = vld [vmem:[#allocation3 + $0xb8] sm:$0xff]
    %v1601 = vld [vmem:[#allocation3 + $0xc0] sm:$0xff]
    %v1602 = vld [vmem:[#allocation3 + $0xc8] sm:$0xff]
    %v1603 = vld [vmem:[#allocation3 + $0xd0] sm:$0xff]
    %v1604 = vld [vmem:[#allocation3 + $0xd8] sm:$0xff]
    %v1605 = vld [vmem:[#allocation3 + $0xe0] sm:$0xff]
    %v1606 = vld [vmem:[#allocation3 + $0xe8] sm:$0xff]
    %v1607 = vld [vmem:[#allocation3 + $0xf0] sm:$0xff]
    %v1608 = vld [vmem:[#allocation3 + $0xf8] sm:$0xff]
    %v1609 = vld [vmem:[#allocation3 + $0x100] sm:$0xff]
    %v1610 = vld [vmem:[#allocation3 + $0x108] sm:$0xff]
    %v1611 = vld [vmem:[#allocation3 + $0x110] sm:$0xff]
    %v1612 = vld [vmem:[#allocation3 + $0x118] sm:$0xff]
    %v1613 = vld [vmem:[#allocation3 + $0x120] sm:$0xff]
    %v1614 = vld [vmem:[#allocation3 + $0x128] sm:$0xff]
    %v1615 = vld [vmem:[#allocation3 + $0x130] sm:$0xff]
    %v1616 = vld [vmem:[#allocation3 + $0x138] sm:$0xff]
    %v1617 = vld [vmem:[#allocation3 + $0x140] sm:$0xff]
    %v1618 = vld [vmem:[#allocation3 + $0x148] sm:$0xff]
    %v1619 = vld [vmem:[#allocation3 + $0x150] sm:$0xff]
    %v1620 = vld [vmem:[#allocation3 + $0x158] sm:$0xff]
    %v1621 = vld [vmem:[#allocation3 + $0x160] sm:$0xff]
    %v1622 = vld [vmem:[#allocation3 + $0x168] sm:$0xff]
    %v1623 = vld [vmem:[#allocation3 + $0x170] sm:$0xff]
    %v1624 = vld [vmem:[#allocation3 + $0x178] sm:$0xff]
    %v1625 = vld [vmem:[#allocation3 + $0x180] sm:$0xff]
    %v1626 = vld [vmem:[#allocation3 + $0x188] sm:$0xff]
    %v1627 = vld [vmem:[#allocation3 + $0x190] sm:$0xff]
    %v1628 = vld [vmem:[#allocation3 + $0x198] sm:$0xff]
    %v1629 = vld [vmem:[#allocation3 + $0x1a0] sm:$0xff]
    %v1630 = vld [vmem:[#allocation3 + $0x1a8] sm:$0xff]
    %v1631 = vld [vmem:[#allocation3 + $0x1b0] sm:$0xff]
    %v1632 = vld [vmem:[#allocation3 + $0x1b8] sm:$0xff]
    %v1633 = vld [vmem:[#allocation3 + $0x1c0] sm:$0xff]
    %v1634 = vld [vmem:[#allocation3 + $0x1c8] sm:$0xff]
    %v1635 = vld [vmem:[#allocation3 + $0x1d0] sm:$0xff]
    %v1636 = vld [vmem:[#allocation3 + $0x1d8] sm:$0xff]
    %v1637 = vld [vmem:[#allocation3 + $0x1e0] sm:$0xff]
    %v1638 = vld [vmem:[#allocation3 + $0x1e8] sm:$0xff]
    %v1639 = vld [vmem:[#allocation3 + $0x1f0] sm:$0xff]
    %v1640 = vld [vmem:[#allocation3 + $0x1f8] sm:$0xff]
    %v1641 = vld [vmem:[#allocation3 + $0x200] sm:$0xff]
    %v1642 = vld [vmem:[#allocation3 + $0x208] sm:$0xff]
    %v1643 = vld [vmem:[#allocation3 + $0x210] sm:$0xff]
    %v1644 = vld [vmem:[#allocation3 + $0x218] sm:$0xff]
    %v1645 = vld [vmem:[#allocation3 + $0x220] sm:$0xff]
    %v1646 = vld [vmem:[#allocation3 + $0x228] sm:$0xff]
    %v1647 = vld [vmem:[#allocation3 + $0x230] sm:$0xff]
    %v1648 = vld [vmem:[#allocation3 + $0x238] sm:$0xff]
    %v1649 = vld [vmem:[#allocation3 + $0x240] sm:$0xff]
    %v1650 = vld [vmem:[#allocation3 + $0x248] sm:$0xff]
    %v1651 = vld [vmem:[#allocation3 + $0x250] sm:$0xff]
    %v1652 = vld [vmem:[#allocation3 + $0x258] sm:$0xff]
    %v1653 = vld [vmem:[#allocation3 + $0x260] sm:$0xff]
    %v1654 = vld [vmem:[#allocation3 + $0x268] sm:$0xff]
    %v1655 = vld [vmem:[#allocation3 + $0x270] sm:$0xff]
    %v1656 = vld [vmem:[#allocation3 + $0x278] sm:$0xff]
    %v1657 = vld [vmem:[#allocation3 + $0x280] sm:$0xff]
    %v1658 = vld [vmem:[#allocation3 + $0x288] sm:$0xff]
    %v1659 = vld [vmem:[#allocation3 + $0x290] sm:$0xff]
    %v1660 = vld [vmem:[#allocation3 + $0x298] sm:$0xff]
    %v1661 = vld [vmem:[#allocation3 + $0x2a0] sm:$0xff]
    %v1662 = vld [vmem:[#allocation3 + $0x2a8] sm:$0xff]
    %v1663 = vld [vmem:[#allocation3 + $0x2b0] sm:$0xff]
    %v1664 = vld [vmem:[#allocation3 + $0x2b8] sm:$0xff]
    %v1665 = vld [vmem:[#allocation3 + $0x2c0] sm:$0xff]
    %v1666 = vld [vmem:[#allocation3 + $0x2c8] sm:$0xff]
    %v1667 = vld [vmem:[#allocation3 + $0x2d0] sm:$0xff]
    %v1668 = vld [vmem:[#allocation3 + $0x2d8] sm:$0xff]
    %v1669 = vld [vmem:[#allocation3 + $0x2e0] sm:$0xff]
    %v1670 = vld [vmem:[#allocation3 + $0x2e8] sm:$0xff]
    %v1671 = vld [vmem:[#allocation3 + $0x2f0] sm:$0xff]
    %v1672 = vld [vmem:[#allocation3 + $0x2f8] sm:$0xff]
    %v1673 = vld [vmem:[#allocation3 + $0x300] sm:$0xff]
    %v1674 = vld [vmem:[#allocation3 + $0x308] sm:$0xff]
    %v1675 = vld [vmem:[#allocation3 + $0x310] sm:$0xff]
    %v1676 = vld [vmem:[#allocation3 + $0x318] sm:$0xff]
    %v1677 = vld [vmem:[#allocation3 + $0x320] sm:$0xff]
    %v1678 = vld [vmem:[#allocation3 + $0x328] sm:$0xff]
    %v1679 = vld [vmem:[#allocation3 + $0x330] sm:$0xff]
    %v1680 = vld [vmem:[#allocation3 + $0x338] sm:$0xff]
    %v1681 = vld [vmem:[#allocation3 + $0x340] sm:$0xff]
    %v1682 = vld [vmem:[#allocation3 + $0x348] sm:$0xff]
    %v1683 = vld [vmem:[#allocation3 + $0x350] sm:$0xff]
    %v1684 = vld [vmem:[#allocation3 + $0x358] sm:$0xff]
    %v1685 = vld [vmem:[#allocation3 + $0x360] sm:$0xff]
    %v1686 = vld [vmem:[#allocation3 + $0x368] sm:$0xff]
    %v1687 = vld [vmem:[#allocation3 + $0x370] sm:$0xff]
    %v1688 = vld [vmem:[#allocation3 + $0x378] sm:$0xff]
    %v1689 = vld [vmem:[#allocation3 + $0x380] sm:$0xff]
    %v1690 = vld [vmem:[#allocation3 + $0x388] sm:$0xff]
    %v1691 = vld [vmem:[#allocation3 + $0x390] sm:$0xff]
    %v1692 = vld [vmem:[#allocation3 + $0x398] sm:$0xff]
    %v1693 = vld [vmem:[#allocation3 + $0x3a0] sm:$0xff]
    %v1694 = vld [vmem:[#allocation3 + $0x3a8] sm:$0xff]
    %v1695 = vld [vmem:[#allocation3 + $0x3b0] sm:$0xff]
    %v1696 = vld [vmem:[#allocation3 + $0x3b8] sm:$0xff]
    %v1697 = vld [vmem:[#allocation3 + $0x3c0] sm:$0xff]
    %v1698 = vld [vmem:[#allocation3 + $0x3c8] sm:$0xff]
    %v1699 = vld [vmem:[#allocation3 + $0x3d0] sm:$0xff]
    %v1700 = vld [vmem:[#allocation3 + $0x3d8] sm:$0xff]
    %v1701 = vld [vmem:[#allocation3 + $0x3e0] sm:$0xff]
    %v1702 = vld [vmem:[#allocation3 + $0x3e8] sm:$0xff]
    %v1703 = vld [vmem:[#allocation3 + $0x3f0] sm:$0xff]
    %v1704 = vld [vmem:[#allocation3 + $0x3f8] sm:$0xff]
    %v1705 = vld [vmem:[#allocation3 + $0x400] sm:$0xff]
    %v1706 = vld [vmem:[#allocation3 + $0x408] sm:$0xff]
    %v1707 = vld [vmem:[#allocation3 + $0x410] sm:$0xff]
    %v1708 = vld [vmem:[#allocation3 + $0x418] sm:$0xff]
    %v1709 = vld [vmem:[#allocation3 + $0x420] sm:$0xff]
    %v1710 = vld [vmem:[#allocation3 + $0x428] sm:$0xff]
    %v1711 = vld [vmem:[#allocation3 + $0x430] sm:$0xff]
    %v1712 = vld [vmem:[#allocation3 + $0x438] sm:$0xff]
    %v1713 = vld [vmem:[#allocation3 + $0x440] sm:$0xff]
    %v1714 = vld [vmem:[#allocation3 + $0x448] sm:$0xff]
    %v1715 = vld [vmem:[#allocation3 + $0x450] sm:$0xff]
    %v1716 = vld [vmem:[#allocation3 + $0x458] sm:$0xff]
    %v1717 = vld [vmem:[#allocation3 + $0x460] sm:$0xff]
    %v1718 = vld [vmem:[#allocation3 + $0x468] sm:$0xff]
    %v1719 = vld [vmem:[#allocation3 + $0x470] sm:$0xff]
    %v1720 = vld [vmem:[#allocation3 + $0x478] sm:$0xff]
    %v1721 = vld [vmem:[#allocation3 + $0x480] sm:$0xff]
    %v1722 = vld [vmem:[#allocation3 + $0x488] sm:$0xff]
    %v1723 = vld [vmem:[#allocation3 + $0x490] sm:$0xff]
    %v1724 = vld [vmem:[#allocation3 + $0x498] sm:$0xff]
    %v1725 = vld [vmem:[#allocation3 + $0x4a0] sm:$0xff]
    %v1726 = vld [vmem:[#allocation3 + $0x4a8] sm:$0xff]
    %v1727 = vld [vmem:[#allocation3 + $0x4b0] sm:$0xff]
    %v1728 = vld [vmem:[#allocation3 + $0x4b8] sm:$0xff]
    %v1729 = vld [vmem:[#allocation3 + $0x4c0] sm:$0xff]
    %v1730 = vld [vmem:[#allocation3 + $0x4c8] sm:$0xff]
    %v1731 = vld [vmem:[#allocation3 + $0x4d0] sm:$0xff]
    %v1732 = vld [vmem:[#allocation3 + $0x4d8] sm:$0xff]
    %v1733 = vld [vmem:[#allocation3 + $0x4e0] sm:$0xff]
    %v1734 = vld [vmem:[#allocation3 + $0x4e8] sm:$0xff]
    %v1735 = vld [vmem:[#allocation3 + $0x4f0] sm:$0xff]
    %v1736 = vld [vmem:[#allocation3 + $0x4f8] sm:$0xff]
    %v1737 = vld [vmem:[#allocation3 + $0x500] sm:$0xff]
    %v1738 = vld [vmem:[#allocation3 + $0x508] sm:$0xff]
    %v1739 = vld [vmem:[#allocation3 + $0x510] sm:$0xff]
    %v1740 = vld [vmem:[#allocation3 + $0x518] sm:$0xff]
    %v1741 = vld [vmem:[#allocation3 + $0x520] sm:$0xff]
    %v1742 = vld [vmem:[#allocation3 + $0x528] sm:$0xff]
    %v1743 = vld [vmem:[#allocation3 + $0x530] sm:$0xff]
    %v1744 = vld [vmem:[#allocation3 + $0x538] sm:$0xff]
    %v1745 = vld [vmem:[#allocation3 + $0x540] sm:$0xff]
    %v1746 = vld [vmem:[#allocation3 + $0x548] sm:$0xff]
    %v1747 = vld [vmem:[#allocation3 + $0x550] sm:$0xff]
    %v1748 = vld [vmem:[#allocation3 + $0x558] sm:$0xff]
    %v1749 = vld [vmem:[#allocation3 + $0x560] sm:$0xff]
    %v1750 = vld [vmem:[#allocation3 + $0x568] sm:$0xff]
    %v1751 = vld [vmem:[#allocation3 + $0x570] sm:$0xff]
    %v1752 = vld [vmem:[#allocation3 + $0x578] sm:$0xff]
    %v1753 = vld [vmem:[#allocation3 + $0x580] sm:$0xff]
    %v1754 = vld [vmem:[#allocation3 + $0x588] sm:$0xff]
    %v1755 = vld [vmem:[#allocation3 + $0x590] sm:$0xff]
    %v1756 = vld [vmem:[#allocation3 + $0x598] sm:$0xff]
    %v1757 = vld [vmem:[#allocation3 + $0x5a0] sm:$0xff]
    %v1758 = vld [vmem:[#allocation3 + $0x5a8] sm:$0xff]
    %v1759 = vld [vmem:[#allocation3 + $0x5b0] sm:$0xff]
    %v1760 = vld [vmem:[#allocation3 + $0x5b8] sm:$0xff]
    %v1761 = vld [vmem:[#allocation3 + $0x5c0] sm:$0xff]
    %v1762 = vld [vmem:[#allocation3 + $0x5c8] sm:$0xff]
    %v1763 = vld [vmem:[#allocation3 + $0x5d0] sm:$0xff]
    %v1764 = vld [vmem:[#allocation3 + $0x5d8] sm:$0xff]
    %v1765 = vld [vmem:[#allocation3 + $0x5e0] sm:$0xff]
    %v1766 = vld [vmem:[#allocation3 + $0x5e8] sm:$0xff]
    %v1767 = vld [vmem:[#allocation3 + $0x5f0] sm:$0xff]
    %v1768 = vld [vmem:[#allocation3 + $0x5f8] sm:$0xff]
    %v1769 = vld [vmem:[#allocation3 + $0x600] sm:$0xff]
    %v1770 = vld [vmem:[#allocation3 + $0x608] sm:$0xff]
    %v1771 = vld [vmem:[#allocation3 + $0x610] sm:$0xff]
    %v1772 = vld [vmem:[#allocation3 + $0x618] sm:$0xff]
    %v1773 = vld [vmem:[#allocation3 + $0x620] sm:$0xff]
    %v1774 = vld [vmem:[#allocation3 + $0x628] sm:$0xff]
    %v1775 = vld [vmem:[#allocation3 + $0x630] sm:$0xff]
    %v1776 = vld [vmem:[#allocation3 + $0x638] sm:$0xff]
    %v1777 = vld [vmem:[#allocation3 + $0x640] sm:$0xff]
    %v1778 = vld [vmem:[#allocation3 + $0x648] sm:$0xff]
    %v1779 = vld [vmem:[#allocation3 + $0x650] sm:$0xff]
    %v1780 = vld [vmem:[#allocation3 + $0x658] sm:$0xff]
    %v1781 = vld [vmem:[#allocation3 + $0x660] sm:$0xff]
    %v1782 = vld [vmem:[#allocation3 + $0x668] sm:$0xff]
    %v1783 = vld [vmem:[#allocation3 + $0x670] sm:$0xff]
    %v1784 = vld [vmem:[#allocation3 + $0x678] sm:$0xff]
    %v1785 = vld [vmem:[#allocation3 + $0x680] sm:$0xff]
    %v1786 = vld [vmem:[#allocation3 + $0x688] sm:$0xff]
    %v1787 = vld [vmem:[#allocation3 + $0x690] sm:$0xff]
    %v1788 = vld [vmem:[#allocation3 + $0x698] sm:$0xff]
    %v1789 = vld [vmem:[#allocation3 + $0x6a0] sm:$0xff]
    %v1790 = vld [vmem:[#allocation3 + $0x6a8] sm:$0xff]
    %v1791 = vld [vmem:[#allocation3 + $0x6b0] sm:$0xff]
    %v1792 = vld [vmem:[#allocation3 + $0x6b8] sm:$0xff]
    %v1793 = vld [vmem:[#allocation3 + $0x6c0] sm:$0xff]
    %v1794 = vld [vmem:[#allocation3 + $0x6c8] sm:$0xff]
    %v1795 = vld [vmem:[#allocation3 + $0x6d0] sm:$0xff]
    %v1796 = vld [vmem:[#allocation3 + $0x6d8] sm:$0xff]
    %v1797 = vld [vmem:[#allocation3 + $0x6e0] sm:$0xff]
    %v1798 = vld [vmem:[#allocation3 + $0x6e8] sm:$0xff]
    %v1799 = vld [vmem:[#allocation3 + $0x6f0] sm:$0xff]
    %v1800 = vld [vmem:[#allocation3 + $0x6f8] sm:$0xff]
    %v1801 = vld [vmem:[#allocation3 + $0x700] sm:$0xff]
    %v1802 = vld [vmem:[#allocation3 + $0x708] sm:$0xff]
    %v1803 = vld [vmem:[#allocation3 + $0x710] sm:$0xff]
    %v1804 = vld [vmem:[#allocation3 + $0x718] sm:$0xff]
    %v1805 = vld [vmem:[#allocation3 + $0x720] sm:$0xff]
    %v1806 = vld [vmem:[#allocation3 + $0x728] sm:$0xff]
    %v1807 = vld [vmem:[#allocation3 + $0x730] sm:$0xff]
    %v1808 = vld [vmem:[#allocation3 + $0x738] sm:$0xff]
    %v1809 = vld [vmem:[#allocation3 + $0x740] sm:$0xff]
    %v1810 = vld [vmem:[#allocation3 + $0x748] sm:$0xff]
    %v1811 = vld [vmem:[#allocation3 + $0x750] sm:$0xff]
    %v1812 = vld [vmem:[#allocation3 + $0x758] sm:$0xff]
    %v1813 = vld [vmem:[#allocation3 + $0x760] sm:$0xff]
    %v1814 = vld [vmem:[#allocation3 + $0x768] sm:$0xff]
    %v1815 = vld [vmem:[#allocation3 + $0x770] sm:$0xff]
    %v1816 = vld [vmem:[#allocation3 + $0x778] sm:$0xff]
    %v1817 = vld [vmem:[#allocation3 + $0x780] sm:$0xff]
    %v1818 = vld [vmem:[#allocation3 + $0x788] sm:$0xff]
    %v1819 = vld [vmem:[#allocation3 + $0x790] sm:$0xff]
    %v1820 = vld [vmem:[#allocation3 + $0x798] sm:$0xff]
    %v1821 = vld [vmem:[#allocation3 + $0x7a0] sm:$0xff]
    %v1822 = vld [vmem:[#allocation3 + $0x7a8] sm:$0xff]
    %v1823 = vld [vmem:[#allocation3 + $0x7b0] sm:$0xff]
    %v1824 = vld [vmem:[#allocation3 + $0x7b8] sm:$0xff]
    %v1825 = vld [vmem:[#allocation3 + $0x7c0] sm:$0xff]
    %v1826 = vld [vmem:[#allocation3 + $0x7c8] sm:$0xff]
    %v1827 = vld [vmem:[#allocation3 + $0x7d0] sm:$0xff]
    %v1828 = vld [vmem:[#allocation3 + $0x7d8] sm:$0xff]
    %v1829 = vld [vmem:[#allocation3 + $0x7e0] sm:$0xff]
    %v1830 = vld [vmem:[#allocation3 + $0x7e8] sm:$0xff]
    %v1831 = vld [vmem:[#allocation3 + $0x7f0] sm:$0xff]
    %v1832 = vld [vmem:[#allocation3 + $0x7f8] sm:$0xff]
    %v1833 = vld [vmem:[%s6] sm:$0xff]
    %v1835 = vlaneseq
    %v1836 = vshrl.u32 %v1835, 7
    %v1837 = vsub.s32 0, %v1836
    %v1838 = vrot.slane %v1833, %v1837
    %v1839 = vlaneseq
    %v1840 = vshrl.u32 %v1839, 7
    %v1841 = vsub.s32 1, %v1840
    %v1842 = vrot.slane %v1833, %v1841
    %v1843 = vlaneseq
    %v1844 = vshrl.u32 %v1843, 7
    %v1845 = vsub.s32 2, %v1844
    %v1846 = vrot.slane %v1833, %v1845
    %v1847 = vlaneseq
    %v1848 = vshrl.u32 %v1847, 7
    %v1849 = vsub.s32 3, %v1848
    %v1850 = vrot.slane %v1833, %v1849
    %v1851 = vlaneseq
    %v1852 = vshrl.u32 %v1851, 7
    %v1853 = vsub.s32 4, %v1852
    %v1854 = vrot.slane %v1833, %v1853
    %v1855 = vlaneseq
    %v1856 = vshrl.u32 %v1855, 7
    %v1857 = vsub.s32 5, %v1856
    %v1858 = vrot.slane %v1833, %v1857
    %v1859 = vlaneseq
    %v1860 = vshrl.u32 %v1859, 7
    %v1861 = vsub.s32 6, %v1860
    %v1862 = vrot.slane %v1833, %v1861
    %v1863 = vlaneseq
    %v1864 = vshrl.u32 %v1863, 7
    %v1865 = vsub.s32 7, %v1864
    %v1866 = vrot.slane %v1833, %v1865
    %v1875 = vpack.i.b16 %v1568, %v1567
    %v1876 = vpack.i.b16 %v1570, %v1569
    %v1877 = vpack.i.b16 %v1572, %v1571
    %v1878 = vpack.i.b16 %v1574, %v1573
    %v1879 = vpack.i.b16 %v1576, %v1575
    %v1880 = vcombine.low %v1875, %v1876
    %v1881 = vcombine.low %v1877, %v1878
    %v1883 = vunpack.c.l.s4 1966171168
    %v1884 = vunpack.c.0.s8 %v1883
    %v1885 = vlaneseq
    %v1886 = vshrl.u32 %v1885, 7
    %v1887 = vsub.s32 %v1884, %v1886
    %v1888 = vrot.slane %v1880, %v1887
    %v1890 = vunpack.c.l.s4 1966171168
    %v1891 = vunpack.c.0.s8 %v1890
    %v1892 = vlaneseq
    %v1893 = vshrl.u32 %v1892, 7
    %v1894 = vsub.s32 %v1891, %v1893
    %v1895 = vrot.slane %v1881, %v1894
    %v1897 = vunpack.c.l.s4 1966171168
    %v1898 = vunpack.c.0.s8 %v1897
    %v1899 = vlaneseq
    %v1900 = vshrl.u32 %v1899, 7
    %v1901 = vsub.s32 %v1898, %v1900
    %v1902 = vrot.slane %v1879, %v1901
    %v1903 = vcombine.low %v1888, %v1895
    %v1904 = vcombine.high %v1888, %v1895
    %v1905 = vcombine.high %v1902, %v1902
    %v1907 = vunpack.c.l.s4 1966171168
    %v1908 = vunpack.c.0.s8 %v1907
    %v1909 = vlaneseq
    %v1910 = vshrl.u32 %v1909, 7
    %v1911 = vsub.s32 %v1908, %v1910
    %v1912 = vrot.slane %v1903, %v1911
    %v1914 = vunpack.c.l.s4 1966171168
    %v1915 = vunpack.c.0.s8 %v1914
    %v1916 = vlaneseq
    %v1917 = vshrl.u32 %v1916, 7
    %v1918 = vsub.s32 %v1915, %v1917
    %v1919 = vrot.slane %v1904, %v1918
    %v1921 = vunpack.c.l.s4 1966171168
    %v1922 = vunpack.c.0.s8 %v1921
    %v1923 = vlaneseq
    %v1924 = vshrl.u32 %v1923, 7
    %v1925 = vsub.s32 %v1922, %v1924
    %v1926 = vrot.slane %v1902, %v1925
    %v1928 = vunpack.c.l.s4 1966171168
    %v1929 = vunpack.c.0.s8 %v1928
    %v1930 = vlaneseq
    %v1931 = vshrl.u32 %v1930, 7
    %v1932 = vsub.s32 %v1929, %v1931
    %v1933 = vrot.slane %v1905, %v1932
    %v1934 = vcombine.low %v1912, %v1926
    %v1935 = vcombine.high %v1912, %v1926
    %v1936 = vcombine.low %v1919, %v1933
    %v1937 = vcombine.high %v1919, %v1933
    %v2198 = vunpack.c.l.b16 %v1577
    %v2199 = vunpack.c.h.b16 %v1577
    %v2200 = vunpack.c.l.b16 %v1578
    %v2201 = vunpack.c.h.b16 %v1578
    %v2202 = vunpack.c.l.b16 %v1579
    %v2203 = vunpack.c.h.b16 %v1579
    %v2204 = vunpack.c.l.b16 %v1580
    %v2205 = vunpack.c.h.b16 %v1580
    %v2206 = vunpack.c.l.b16 %v1581
    %v2207 = vunpack.c.h.b16 %v1581
    %v2208 = vunpack.c.l.b16 %v1582
    %v2209 = vunpack.c.h.b16 %v1582
    %v2210 = vunpack.c.l.b16 %v1583
    %v2211 = vunpack.c.h.b16 %v1583
    %v2212 = vunpack.c.l.b16 %v1584
    %v2213 = vunpack.c.h.b16 %v1584
    %v2214 = vunpack.c.l.b16 %v1585
    %v2215 = vunpack.c.h.b16 %v1585
    %v2216 = vunpack.c.l.b16 %v1586
    %v2217 = vunpack.c.h.b16 %v1586
    %v2218 = vunpack.c.l.b16 %v1587
    %v2219 = vunpack.c.h.b16 %v1587
    %v2220 = vunpack.c.l.b16 %v1588
    %v2221 = vunpack.c.h.b16 %v1588
    %v2222 = vunpack.c.l.b16 %v1589
    %v2223 = vunpack.c.h.b16 %v1589
    %v2224 = vunpack.c.l.b16 %v1590
    %v2225 = vunpack.c.h.b16 %v1590
    %v2226 = vunpack.c.l.b16 %v1591
    %v2227 = vunpack.c.h.b16 %v1591
    %v2228 = vunpack.c.l.b16 %v1592
    %v2229 = vunpack.c.h.b16 %v1592
    %v2230 = vunpack.c.l.b16 %v1593
    %v2231 = vunpack.c.h.b16 %v1593
    %v2232 = vunpack.c.l.b16 %v1594
    %v2233 = vunpack.c.h.b16 %v1594
    %v2234 = vunpack.c.l.b16 %v1595
    %v2235 = vunpack.c.h.b16 %v1595
    %v2236 = vunpack.c.l.b16 %v1596
    %v2237 = vunpack.c.h.b16 %v1596
    %v2238 = vunpack.c.l.b16 %v1597
    %v2239 = vunpack.c.h.b16 %v1597
    %v2240 = vunpack.c.l.b16 %v1598
    %v2241 = vunpack.c.h.b16 %v1598
    %v2242 = vunpack.c.l.b16 %v1599
    %v2243 = vunpack.c.h.b16 %v1599
    %v2244 = vunpack.c.l.b16 %v1600
    %v2245 = vunpack.c.h.b16 %v1600
    %v2246 = vunpack.c.l.b16 %v1601
    %v2247 = vunpack.c.h.b16 %v1601
    %v2248 = vunpack.c.l.b16 %v1602
    %v2249 = vunpack.c.h.b16 %v1602
    %v2250 = vunpack.c.l.b16 %v1603
    %v2251 = vunpack.c.h.b16 %v1603
    %v2252 = vunpack.c.l.b16 %v1604
    %v2253 = vunpack.c.h.b16 %v1604
    %v2254 = vunpack.c.l.b16 %v1605
    %v2255 = vunpack.c.h.b16 %v1605
    %v2256 = vunpack.c.l.b16 %v1606
    %v2257 = vunpack.c.h.b16 %v1606
    %v2258 = vunpack.c.l.b16 %v1607
    %v2259 = vunpack.c.h.b16 %v1607
    %v2260 = vunpack.c.l.b16 %v1608
    %v2261 = vunpack.c.h.b16 %v1608
    %v2262 = vunpack.c.l.b16 %v1609
    %v2263 = vunpack.c.h.b16 %v1609
    %v2264 = vunpack.c.l.b16 %v1610
    %v2265 = vunpack.c.h.b16 %v1610
    %v2266 = vunpack.c.l.b16 %v1611
    %v2267 = vunpack.c.h.b16 %v1611
    %v2268 = vunpack.c.l.b16 %v1612
    %v2269 = vunpack.c.h.b16 %v1612
    %v2270 = vunpack.c.l.b16 %v1613
    %v2271 = vunpack.c.h.b16 %v1613
    %v2272 = vunpack.c.l.b16 %v1614
    %v2273 = vunpack.c.h.b16 %v1614
    %v2274 = vunpack.c.l.b16 %v1615
    %v2275 = vunpack.c.h.b16 %v1615
    %v2276 = vunpack.c.l.b16 %v1616
    %v2277 = vunpack.c.h.b16 %v1616
    %v2278 = vunpack.c.l.b16 %v1617
    %v2279 = vunpack.c.h.b16 %v1617
    %v2280 = vunpack.c.l.b16 %v1618
    %v2281 = vunpack.c.h.b16 %v1618
    %v2282 = vunpack.c.l.b16 %v1619
    %v2283 = vunpack.c.h.b16 %v1619
    %v2284 = vunpack.c.l.b16 %v1620
    %v2285 = vunpack.c.h.b16 %v1620
    %v2286 = vunpack.c.l.b16 %v1621
    %v2287 = vunpack.c.h.b16 %v1621
    %v2288 = vunpack.c.l.b16 %v1622
    %v2289 = vunpack.c.h.b16 %v1622
    %v2290 = vunpack.c.l.b16 %v1623
    %v2291 = vunpack.c.h.b16 %v1623
    %v2292 = vunpack.c.l.b16 %v1624
    %v2293 = vunpack.c.h.b16 %v1624
    %v2294 = vunpack.c.l.b16 %v1625
    %v2295 = vunpack.c.h.b16 %v1625
    %v2296 = vunpack.c.l.b16 %v1626
    %v2297 = vunpack.c.h.b16 %v1626
    %v2298 = vunpack.c.l.b16 %v1627
    %v2299 = vunpack.c.h.b16 %v1627
    %v2300 = vunpack.c.l.b16 %v1628
    %v2301 = vunpack.c.h.b16 %v1628
    %v2302 = vunpack.c.l.b16 %v1629
    %v2303 = vunpack.c.h.b16 %v1629
    %v2304 = vunpack.c.l.b16 %v1630
    %v2305 = vunpack.c.h.b16 %v1630
    %v2306 = vunpack.c.l.b16 %v1631
    %v2307 = vunpack.c.h.b16 %v1631
    %v2308 = vunpack.c.l.b16 %v1632
    %v2309 = vunpack.c.h.b16 %v1632
    %v2310 = vunpack.c.l.b16 %v1633
    %v2311 = vunpack.c.h.b16 %v1633
    %v2312 = vunpack.c.l.b16 %v1634
    %v2313 = vunpack.c.h.b16 %v1634
    %v2314 = vunpack.c.l.b16 %v1635
    %v2315 = vunpack.c.h.b16 %v1635
    %v2316 = vunpack.c.l.b16 %v1636
    %v2317 = vunpack.c.h.b16 %v1636
    %v2318 = vunpack.c.l.b16 %v1637
    %v2319 = vunpack.c.h.b16 %v1637
    %v2320 = vunpack.c.l.b16 %v1638
    %v2321 = vunpack.c.h.b16 %v1638
    %v2322 = vunpack.c.l.b16 %v1639
    %v2323 = vunpack.c.h.b16 %v1639
    %v2324 = vunpack.c.l.b16 %v1640
    %v2325 = vunpack.c.h.b16 %v1640
    %v2326 = vunpack.c.l.b16 %v1641
    %v2327 = vunpack.c.h.b16 %v1641
    %v2328 = vunpack.c.l.b16 %v1642
    %v2329 = vunpack.c.h.b16 %v1642
    %v2330 = vunpack.c.l.b16 %v1643
    %v2331 = vunpack.c.h.b16 %v1643
    %v2332 = vunpack.c.l.b16 %v1644
    %v2333 = vunpack.c.h.b16 %v1644
    %v2334 = vunpack.c.l.b16 %v1645
    %v2335 = vunpack.c.h.b16 %v1645
    %v2336 = vunpack.c.l.b16 %v1646
    %v2337 = vunpack.c.h.b16 %v1646
    %v2338 = vunpack.c.l.b16 %v1647
    %v2339 = vunpack.c.h.b16 %v1647
    %v2340 = vunpack.c.l.b16 %v1648
    %v2341 = vunpack.c.h.b16 %v1648
    %v2342 = vunpack.c.l.b16 %v1649
    %v2343 = vunpack.c.h.b16 %v1649
    %v2344 = vunpack.c.l.b16 %v1650
    %v2345 = vunpack.c.h.b16 %v1650
    %v2346 = vunpack.c.l.b16 %v1651
    %v2347 = vunpack.c.h.b16 %v1651
    %v2348 = vunpack.c.l.b16 %v1652
    %v2349 = vunpack.c.h.b16 %v1652
    %v2350 = vunpack.c.l.b16 %v1653
    %v2351 = vunpack.c.h.b16 %v1653
    %v2352 = vunpack.c.l.b16 %v1654
    %v2353 = vunpack.c.h.b16 %v1654
    %v2354 = vunpack.c.l.b16 %v1655
    %v2355 = vunpack.c.h.b16 %v1655
    %v2356 = vunpack.c.l.b16 %v1656
    %v2357 = vunpack.c.h.b16 %v1656
    %v2358 = vunpack.c.l.b16 %v1657
    %v2359 = vunpack.c.h.b16 %v1657
    %v2360 = vunpack.c.l.b16 %v1658
    %v2361 = vunpack.c.h.b16 %v1658
    %v2362 = vunpack.c.l.b16 %v1659
    %v2363 = vunpack.c.h.b16 %v1659
    %v2364 = vunpack.c.l.b16 %v1660
    %v2365 = vunpack.c.h.b16 %v1660
    %v2366 = vunpack.c.l.b16 %v1661
    %v2367 = vunpack.c.h.b16 %v1661
    %v2368 = vunpack.c.l.b16 %v1662
    %v2369 = vunpack.c.h.b16 %v1662
    %v2370 = vunpack.c.l.b16 %v1663
    %v2371 = vunpack.c.h.b16 %v1663
    %v2372 = vunpack.c.l.b16 %v1664
    %v2373 = vunpack.c.h.b16 %v1664
    %v2374 = vunpack.c.l.b16 %v1665
    %v2375 = vunpack.c.h.b16 %v1665
    %v2376 = vunpack.c.l.b16 %v1666
    %v2377 = vunpack.c.h.b16 %v1666
    %v2378 = vunpack.c.l.b16 %v1667
    %v2379 = vunpack.c.h.b16 %v1667
    %v2380 = vunpack.c.l.b16 %v1668
    %v2381 = vunpack.c.h.b16 %v1668
    %v2382 = vunpack.c.l.b16 %v1669
    %v2383 = vunpack.c.h.b16 %v1669
    %v2384 = vunpack.c.l.b16 %v1670
    %v2385 = vunpack.c.h.b16 %v1670
    %v2386 = vunpack.c.l.b16 %v1671
    %v2387 = vunpack.c.h.b16 %v1671
    %v2388 = vunpack.c.l.b16 %v1672
    %v2389 = vunpack.c.h.b16 %v1672
    %v2390 = vunpack.c.l.b16 %v1673
    %v2391 = vunpack.c.h.b16 %v1673
    %v2392 = vunpack.c.l.b16 %v1674
    %v2393 = vunpack.c.h.b16 %v1674
    %v2394 = vunpack.c.l.b16 %v1675
    %v2395 = vunpack.c.h.b16 %v1675
    %v2396 = vunpack.c.l.b16 %v1676
    %v2397 = vunpack.c.h.b16 %v1676
    %v2398 = vunpack.c.l.b16 %v1677
    %v2399 = vunpack.c.h.b16 %v1677
    %v2400 = vunpack.c.l.b16 %v1678
    %v2401 = vunpack.c.h.b16 %v1678
    %v2402 = vunpack.c.l.b16 %v1679
    %v2403 = vunpack.c.h.b16 %v1679
    %v2404 = vunpack.c.l.b16 %v1680
    %v2405 = vunpack.c.h.b16 %v1680
    %v2406 = vunpack.c.l.b16 %v1681
    %v2407 = vunpack.c.h.b16 %v1681
    %v2408 = vunpack.c.l.b16 %v1682
    %v2409 = vunpack.c.h.b16 %v1682
    %v2410 = vunpack.c.l.b16 %v1683
    %v2411 = vunpack.c.h.b16 %v1683
    %v2412 = vunpack.c.l.b16 %v1684
    %v2413 = vunpack.c.h.b16 %v1684
    %v2414 = vunpack.c.l.b16 %v1685
    %v2415 = vunpack.c.h.b16 %v1685
    %v2416 = vunpack.c.l.b16 %v1686
    %v2417 = vunpack.c.h.b16 %v1686
    %v2418 = vunpack.c.l.b16 %v1687
    %v2419 = vunpack.c.h.b16 %v1687
    %v2420 = vunpack.c.l.b16 %v1688
    %v2421 = vunpack.c.h.b16 %v1688
    %v2422 = vunpack.c.l.b16 %v1689
    %v2423 = vunpack.c.h.b16 %v1689
    %v2424 = vunpack.c.l.b16 %v1690
    %v2425 = vunpack.c.h.b16 %v1690
    %v2426 = vunpack.c.l.b16 %v1691
    %v2427 = vunpack.c.h.b16 %v1691
    %v2428 = vunpack.c.l.b16 %v1692
    %v2429 = vunpack.c.h.b16 %v1692
    %v2430 = vunpack.c.l.b16 %v1693
    %v2431 = vunpack.c.h.b16 %v1693
    %v2432 = vunpack.c.l.b16 %v1694
    %v2433 = vunpack.c.h.b16 %v1694
    %v2434 = vunpack.c.l.b16 %v1695
    %v2435 = vunpack.c.h.b16 %v1695
    %v2436 = vunpack.c.l.b16 %v1696
    %v2437 = vunpack.c.h.b16 %v1696
    %v2438 = vunpack.c.l.b16 %v1697
    %v2439 = vunpack.c.h.b16 %v1697
    %v2440 = vunpack.c.l.b16 %v1698
    %v2441 = vunpack.c.h.b16 %v1698
    %v2442 = vunpack.c.l.b16 %v1699
    %v2443 = vunpack.c.h.b16 %v1699
    %v2444 = vunpack.c.l.b16 %v1700
    %v2445 = vunpack.c.h.b16 %v1700
    %v2446 = vunpack.c.l.b16 %v1701
    %v2447 = vunpack.c.h.b16 %v1701
    %v2448 = vunpack.c.l.b16 %v1702
    %v2449 = vunpack.c.h.b16 %v1702
    %v2450 = vunpack.c.l.b16 %v1703
    %v2451 = vunpack.c.h.b16 %v1703
    %v2452 = vunpack.c.l.b16 %v1704
    %v2453 = vunpack.c.h.b16 %v1704
    %v2454 = vunpack.c.l.b16 %v1705
    %v2455 = vunpack.c.h.b16 %v1705
    %v2456 = vunpack.c.l.b16 %v1706
    %v2457 = vunpack.c.h.b16 %v1706
    %v2458 = vunpack.c.l.b16 %v1707
    %v2459 = vunpack.c.h.b16 %v1707
    %v2460 = vunpack.c.l.b16 %v1708
    %v2461 = vunpack.c.h.b16 %v1708
    %v2462 = vunpack.c.l.b16 %v1709
    %v2463 = vunpack.c.h.b16 %v1709
    %v2464 = vunpack.c.l.b16 %v1710
    %v2465 = vunpack.c.h.b16 %v1710
    %v2466 = vunpack.c.l.b16 %v1711
    %v2467 = vunpack.c.h.b16 %v1711
    %v2468 = vunpack.c.l.b16 %v1712
    %v2469 = vunpack.c.h.b16 %v1712
    %v2470 = vunpack.c.l.b16 %v1713
    %v2471 = vunpack.c.h.b16 %v1713
    %v2472 = vunpack.c.l.b16 %v1714
    %v2473 = vunpack.c.h.b16 %v1714
    %v2474 = vunpack.c.l.b16 %v1715
    %v2475 = vunpack.c.h.b16 %v1715
    %v2476 = vunpack.c.l.b16 %v1716
    %v2477 = vunpack.c.h.b16 %v1716
    %v2478 = vunpack.c.l.b16 %v1717
    %v2479 = vunpack.c.h.b16 %v1717
    %v2480 = vunpack.c.l.b16 %v1718
    %v2481 = vunpack.c.h.b16 %v1718
    %v2482 = vunpack.c.l.b16 %v1719
    %v2483 = vunpack.c.h.b16 %v1719
    %v2484 = vunpack.c.l.b16 %v1720
    %v2485 = vunpack.c.h.b16 %v1720
    %v2486 = vunpack.c.l.b16 %v1721
    %v2487 = vunpack.c.h.b16 %v1721
    %v2488 = vunpack.c.l.b16 %v1722
    %v2489 = vunpack.c.h.b16 %v1722
    %v2490 = vunpack.c.l.b16 %v1723
    %v2491 = vunpack.c.h.b16 %v1723
    %v2492 = vunpack.c.l.b16 %v1724
    %v2493 = vunpack.c.h.b16 %v1724
    %v2494 = vunpack.c.l.b16 %v1725
    %v2495 = vunpack.c.h.b16 %v1725
    %v2496 = vunpack.c.l.b16 %v1726
    %v2497 = vunpack.c.h.b16 %v1726
    %v2498 = vunpack.c.l.b16 %v1727
    %v2499 = vunpack.c.h.b16 %v1727
    %v2500 = vunpack.c.l.b16 %v1728
    %v2501 = vunpack.c.h.b16 %v1728
    %v2502 = vunpack.c.l.b16 %v1729
    %v2503 = vunpack.c.h.b16 %v1729
    %v2504 = vunpack.c.l.b16 %v1730
    %v2505 = vunpack.c.h.b16 %v1730
    %v2506 = vunpack.c.l.b16 %v1731
    %v2507 = vunpack.c.h.b16 %v1731
    %v2508 = vunpack.c.l.b16 %v1732
    %v2509 = vunpack.c.h.b16 %v1732
    %v2510 = vunpack.c.l.b16 %v1733
    %v2511 = vunpack.c.h.b16 %v1733
    %v2512 = vunpack.c.l.b16 %v1734
    %v2513 = vunpack.c.h.b16 %v1734
    %v2514 = vunpack.c.l.b16 %v1735
    %v2515 = vunpack.c.h.b16 %v1735
    %v2516 = vunpack.c.l.b16 %v1736
    %v2517 = vunpack.c.h.b16 %v1736
    %v2518 = vunpack.c.l.b16 %v1737
    %v2519 = vunpack.c.h.b16 %v1737
    %v2520 = vunpack.c.l.b16 %v1738
    %v2521 = vunpack.c.h.b16 %v1738
    %v2522 = vunpack.c.l.b16 %v1739
    %v2523 = vunpack.c.h.b16 %v1739
    %v2524 = vunpack.c.l.b16 %v1740
    %v2525 = vunpack.c.h.b16 %v1740
    %v2526 = vunpack.c.l.b16 %v1741
    %v2527 = vunpack.c.h.b16 %v1741
    %v2528 = vunpack.c.l.b16 %v1742
    %v2529 = vunpack.c.h.b16 %v1742
    %v2530 = vunpack.c.l.b16 %v1743
    %v2531 = vunpack.c.h.b16 %v1743
    %v2532 = vunpack.c.l.b16 %v1744
    %v2533 = vunpack.c.h.b16 %v1744
    %v2534 = vunpack.c.l.b16 %v1745
    %v2535 = vunpack.c.h.b16 %v1745
    %v2536 = vunpack.c.l.b16 %v1746
    %v2537 = vunpack.c.h.b16 %v1746
    %v2538 = vunpack.c.l.b16 %v1747
    %v2539 = vunpack.c.h.b16 %v1747
    %v2540 = vunpack.c.l.b16 %v1748
    %v2541 = vunpack.c.h.b16 %v1748
    %v2542 = vunpack.c.l.b16 %v1749
    %v2543 = vunpack.c.h.b16 %v1749
    %v2544 = vunpack.c.l.b16 %v1750
    %v2545 = vunpack.c.h.b16 %v1750
    %v2546 = vunpack.c.l.b16 %v1751
    %v2547 = vunpack.c.h.b16 %v1751
    %v2548 = vunpack.c.l.b16 %v1752
    %v2549 = vunpack.c.h.b16 %v1752
    %v2550 = vunpack.c.l.b16 %v1753
    %v2551 = vunpack.c.h.b16 %v1753
    %v2552 = vunpack.c.l.b16 %v1754
    %v2553 = vunpack.c.h.b16 %v1754
    %v2554 = vunpack.c.l.b16 %v1755
    %v2555 = vunpack.c.h.b16 %v1755
    %v2556 = vunpack.c.l.b16 %v1756
    %v2557 = vunpack.c.h.b16 %v1756
    %v2558 = vunpack.c.l.b16 %v1757
    %v2559 = vunpack.c.h.b16 %v1757
    %v2560 = vunpack.c.l.b16 %v1758
    %v2561 = vunpack.c.h.b16 %v1758
    %v2562 = vunpack.c.l.b16 %v1759
    %v2563 = vunpack.c.h.b16 %v1759
    %v2564 = vunpack.c.l.b16 %v1760
    %v2565 = vunpack.c.h.b16 %v1760
    %v2566 = vunpack.c.l.b16 %v1761
    %v2567 = vunpack.c.h.b16 %v1761
    %v2568 = vunpack.c.l.b16 %v1762
    %v2569 = vunpack.c.h.b16 %v1762
    %v2570 = vunpack.c.l.b16 %v1763
    %v2571 = vunpack.c.h.b16 %v1763
    %v2572 = vunpack.c.l.b16 %v1764
    %v2573 = vunpack.c.h.b16 %v1764
    %v2574 = vunpack.c.l.b16 %v1765
    %v2575 = vunpack.c.h.b16 %v1765
    %v2576 = vunpack.c.l.b16 %v1766
    %v2577 = vunpack.c.h.b16 %v1766
    %v2578 = vunpack.c.l.b16 %v1767
    %v2579 = vunpack.c.h.b16 %v1767
    %v2580 = vunpack.c.l.b16 %v1768
    %v2581 = vunpack.c.h.b16 %v1768
    %v2582 = vunpack.c.l.b16 %v1769
    %v2583 = vunpack.c.h.b16 %v1769
    %v2584 = vunpack.c.l.b16 %v1770
    %v2585 = vunpack.c.h.b16 %v1770
    %v2586 = vunpack.c.l.b16 %v1771
    %v2587 = vunpack.c.h.b16 %v1771
    %v2588 = vunpack.c.l.b16 %v1772
    %v2589 = vunpack.c.h.b16 %v1772
    %v2590 = vunpack.c.l.b16 %v1773
    %v2591 = vunpack.c.h.b16 %v1773
    %v2592 = vunpack.c.l.b16 %v1774
    %v2593 = vunpack.c.h.b16 %v1774
    %v2594 = vunpack.c.l.b16 %v1775
    %v2595 = vunpack.c.h.b16 %v1775
    %v2596 = vunpack.c.l.b16 %v1776
    %v2597 = vunpack.c.h.b16 %v1776
    %v2598 = vunpack.c.l.b16 %v1777
    %v2599 = vunpack.c.h.b16 %v1777
    %v2600 = vunpack.c.l.b16 %v1778
    %v2601 = vunpack.c.h.b16 %v1778
    %v2602 = vunpack.c.l.b16 %v1779
    %v2603 = vunpack.c.h.b16 %v1779
    %v2604 = vunpack.c.l.b16 %v1780
    %v2605 = vunpack.c.h.b16 %v1780
    %v2606 = vunpack.c.l.b16 %v1781
    %v2607 = vunpack.c.h.b16 %v1781
    %v2608 = vunpack.c.l.b16 %v1782
    %v2609 = vunpack.c.h.b16 %v1782
    %v2610 = vunpack.c.l.b16 %v1783
    %v2611 = vunpack.c.h.b16 %v1783
    %v2612 = vunpack.c.l.b16 %v1784
    %v2613 = vunpack.c.h.b16 %v1784
    %v2614 = vunpack.c.l.b16 %v1785
    %v2615 = vunpack.c.h.b16 %v1785
    %v2616 = vunpack.c.l.b16 %v1786
    %v2617 = vunpack.c.h.b16 %v1786
    %v2618 = vunpack.c.l.b16 %v1787
    %v2619 = vunpack.c.h.b16 %v1787
    %v2620 = vunpack.c.l.b16 %v1788
    %v2621 = vunpack.c.h.b16 %v1788
    %v2622 = vunpack.c.l.b16 %v1789
    %v2623 = vunpack.c.h.b16 %v1789
    %v2624 = vunpack.c.l.b16 %v1790
    %v2625 = vunpack.c.h.b16 %v1790
    %v2626 = vunpack.c.l.b16 %v1791
    %v2627 = vunpack.c.h.b16 %v1791
    %v2628 = vunpack.c.l.b16 %v1792
    %v2629 = vunpack.c.h.b16 %v1792
    %v2630 = vunpack.c.l.b16 %v1793
    %v2631 = vunpack.c.h.b16 %v1793
    %v2632 = vunpack.c.l.b16 %v1794
    %v2633 = vunpack.c.h.b16 %v1794
    %v2634 = vunpack.c.l.b16 %v1795
    %v2635 = vunpack.c.h.b16 %v1795
    %v2636 = vunpack.c.l.b16 %v1796
    %v2637 = vunpack.c.h.b16 %v1796
    %v2638 = vunpack.c.l.b16 %v1797
    %v2639 = vunpack.c.h.b16 %v1797
    %v2640 = vunpack.c.l.b16 %v1798
    %v2641 = vunpack.c.h.b16 %v1798
    %v2642 = vunpack.c.l.b16 %v1799
    %v2643 = vunpack.c.h.b16 %v1799
    %v2644 = vunpack.c.l.b16 %v1800
    %v2645 = vunpack.c.h.b16 %v1800
    %v2646 = vunpack.c.l.b16 %v1801
    %v2647 = vunpack.c.h.b16 %v1801
    %v2648 = vunpack.c.l.b16 %v1802
    %v2649 = vunpack.c.h.b16 %v1802
    %v2650 = vunpack.c.l.b16 %v1803
    %v2651 = vunpack.c.h.b16 %v1803
    %v2652 = vunpack.c.l.b16 %v1804
    %v2653 = vunpack.c.h.b16 %v1804
    %v2654 = vunpack.c.l.b16 %v1805
    %v2655 = vunpack.c.h.b16 %v1805
    %v2656 = vunpack.c.l.b16 %v1806
    %v2657 = vunpack.c.h.b16 %v1806
    %v2658 = vunpack.c.l.b16 %v1807
    %v2659 = vunpack.c.h.b16 %v1807
    %v2660 = vunpack.c.l.b16 %v1808
    %v2661 = vunpack.c.h.b16 %v1808
    %v2662 = vunpack.c.l.b16 %v1809
    %v2663 = vunpack.c.h.b16 %v1809
    %v2664 = vunpack.c.l.b16 %v1810
    %v2665 = vunpack.c.h.b16 %v1810
    %v2666 = vunpack.c.l.b16 %v1811
    %v2667 = vunpack.c.h.b16 %v1811
    %v2668 = vunpack.c.l.b16 %v1812
    %v2669 = vunpack.c.h.b16 %v1812
    %v2670 = vunpack.c.l.b16 %v1813
    %v2671 = vunpack.c.h.b16 %v1813
    %v2672 = vunpack.c.l.b16 %v1814
    %v2673 = vunpack.c.h.b16 %v1814
    %v2674 = vunpack.c.l.b16 %v1815
    %v2675 = vunpack.c.h.b16 %v1815
    %v2676 = vunpack.c.l.b16 %v1816
    %v2677 = vunpack.c.h.b16 %v1816
    %v2678 = vunpack.c.l.b16 %v1817
    %v2679 = vunpack.c.h.b16 %v1817
    %v2680 = vunpack.c.l.b16 %v1818
    %v2681 = vunpack.c.h.b16 %v1818
    %v2682 = vunpack.c.l.b16 %v1819
    %v2683 = vunpack.c.h.b16 %v1819
    %v2684 = vunpack.c.l.b16 %v1820
    %v2685 = vunpack.c.h.b16 %v1820
    %v2686 = vunpack.c.l.b16 %v1821
    %v2687 = vunpack.c.h.b16 %v1821
    %v2688 = vunpack.c.l.b16 %v1822
    %v2689 = vunpack.c.h.b16 %v1822
    %v2690 = vunpack.c.l.b16 %v1823
    %v2691 = vunpack.c.h.b16 %v1823
    %v2692 = vunpack.c.l.b16 %v1824
    %v2693 = vunpack.c.h.b16 %v1824
    %v2694 = vunpack.c.l.b16 %v1825
    %v2695 = vunpack.c.h.b16 %v1825
    %v2696 = vunpack.c.l.b16 %v1826
    %v2697 = vunpack.c.h.b16 %v1826
    %v2698 = vunpack.c.l.b16 %v1827
    %v2699 = vunpack.c.h.b16 %v1827
    %v2700 = vunpack.c.l.b16 %v1828
    %v2701 = vunpack.c.h.b16 %v1828
    %v2702 = vunpack.c.l.b16 %v1829
    %v2703 = vunpack.c.h.b16 %v1829
    %v2704 = vunpack.c.l.b16 %v1830
    %v2705 = vunpack.c.h.b16 %v1830
    %v2706 = vunpack.c.l.b16 %v1831
    %v2707 = vunpack.c.h.b16 %v1831
    %v2708 = vunpack.c.l.b16 %v1832
    %v2709 = vunpack.c.h.b16 %v1832
    %v2710 = vpack.c.b16 %v2206, %v2198
    %v2711 = vpack.c.b16 %v2207, %v2199
    %v2712 = vpack.c.b16 %v2208, %v2200
    %v2713 = vpack.c.b16 %v2209, %v2201
    %v2714 = vpack.c.b16 %v2210, %v2202
    %v2715 = vpack.c.b16 %v2211, %v2203
    %v2716 = vpack.c.b16 %v2212, %v2204
    %v2717 = vpack.c.b16 %v2213, %v2205
    %v2718 = vpack.c.b16 %v2222, %v2214
    %v2719 = vpack.c.b16 %v2223, %v2215
    %v2720 = vpack.c.b16 %v2224, %v2216
    %v2721 = vpack.c.b16 %v2225, %v2217
    %v2722 = vpack.c.b16 %v2226, %v2218
    %v2723 = vpack.c.b16 %v2227, %v2219
    %v2724 = vpack.c.b16 %v2228, %v2220
    %v2725 = vpack.c.b16 %v2229, %v2221
    %v2726 = vpack.c.b16 %v2238, %v2230
    %v2727 = vpack.c.b16 %v2239, %v2231
    %v2728 = vpack.c.b16 %v2240, %v2232
    %v2729 = vpack.c.b16 %v2241, %v2233
    %v2730 = vpack.c.b16 %v2242, %v2234
    %v2731 = vpack.c.b16 %v2243, %v2235
    %v2732 = vpack.c.b16 %v2244, %v2236
    %v2733 = vpack.c.b16 %v2245, %v2237
    %v2734 = vpack.c.b16 %v2254, %v2246
    %v2735 = vpack.c.b16 %v2255, %v2247
    %v2736 = vpack.c.b16 %v2256, %v2248
    %v2737 = vpack.c.b16 %v2257, %v2249
    %v2738 = vpack.c.b16 %v2258, %v2250
    %v2739 = vpack.c.b16 %v2259, %v2251
    %v2740 = vpack.c.b16 %v2260, %v2252
    %v2741 = vpack.c.b16 %v2261, %v2253
    %v2742 = vpack.c.b16 %v2270, %v2262
    %v2743 = vpack.c.b16 %v2271, %v2263
    %v2744 = vpack.c.b16 %v2272, %v2264
    %v2745 = vpack.c.b16 %v2273, %v2265
    %v2746 = vpack.c.b16 %v2274, %v2266
    %v2747 = vpack.c.b16 %v2275, %v2267
    %v2748 = vpack.c.b16 %v2276, %v2268
    %v2749 = vpack.c.b16 %v2277, %v2269
    %v2750 = vpack.c.b16 %v2286, %v2278
    %v2751 = vpack.c.b16 %v2287, %v2279
    %v2752 = vpack.c.b16 %v2288, %v2280
    %v2753 = vpack.c.b16 %v2289, %v2281
    %v2754 = vpack.c.b16 %v2290, %v2282
    %v2755 = vpack.c.b16 %v2291, %v2283
    %v2756 = vpack.c.b16 %v2292, %v2284
    %v2757 = vpack.c.b16 %v2293, %v2285
    %v2758 = vpack.c.b16 %v2302, %v2294
    %v2759 = vpack.c.b16 %v2303, %v2295
    %v2760 = vpack.c.b16 %v2304, %v2296
    %v2761 = vpack.c.b16 %v2305, %v2297
    %v2762 = vpack.c.b16 %v2306, %v2298
    %v2763 = vpack.c.b16 %v2307, %v2299
    %v2764 = vpack.c.b16 %v2308, %v2300
    %v2765 = vpack.c.b16 %v2309, %v2301
    %v2766 = vpack.c.b16 %v2318, %v2310
    %v2767 = vpack.c.b16 %v2319, %v2311
    %v2768 = vpack.c.b16 %v2320, %v2312
    %v2769 = vpack.c.b16 %v2321, %v2313
    %v2770 = vpack.c.b16 %v2322, %v2314
    %v2771 = vpack.c.b16 %v2323, %v2315
    %v2772 = vpack.c.b16 %v2324, %v2316
    %v2773 = vpack.c.b16 %v2325, %v2317
    %v2774 = vpack.c.b16 %v2334, %v2326
    %v2775 = vpack.c.b16 %v2335, %v2327
    %v2776 = vpack.c.b16 %v2336, %v2328
    %v2777 = vpack.c.b16 %v2337, %v2329
    %v2778 = vpack.c.b16 %v2338, %v2330
    %v2779 = vpack.c.b16 %v2339, %v2331
    %v2780 = vpack.c.b16 %v2340, %v2332
    %v2781 = vpack.c.b16 %v2341, %v2333
    %v2782 = vpack.c.b16 %v2350, %v2342
    %v2783 = vpack.c.b16 %v2351, %v2343
    %v2784 = vpack.c.b16 %v2352, %v2344
    %v2785 = vpack.c.b16 %v2353, %v2345
    %v2786 = vpack.c.b16 %v2354, %v2346
    %v2787 = vpack.c.b16 %v2355, %v2347
    %v2788 = vpack.c.b16 %v2356, %v2348
    %v2789 = vpack.c.b16 %v2357, %v2349
    %v2790 = vpack.c.b16 %v2366, %v2358
    %v2791 = vpack.c.b16 %v2367, %v2359
    %v2792 = vpack.c.b16 %v2368, %v2360
    %v2793 = vpack.c.b16 %v2369, %v2361
    %v2794 = vpack.c.b16 %v2370, %v2362
    %v2795 = vpack.c.b16 %v2371, %v2363
    %v2796 = vpack.c.b16 %v2372, %v2364
    %v2797 = vpack.c.b16 %v2373, %v2365
    %v2798 = vpack.c.b16 %v2382, %v2374
    %v2799 = vpack.c.b16 %v2383, %v2375
    %v2800 = vpack.c.b16 %v2384, %v2376
    %v2801 = vpack.c.b16 %v2385, %v2377
    %v2802 = vpack.c.b16 %v2386, %v2378
    %v2803 = vpack.c.b16 %v2387, %v2379
    %v2804 = vpack.c.b16 %v2388, %v2380
    %v2805 = vpack.c.b16 %v2389, %v2381
    %v2806 = vpack.c.b16 %v2398, %v2390
    %v2807 = vpack.c.b16 %v2399, %v2391
    %v2808 = vpack.c.b16 %v2400, %v2392
    %v2809 = vpack.c.b16 %v2401, %v2393
    %v2810 = vpack.c.b16 %v2402, %v2394
    %v2811 = vpack.c.b16 %v2403, %v2395
    %v2812 = vpack.c.b16 %v2404, %v2396
    %v2813 = vpack.c.b16 %v2405, %v2397
    %v2814 = vpack.c.b16 %v2414, %v2406
    %v2815 = vpack.c.b16 %v2415, %v2407
    %v2816 = vpack.c.b16 %v2416, %v2408
    %v2817 = vpack.c.b16 %v2417, %v2409
    %v2818 = vpack.c.b16 %v2418, %v2410
    %v2819 = vpack.c.b16 %v2419, %v2411
    %v2820 = vpack.c.b16 %v2420, %v2412
    %v2821 = vpack.c.b16 %v2421, %v2413
    %v2822 = vpack.c.b16 %v2430, %v2422
    %v2823 = vpack.c.b16 %v2431, %v2423
    %v2824 = vpack.c.b16 %v2432, %v2424
    %v2825 = vpack.c.b16 %v2433, %v2425
    %v2826 = vpack.c.b16 %v2434, %v2426
    %v2827 = vpack.c.b16 %v2435, %v2427
    %v2828 = vpack.c.b16 %v2436, %v2428
    %v2829 = vpack.c.b16 %v2437, %v2429
    %v2830 = vpack.c.b16 %v2446, %v2438
    %v2831 = vpack.c.b16 %v2447, %v2439
    %v2832 = vpack.c.b16 %v2448, %v2440
    %v2833 = vpack.c.b16 %v2449, %v2441
    %v2834 = vpack.c.b16 %v2450, %v2442
    %v2835 = vpack.c.b16 %v2451, %v2443
    %v2836 = vpack.c.b16 %v2452, %v2444
    %v2837 = vpack.c.b16 %v2453, %v2445
    %v2838 = vpack.c.b16 %v2462, %v2454
    %v2839 = vpack.c.b16 %v2463, %v2455
    %v2840 = vpack.c.b16 %v2464, %v2456
    %v2841 = vpack.c.b16 %v2465, %v2457
    %v2842 = vpack.c.b16 %v2466, %v2458
    %v2843 = vpack.c.b16 %v2467, %v2459
    %v2844 = vpack.c.b16 %v2468, %v2460
    %v2845 = vpack.c.b16 %v2469, %v2461
    %v2846 = vpack.c.b16 %v2478, %v2470
    %v2847 = vpack.c.b16 %v2479, %v2471
    %v2848 = vpack.c.b16 %v2480, %v2472
    %v2849 = vpack.c.b16 %v2481, %v2473
    %v2850 = vpack.c.b16 %v2482, %v2474
    %v2851 = vpack.c.b16 %v2483, %v2475
    %v2852 = vpack.c.b16 %v2484, %v2476
    %v2853 = vpack.c.b16 %v2485, %v2477
    %v2854 = vpack.c.b16 %v2494, %v2486
    %v2855 = vpack.c.b16 %v2495, %v2487
    %v2856 = vpack.c.b16 %v2496, %v2488
    %v2857 = vpack.c.b16 %v2497, %v2489
    %v2858 = vpack.c.b16 %v2498, %v2490
    %v2859 = vpack.c.b16 %v2499, %v2491
    %v2860 = vpack.c.b16 %v2500, %v2492
    %v2861 = vpack.c.b16 %v2501, %v2493
    %v2862 = vpack.c.b16 %v2510, %v2502
    %v2863 = vpack.c.b16 %v2511, %v2503
    %v2864 = vpack.c.b16 %v2512, %v2504
    %v2865 = vpack.c.b16 %v2513, %v2505
    %v2866 = vpack.c.b16 %v2514, %v2506
    %v2867 = vpack.c.b16 %v2515, %v2507
    %v2868 = vpack.c.b16 %v2516, %v2508
    %v2869 = vpack.c.b16 %v2517, %v2509
    %v2870 = vpack.c.b16 %v2526, %v2518
    %v2871 = vpack.c.b16 %v2527, %v2519
    %v2872 = vpack.c.b16 %v2528, %v2520
    %v2873 = vpack.c.b16 %v2529, %v2521
    %v2874 = vpack.c.b16 %v2530, %v2522
    %v2875 = vpack.c.b16 %v2531, %v2523
    %v2876 = vpack.c.b16 %v2532, %v2524
    %v2877 = vpack.c.b16 %v2533, %v2525
    %v2878 = vpack.c.b16 %v2542, %v2534
    %v2879 = vpack.c.b16 %v2543, %v2535
    %v2880 = vpack.c.b16 %v2544, %v2536
    %v2881 = vpack.c.b16 %v2545, %v2537
    %v2882 = vpack.c.b16 %v2546, %v2538
    %v2883 = vpack.c.b16 %v2547, %v2539
    %v2884 = vpack.c.b16 %v2548, %v2540
    %v2885 = vpack.c.b16 %v2549, %v2541
    %v2886 = vpack.c.b16 %v2558, %v2550
    %v2887 = vpack.c.b16 %v2559, %v2551
    %v2888 = vpack.c.b16 %v2560, %v2552
    %v2889 = vpack.c.b16 %v2561, %v2553
    %v2890 = vpack.c.b16 %v2562, %v2554
    %v2891 = vpack.c.b16 %v2563, %v2555
    %v2892 = vpack.c.b16 %v2564, %v2556
    %v2893 = vpack.c.b16 %v2565, %v2557
    %v2894 = vpack.c.b16 %v2574, %v2566
    %v2895 = vpack.c.b16 %v2575, %v2567
    %v2896 = vpack.c.b16 %v2576, %v2568
    %v2897 = vpack.c.b16 %v2577, %v2569
    %v2898 = vpack.c.b16 %v2578, %v2570
    %v2899 = vpack.c.b16 %v2579, %v2571
    %v2900 = vpack.c.b16 %v2580, %v2572
    %v2901 = vpack.c.b16 %v2581, %v2573
    %v2902 = vpack.c.b16 %v2590, %v2582
    %v2903 = vpack.c.b16 %v2591, %v2583
    %v2904 = vpack.c.b16 %v2592, %v2584
    %v2905 = vpack.c.b16 %v2593, %v2585
    %v2906 = vpack.c.b16 %v2594, %v2586
    %v2907 = vpack.c.b16 %v2595, %v2587
    %v2908 = vpack.c.b16 %v2596, %v2588
    %v2909 = vpack.c.b16 %v2597, %v2589
    %v2910 = vpack.c.b16 %v2606, %v2598
    %v2911 = vpack.c.b16 %v2607, %v2599
    %v2912 = vpack.c.b16 %v2608, %v2600
    %v2913 = vpack.c.b16 %v2609, %v2601
    %v2914 = vpack.c.b16 %v2610, %v2602
    %v2915 = vpack.c.b16 %v2611, %v2603
    %v2916 = vpack.c.b16 %v2612, %v2604
    %v2917 = vpack.c.b16 %v2613, %v2605
    %v2918 = vpack.c.b16 %v2622, %v2614
    %v2919 = vpack.c.b16 %v2623, %v2615
    %v2920 = vpack.c.b16 %v2624, %v2616
    %v2921 = vpack.c.b16 %v2625, %v2617
    %v2922 = vpack.c.b16 %v2626, %v2618
    %v2923 = vpack.c.b16 %v2627, %v2619
    %v2924 = vpack.c.b16 %v2628, %v2620
    %v2925 = vpack.c.b16 %v2629, %v2621
    %v2926 = vpack.c.b16 %v2638, %v2630
    %v2927 = vpack.c.b16 %v2639, %v2631
    %v2928 = vpack.c.b16 %v2640, %v2632
    %v2929 = vpack.c.b16 %v2641, %v2633
    %v2930 = vpack.c.b16 %v2642, %v2634
    %v2931 = vpack.c.b16 %v2643, %v2635
    %v2932 = vpack.c.b16 %v2644, %v2636
    %v2933 = vpack.c.b16 %v2645, %v2637
    %v2934 = vpack.c.b16 %v2654, %v2646
    %v2935 = vpack.c.b16 %v2655, %v2647
    %v2936 = vpack.c.b16 %v2656, %v2648
    %v2937 = vpack.c.b16 %v2657, %v2649
    %v2938 = vpack.c.b16 %v2658, %v2650
    %v2939 = vpack.c.b16 %v2659, %v2651
    %v2940 = vpack.c.b16 %v2660, %v2652
    %v2941 = vpack.c.b16 %v2661, %v2653
    %v2942 = vpack.c.b16 %v2670, %v2662
    %v2943 = vpack.c.b16 %v2671, %v2663
    %v2944 = vpack.c.b16 %v2672, %v2664
    %v2945 = vpack.c.b16 %v2673, %v2665
    %v2946 = vpack.c.b16 %v2674, %v2666
    %v2947 = vpack.c.b16 %v2675, %v2667
    %v2948 = vpack.c.b16 %v2676, %v2668
    %v2949 = vpack.c.b16 %v2677, %v2669
    %v2950 = vpack.c.b16 %v2686, %v2678
    %v2951 = vpack.c.b16 %v2687, %v2679
    %v2952 = vpack.c.b16 %v2688, %v2680
    %v2953 = vpack.c.b16 %v2689, %v2681
    %v2954 = vpack.c.b16 %v2690, %v2682
    %v2955 = vpack.c.b16 %v2691, %v2683
    %v2956 = vpack.c.b16 %v2692, %v2684
    %v2957 = vpack.c.b16 %v2693, %v2685
    %v2958 = vpack.c.b16 %v2702, %v2694
    %v2959 = vpack.c.b16 %v2703, %v2695
    %v2960 = vpack.c.b16 %v2704, %v2696
    %v2961 = vpack.c.b16 %v2705, %v2697
    %v2962 = vpack.c.b16 %v2706, %v2698
    %v2963 = vpack.c.b16 %v2707, %v2699
    %v2964 = vpack.c.b16 %v2708, %v2700
    %v2965 = vpack.c.b16 %v2709, %v2701
    %3222 = vmatprep.subr.bf16.mxu0 %v2767
    %3223 = vmatpush1.bf16.msra.mxu0 %v2766
    %3224 = vmatprep.subr.bf16.mxu0 %v2759
    %3225 = vmatpush1.bf16.msra.mxu0 %v2758
    %3226 = vmatprep.subr.bf16.mxu0 %v2751
    %3227 = vmatpush1.bf16.msra.mxu0 %v2750
    %3228 = vmatprep.subr.bf16.mxu0 %v2743
    %3229 = vmatpush1.bf16.msra.mxu0 %v2742
    %3230 = vmatprep.subr.bf16.mxu0 %v2735
    %3231 = vmatpush1.bf16.msra.mxu0 %v2734
    %3232 = vmatprep.subr.bf16.mxu0 %v2727
    %3233 = vmatpush1.bf16.msra.mxu0 %v2726
    %3234 = vmatprep.subr.bf16.mxu0 %v2719
    %3235 = vmatpush1.bf16.msra.mxu0 %v2718
    %3236 = vmatprep.subr.bf16.mxu0 %v2711
    %3237 = vmatpush1.bf16.msra.mxu0 %v2710
    %3238 = vmatprep.subr.bf16.mxu0 %v2831
    %3239 = vmatpush2.bf16.msra.mxu0 %v2830
    %3240 = vmatprep.subr.bf16.mxu0 %v2823
    %3241 = vmatpush2.bf16.msra.mxu0 %v2822
    %3242 = vmatprep.subr.bf16.mxu0 %v2815
    %3243 = vmatpush2.bf16.msra.mxu0 %v2814
    %3244 = vmatprep.subr.bf16.mxu0 %v2807
    %3245 = vmatpush2.bf16.msra.mxu0 %v2806
    %3246 = vmatprep.subr.bf16.mxu0 %v2799
    %3247 = vmatpush2.bf16.msra.mxu0 %v2798
    %3248 = vmatprep.subr.bf16.mxu0 %v2791
    %3249 = vmatpush2.bf16.msra.mxu0 %v2790
    %3250 = vmatprep.subr.bf16.mxu0 %v2783
    %3251 = vmatpush2.bf16.msra.mxu0 %v2782
    %3252 = vmatprep.subr.bf16.mxu0 %v2775
    %3253 = vmatpush2.bf16.msra.mxu0 %v2774
    %3254 = vmatprep.mubr.bf16.mxu0 %v1936
    %3255 = vmatmul.mubr.bf16.gmra.mxu0 %v1934
    %v3256 = vpop.f32.mrf.mxu0
    %v3257 = vadd.f32 %v1838, %v3256
    %v3258 = vpop.f32.mrf.mxu0
    %v3259 = vadd.f32 %v1842, %v3258
    %v3260 = vpop.f32.mrf.mxu0
    %v3261 = vadd.f32 %v1838, %v3260
    %v3262 = vpop.f32.mrf.mxu0
    %v3263 = vadd.f32 %v1842, %v3262
    %3264 = vdwg.mxu0
    %3265 = vmatprep.subr.bf16.mxu0 %v2895
    %3266 = vmatpush1.bf16.msra.mxu0 %v2894
    %3267 = vmatprep.subr.bf16.mxu0 %v2887
    %3268 = vmatpush1.bf16.msra.mxu0 %v2886
    %3269 = vmatprep.subr.bf16.mxu0 %v2879
    %3270 = vmatpush1.bf16.msra.mxu0 %v2878
    %3271 = vmatprep.subr.bf16.mxu0 %v2871
    %3272 = vmatpush1.bf16.msra.mxu0 %v2870
    %3273 = vmatprep.subr.bf16.mxu0 %v2863
    %3274 = vmatpush1.bf16.msra.mxu0 %v2862
    %3275 = vmatprep.subr.bf16.mxu0 %v2855
    %3276 = vmatpush1.bf16.msra.mxu0 %v2854
    %3277 = vmatprep.subr.bf16.mxu0 %v2847
    %3278 = vmatpush1.bf16.msra.mxu0 %v2846
    %3279 = vmatprep.subr.bf16.mxu0 %v2839
    %3280 = vmatpush1.bf16.msra.mxu0 %v2838
    %3281 = vmatprep.subr.bf16.mxu0 %v2959
    %3282 = vmatpush2.bf16.msra.mxu0 %v2958
    %3283 = vmatprep.subr.bf16.mxu0 %v2951
    %3284 = vmatpush2.bf16.msra.mxu0 %v2950
    %3285 = vmatprep.subr.bf16.mxu0 %v2943
    %3286 = vmatpush2.bf16.msra.mxu0 %v2942
    %3287 = vmatprep.subr.bf16.mxu0 %v2935
    %3288 = vmatpush2.bf16.msra.mxu0 %v2934
    %3289 = vmatprep.subr.bf16.mxu0 %v2927
    %3290 = vmatpush2.bf16.msra.mxu0 %v2926
    %3291 = vmatprep.subr.bf16.mxu0 %v2919
    %3292 = vmatpush2.bf16.msra.mxu0 %v2918
    %3293 = vmatprep.subr.bf16.mxu0 %v2911
    %3294 = vmatpush2.bf16.msra.mxu0 %v2910
    %3295 = vmatprep.subr.bf16.mxu0 %v2903
    %3296 = vmatpush2.bf16.msra.mxu0 %v2902
    %3297 = vmatprep.mubr.bf16.mxu0 %v1937
    %3298 = vmatmul.mubr.bf16.gmra.mxu0 %v1935
    %v3299 = vpop.f32.mrf.mxu0
    %v3300 = vadd.f32 %v3257, %v3299
    %v3301 = vpop.f32.mrf.mxu0
    %v3302 = vadd.f32 %v3259, %v3301
    %v3303 = vpop.f32.mrf.mxu0
    %v3304 = vadd.f32 %v3261, %v3303
    %v3305 = vpop.f32.mrf.mxu0
    %v3306 = vadd.f32 %v3263, %v3305
    %3307 = vdwg.mxu0
    %3308 = vmatprep.subr.bf16.mxu0 %v2769
    %3309 = vmatpush1.bf16.msra.mxu0 %v2768
    %3310 = vmatprep.subr.bf16.mxu0 %v2761
    %3311 = vmatpush1.bf16.msra.mxu0 %v2760
    %3312 = vmatprep.subr.bf16.mxu0 %v2753
    %3313 = vmatpush1.bf16.msra.mxu0 %v2752
    %3314 = vmatprep.subr.bf16.mxu0 %v2745
    %3315 = vmatpush1.bf16.msra.mxu0 %v2744
    %3316 = vmatprep.subr.bf16.mxu0 %v2737
    %3317 = vmatpush1.bf16.msra.mxu0 %v2736
    %3318 = vmatprep.subr.bf16.mxu0 %v2729
    %3319 = vmatpush1.bf16.msra.mxu0 %v2728
    %3320 = vmatprep.subr.bf16.mxu0 %v2721
    %3321 = vmatpush1.bf16.msra.mxu0 %v2720
    %3322 = vmatprep.subr.bf16.mxu0 %v2713
    %3323 = vmatpush1.bf16.msra.mxu0 %v2712
    %3324 = vmatprep.subr.bf16.mxu0 %v2833
    %3325 = vmatpush2.bf16.msra.mxu0 %v2832
    %3326 = vmatprep.subr.bf16.mxu0 %v2825
    %3327 = vmatpush2.bf16.msra.mxu0 %v2824
    %3328 = vmatprep.subr.bf16.mxu0 %v2817
    %3329 = vmatpush2.bf16.msra.mxu0 %v2816
    %3330 = vmatprep.subr.bf16.mxu0 %v2809
    %3331 = vmatpush2.bf16.msra.mxu0 %v2808
    %3332 = vmatprep.subr.bf16.mxu0 %v2801
    %3333 = vmatpush2.bf16.msra.mxu0 %v2800
    %3334 = vmatprep.subr.bf16.mxu0 %v2793
    %3335 = vmatpush2.bf16.msra.mxu0 %v2792
    %3336 = vmatprep.subr.bf16.mxu0 %v2785
    %3337 = vmatpush2.bf16.msra.mxu0 %v2784
    %3338 = vmatprep.subr.bf16.mxu0 %v2777
    %3339 = vmatpush2.bf16.msra.mxu0 %v2776
    %3340 = vmatprep.mubr.bf16.mxu0 %v1936
    %3341 = vmatmul.mubr.bf16.gmra.mxu0 %v1934
    %v3342 = vpop.f32.mrf.mxu0
    %v3343 = vadd.f32 %v1846, %v3342
    %v3344 = vpop.f32.mrf.mxu0
    %v3345 = vadd.f32 %v1850, %v3344
    %v3346 = vpop.f32.mrf.mxu0
    %v3347 = vadd.f32 %v1846, %v3346
    %v3348 = vpop.f32.mrf.mxu0
    %v3349 = vadd.f32 %v1850, %v3348
    %3350 = vdwg.mxu0
    %3351 = vmatprep.subr.bf16.mxu0 %v2897
    %3352 = vmatpush1.bf16.msra.mxu0 %v2896
    %3353 = vmatprep.subr.bf16.mxu0 %v2889
    %3354 = vmatpush1.bf16.msra.mxu0 %v2888
    %3355 = vmatprep.subr.bf16.mxu0 %v2881
    %3356 = vmatpush1.bf16.msra.mxu0 %v2880
    %3357 = vmatprep.subr.bf16.mxu0 %v2873
    %3358 = vmatpush1.bf16.msra.mxu0 %v2872
    %3359 = vmatprep.subr.bf16.mxu0 %v2865
    %3360 = vmatpush1.bf16.msra.mxu0 %v2864
    %3361 = vmatprep.subr.bf16.mxu0 %v2857
    %3362 = vmatpush1.bf16.msra.mxu0 %v2856
    %3363 = vmatprep.subr.bf16.mxu0 %v2849
    %3364 = vmatpush1.bf16.msra.mxu0 %v2848
    %3365 = vmatprep.subr.bf16.mxu0 %v2841
    %3366 = vmatpush1.bf16.msra.mxu0 %v2840
    %3367 = vmatprep.subr.bf16.mxu0 %v2961
    %3368 = vmatpush2.bf16.msra.mxu0 %v2960
    %3369 = vmatprep.subr.bf16.mxu0 %v2953
    %3370 = vmatpush2.bf16.msra.mxu0 %v2952
    %3371 = vmatprep.subr.bf16.mxu0 %v2945
    %3372 = vmatpush2.bf16.msra.mxu0 %v2944
    %3373 = vmatprep.subr.bf16.mxu0 %v2937
    %3374 = vmatpush2.bf16.msra.mxu0 %v2936
    %3375 = vmatprep.subr.bf16.mxu0 %v2929
    %3376 = vmatpush2.bf16.msra.mxu0 %v2928
    %3377 = vmatprep.subr.bf16.mxu0 %v2921
    %3378 = vmatpush2.bf16.msra.mxu0 %v2920
    %3379 = vmatprep.subr.bf16.mxu0 %v2913
    %3380 = vmatpush2.bf16.msra.mxu0 %v2912
    %3381 = vmatprep.subr.bf16.mxu0 %v2905
    %3382 = vmatpush2.bf16.msra.mxu0 %v2904
    %3383 = vmatprep.mubr.bf16.mxu0 %v1937
    %3384 = vmatmul.mubr.bf16.gmra.mxu0 %v1935
    %v3385 = vpop.f32.mrf.mxu0
    %v3386 = vadd.f32 %v3343, %v3385
    %v3387 = vpop.f32.mrf.mxu0
    %v3388 = vadd.f32 %v3345, %v3387
    %v3389 = vpop.f32.mrf.mxu0
    %v3390 = vadd.f32 %v3347, %v3389
    %v3391 = vpop.f32.mrf.mxu0
    %v3392 = vadd.f32 %v3349, %v3391
    %3393 = vdwg.mxu0
    %3394 = vmatprep.subr.bf16.mxu0 %v2771
    %3395 = vmatpush1.bf16.msra.mxu0 %v2770
    %3396 = vmatprep.subr.bf16.mxu0 %v2763
    %3397 = vmatpush1.bf16.msra.mxu0 %v2762
    %3398 = vmatprep.subr.bf16.mxu0 %v2755
    %3399 = vmatpush1.bf16.msra.mxu0 %v2754
    %3400 = vmatprep.subr.bf16.mxu0 %v2747
    %3401 = vmatpush1.bf16.msra.mxu0 %v2746
    %3402 = vmatprep.subr.bf16.mxu0 %v2739
    %3403 = vmatpush1.bf16.msra.mxu0 %v2738
    %3404 = vmatprep.subr.bf16.mxu0 %v2731
    %3405 = vmatpush1.bf16.msra.mxu0 %v2730
    %3406 = vmatprep.subr.bf16.mxu0 %v2723
    %3407 = vmatpush1.bf16.msra.mxu0 %v2722
    %3408 = vmatprep.subr.bf16.mxu0 %v2715
    %3409 = vmatpush1.bf16.msra.mxu0 %v2714
    %3410 = vmatprep.subr.bf16.mxu0 %v2835
    %3411 = vmatpush2.bf16.msra.mxu0 %v2834
    %3412 = vmatprep.subr.bf16.mxu0 %v2827
    %3413 = vmatpush2.bf16.msra.mxu0 %v2826
    %3414 = vmatprep.subr.bf16.mxu0 %v2819
    %3415 = vmatpush2.bf16.msra.mxu0 %v2818
    %3416 = vmatprep.subr.bf16.mxu0 %v2811
    %3417 = vmatpush2.bf16.msra.mxu0 %v2810
    %3418 = vmatprep.subr.bf16.mxu0 %v2803
    %3419 = vmatpush2.bf16.msra.mxu0 %v2802
    %3420 = vmatprep.subr.bf16.mxu0 %v2795
    %3421 = vmatpush2.bf16.msra.mxu0 %v2794
    %3422 = vmatprep.subr.bf16.mxu0 %v2787
    %3423 = vmatpush2.bf16.msra.mxu0 %v2786
    %3424 = vmatprep.subr.bf16.mxu0 %v2779
    %3425 = vmatpush2.bf16.msra.mxu0 %v2778
    %3426 = vmatprep.mubr.bf16.mxu0 %v1936
    %3427 = vmatmul.mubr.bf16.gmra.mxu0 %v1934
    %v3428 = vpop.f32.mrf.mxu0
    %v3429 = vadd.f32 %v1854, %v3428
    %v3430 = vpop.f32.mrf.mxu0
    %v3431 = vadd.f32 %v1858, %v3430
    %v3432 = vpop.f32.mrf.mxu0
    %v3433 = vadd.f32 %v1854, %v3432
    %v3434 = vpop.f32.mrf.mxu0
    %v3435 = vadd.f32 %v1858, %v3434
    %3436 = vdwg.mxu0
    %3437 = vmatprep.subr.bf16.mxu0 %v2899
    %3438 = vmatpush1.bf16.msra.mxu0 %v2898
    %3439 = vmatprep.subr.bf16.mxu0 %v2891
    %3440 = vmatpush1.bf16.msra.mxu0 %v2890
    %3441 = vmatprep.subr.bf16.mxu0 %v2883
    %3442 = vmatpush1.bf16.msra.mxu0 %v2882
    %3443 = vmatprep.subr.bf16.mxu0 %v2875
    %3444 = vmatpush1.bf16.msra.mxu0 %v2874
    %3445 = vmatprep.subr.bf16.mxu0 %v2867
    %3446 = vmatpush1.bf16.msra.mxu0 %v2866
    %3447 = vmatprep.subr.bf16.mxu0 %v2859
    %3448 = vmatpush1.bf16.msra.mxu0 %v2858
    %3449 = vmatprep.subr.bf16.mxu0 %v2851
    %3450 = vmatpush1.bf16.msra.mxu0 %v2850
    %3451 = vmatprep.subr.bf16.mxu0 %v2843
    %3452 = vmatpush1.bf16.msra.mxu0 %v2842
    %3453 = vmatprep.subr.bf16.mxu0 %v2963
    %3454 = vmatpush2.bf16.msra.mxu0 %v2962
    %3455 = vmatprep.subr.bf16.mxu0 %v2955
    %3456 = vmatpush2.bf16.msra.mxu0 %v2954
    %3457 = vmatprep.subr.bf16.mxu0 %v2947
    %3458 = vmatpush2.bf16.msra.mxu0 %v2946
    %3459 = vmatprep.subr.bf16.mxu0 %v2939
    %3460 = vmatpush2.bf16.msra.mxu0 %v2938
    %3461 = vmatprep.subr.bf16.mxu0 %v2931
    %3462 = vmatpush2.bf16.msra.mxu0 %v2930
    %3463 = vmatprep.subr.bf16.mxu0 %v2923
    %3464 = vmatpush2.bf16.msra.mxu0 %v2922
    %3465 = vmatprep.subr.bf16.mxu0 %v2915
    %3466 = vmatpush2.bf16.msra.mxu0 %v2914
    %3467 = vmatprep.subr.bf16.mxu0 %v2907
    %3468 = vmatpush2.bf16.msra.mxu0 %v2906
    %3469 = vmatprep.mubr.bf16.mxu0 %v1937
    %3470 = vmatmul.mubr.bf16.gmra.mxu0 %v1935
    %v3471 = vpop.f32.mrf.mxu0
    %v3472 = vadd.f32 %v3429, %v3471
    %v3473 = vpop.f32.mrf.mxu0
    %v3474 = vadd.f32 %v3431, %v3473
    %v3475 = vpop.f32.mrf.mxu0
    %v3476 = vadd.f32 %v3433, %v3475
    %v3477 = vpop.f32.mrf.mxu0
    %v3478 = vadd.f32 %v3435, %v3477
    %3479 = vdwg.mxu0
    %3480 = vmatprep.subr.bf16.mxu0 %v2773
    %3481 = vmatpush1.bf16.msra.mxu0 %v2772
    %3482 = vmatprep.subr.bf16.mxu0 %v2765
    %3483 = vmatpush1.bf16.msra.mxu0 %v2764
    %3484 = vmatprep.subr.bf16.mxu0 %v2757
    %3485 = vmatpush1.bf16.msra.mxu0 %v2756
    %3486 = vmatprep.subr.bf16.mxu0 %v2749
    %3487 = vmatpush1.bf16.msra.mxu0 %v2748
    %3488 = vmatprep.subr.bf16.mxu0 %v2741
    %3489 = vmatpush1.bf16.msra.mxu0 %v2740
    %3490 = vmatprep.subr.bf16.mxu0 %v2733
    %3491 = vmatpush1.bf16.msra.mxu0 %v2732
    %3492 = vmatprep.subr.bf16.mxu0 %v2725
    %3493 = vmatpush1.bf16.msra.mxu0 %v2724
    %3494 = vmatprep.subr.bf16.mxu0 %v2717
    %3495 = vmatpush1.bf16.msra.mxu0 %v2716
    %3496 = vmatprep.subr.bf16.mxu0 %v2837
    %3497 = vmatpush2.bf16.msra.mxu0 %v2836
    %3498 = vmatprep.subr.bf16.mxu0 %v2829
    %3499 = vmatpush2.bf16.msra.mxu0 %v2828
    %3500 = vmatprep.subr.bf16.mxu0 %v2821
    %3501 = vmatpush2.bf16.msra.mxu0 %v2820
    %3502 = vmatprep.subr.bf16.mxu0 %v2813
    %3503 = vmatpush2.bf16.msra.mxu0 %v2812
    %3504 = vmatprep.subr.bf16.mxu0 %v2805
    %3505 = vmatpush2.bf16.msra.mxu0 %v2804
    %3506 = vmatprep.subr.bf16.mxu0 %v2797
    %3507 = vmatpush2.bf16.msra.mxu0 %v2796
    %3508 = vmatprep.subr.bf16.mxu0 %v2789
    %3509 = vmatpush2.bf16.msra.mxu0 %v2788
    %3510 = vmatprep.subr.bf16.mxu0 %v2781
    %3511 = vmatpush2.bf16.msra.mxu0 %v2780
    %3512 = vmatprep.mubr.bf16.mxu0 %v1936
    %3513 = vmatmul.mubr.bf16.gmra.mxu0 %v1934
    %v3514 = vpop.f32.mrf.mxu0
    %v3515 = vadd.f32 %v1862, %v3514
    %v3516 = vpop.f32.mrf.mxu0
    %v3517 = vadd.f32 %v1866, %v3516
    %v3518 = vpop.f32.mrf.mxu0
    %v3519 = vadd.f32 %v1862, %v3518
    %v3520 = vpop.f32.mrf.mxu0
    %v3521 = vadd.f32 %v1866, %v3520
    %3522 = vdwg.mxu0
    %3523 = vmatprep.subr.bf16.mxu0 %v2901
    %3524 = vmatpush1.bf16.msra.mxu0 %v2900
    %3525 = vmatprep.subr.bf16.mxu0 %v2893
    %3526 = vmatpush1.bf16.msra.mxu0 %v2892
    %3527 = vmatprep.subr.bf16.mxu0 %v2885
    %3528 = vmatpush1.bf16.msra.mxu0 %v2884
    %3529 = vmatprep.subr.bf16.mxu0 %v2877
    %3530 = vmatpush1.bf16.msra.mxu0 %v2876
    %3531 = vmatprep.subr.bf16.mxu0 %v2869
    %3532 = vmatpush1.bf16.msra.mxu0 %v2868
    %3533 = vmatprep.subr.bf16.mxu0 %v2861
    %3534 = vmatpush1.bf16.msra.mxu0 %v2860
    %3535 = vmatprep.subr.bf16.mxu0 %v2853
    %3536 = vmatpush1.bf16.msra.mxu0 %v2852
    %3537 = vmatprep.subr.bf16.mxu0 %v2845
    %3538 = vmatpush1.bf16.msra.mxu0 %v2844
    %3539 = vmatprep.subr.bf16.mxu0 %v2965
    %3540 = vmatpush2.bf16.msra.mxu0 %v2964
    %3541 = vmatprep.subr.bf16.mxu0 %v2957
    %3542 = vmatpush2.bf16.msra.mxu0 %v2956
    %3543 = vmatprep.subr.bf16.mxu0 %v2949
    %3544 = vmatpush2.bf16.msra.mxu0 %v2948
    %3545 = vmatprep.subr.bf16.mxu0 %v2941
    %3546 = vmatpush2.bf16.msra.mxu0 %v2940
    %3547 = vmatprep.subr.bf16.mxu0 %v2933
    %3548 = vmatpush2.bf16.msra.mxu0 %v2932
    %3549 = vmatprep.subr.bf16.mxu0 %v2925
    %3550 = vmatpush2.bf16.msra.mxu0 %v2924
    %3551 = vmatprep.subr.bf16.mxu0 %v2917
    %3552 = vmatpush2.bf16.msra.mxu0 %v2916
    %3553 = vmatprep.subr.bf16.mxu0 %v2909
    %3554 = vmatpush2.bf16.msra.mxu0 %v2908
    %3555 = vmatprep.mubr.bf16.mxu0 %v1937
    %3556 = vmatmul.mubr.bf16.gmra.mxu0 %v1935
    %v3557 = vpop.f32.mrf.mxu0
    %v3558 = vadd.f32 %v3515, %v3557
    %v3559 = vpop.f32.mrf.mxu0
    %v3560 = vadd.f32 %v3517, %v3559
    %v3561 = vpop.f32.mrf.mxu0
    %v3562 = vadd.f32 %v3519, %v3561
    %v3563 = vpop.f32.mrf.mxu0
    %v3564 = vadd.f32 %v3521, %v3563
    %3565 = vdwg.mxu0
    %v3582 = vcombine.low %v3300, %v3302
    %v3583 = vcombine.high %v3300, %v3302
    %v3584 = vcombine.low %v3386, %v3388
    %v3585 = vcombine.high %v3386, %v3388
    %v3586 = vcombine.low %v3472, %v3474
    %v3587 = vcombine.high %v3472, %v3474
    %v3588 = vcombine.low %v3558, %v3560
    %v3589 = vcombine.high %v3558, %v3560
    %v3591 = vunpack.c.l.s4 1966171168
    %v3592 = vunpack.c.0.s8 %v3591
    %v3593 = vlaneseq
    %v3594 = vshrl.u32 %v3593, 7
    %v3595 = vsub.s32 %v3592, %v3594
    %v3596 = vrot.slane %v3582, %v3595
    %v3598 = vunpack.c.l.s4 1966171168
    %v3599 = vunpack.c.0.s8 %v3598
    %v3600 = vlaneseq
    %v3601 = vshrl.u32 %v3600, 7
    %v3602 = vsub.s32 %v3599, %v3601
    %v3603 = vrot.slane %v3583, %v3602
    %v3605 = vunpack.c.l.s4 1966171168
    %v3606 = vunpack.c.0.s8 %v3605
    %v3607 = vlaneseq
    %v3608 = vshrl.u32 %v3607, 7
    %v3609 = vsub.s32 %v3606, %v3608
    %v3610 = vrot.slane %v3584, %v3609
    %v3612 = vunpack.c.l.s4 1966171168
    %v3613 = vunpack.c.0.s8 %v3612
    %v3614 = vlaneseq
    %v3615 = vshrl.u32 %v3614, 7
    %v3616 = vsub.s32 %v3613, %v3615
    %v3617 = vrot.slane %v3585, %v3616
    %v3619 = vunpack.c.l.s4 1966171168
    %v3620 = vunpack.c.0.s8 %v3619
    %v3621 = vlaneseq
    %v3622 = vshrl.u32 %v3621, 7
    %v3623 = vsub.s32 %v3620, %v3622
    %v3624 = vrot.slane %v3586, %v3623
    %v3626 = vunpack.c.l.s4 1966171168
    %v3627 = vunpack.c.0.s8 %v3626
    %v3628 = vlaneseq
    %v3629 = vshrl.u32 %v3628, 7
    %v3630 = vsub.s32 %v3627, %v3629
    %v3631 = vrot.slane %v3587, %v3630
    %v3633 = vunpack.c.l.s4 1966171168
    %v3634 = vunpack.c.0.s8 %v3633
    %v3635 = vlaneseq
    %v3636 = vshrl.u32 %v3635, 7
    %v3637 = vsub.s32 %v3634, %v3636
    %v3638 = vrot.slane %v3588, %v3637
    %v3640 = vunpack.c.l.s4 1966171168
    %v3641 = vunpack.c.0.s8 %v3640
    %v3642 = vlaneseq
    %v3643 = vshrl.u32 %v3642, 7
    %v3644 = vsub.s32 %v3641, %v3643
    %v3645 = vrot.slane %v3589, %v3644
    %v3646 = vcombine.low %v3596, %v3610
    %v3647 = vcombine.high %v3596, %v3610
    %v3648 = vcombine.low %v3603, %v3617
    %v3649 = vcombine.high %v3603, %v3617
    %v3650 = vcombine.low %v3624, %v3638
    %v3651 = vcombine.high %v3624, %v3638
    %v3652 = vcombine.low %v3631, %v3645
    %v3653 = vcombine.high %v3631, %v3645
    %v3655 = vunpack.c.l.s4 1966171168
    %v3656 = vunpack.c.0.s8 %v3655
    %v3657 = vlaneseq
    %v3658 = vshrl.u32 %v3657, 7
    %v3659 = vsub.s32 %v3656, %v3658
    %v3660 = vrot.slane %v3646, %v3659
    %v3662 = vunpack.c.l.s4 1966171168
    %v3663 = vunpack.c.0.s8 %v3662
    %v3664 = vlaneseq
    %v3665 = vshrl.u32 %v3664, 7
    %v3666 = vsub.s32 %v3663, %v3665
    %v3667 = vrot.slane %v3648, %v3666
    %v3669 = vunpack.c.l.s4 1966171168
    %v3670 = vunpack.c.0.s8 %v3669
    %v3671 = vlaneseq
    %v3672 = vshrl.u32 %v3671, 7
    %v3673 = vsub.s32 %v3670, %v3672
    %v3674 = vrot.slane %v3647, %v3673
    %v3676 = vunpack.c.l.s4 1966171168
    %v3677 = vunpack.c.0.s8 %v3676
    %v3678 = vlaneseq
    %v3679 = vshrl.u32 %v3678, 7
    %v3680 = vsub.s32 %v3677, %v3679
    %v3681 = vrot.slane %v3649, %v3680
    %v3683 = vunpack.c.l.s4 1966171168
    %v3684 = vunpack.c.0.s8 %v3683
    %v3685 = vlaneseq
    %v3686 = vshrl.u32 %v3685, 7
    %v3687 = vsub.s32 %v3684, %v3686
    %v3688 = vrot.slane %v3650, %v3687
    %v3690 = vunpack.c.l.s4 1966171168
    %v3691 = vunpack.c.0.s8 %v3690
    %v3692 = vlaneseq
    %v3693 = vshrl.u32 %v3692, 7
    %v3694 = vsub.s32 %v3691, %v3693
    %v3695 = vrot.slane %v3652, %v3694
    %v3697 = vunpack.c.l.s4 1966171168
    %v3698 = vunpack.c.0.s8 %v3697
    %v3699 = vlaneseq
    %v3700 = vshrl.u32 %v3699, 7
    %v3701 = vsub.s32 %v3698, %v3700
    %v3702 = vrot.slane %v3651, %v3701
    %v3704 = vunpack.c.l.s4 1966171168
    %v3705 = vunpack.c.0.s8 %v3704
    %v3706 = vlaneseq
    %v3707 = vshrl.u32 %v3706, 7
    %v3708 = vsub.s32 %v3705, %v3707
    %v3709 = vrot.slane %v3653, %v3708
    %v3710 = vcombine.low %v3660, %v3688
    %v3711 = vcombine.high %v3660, %v3688
    %v3712 = vcombine.low %v3667, %v3695
    %v3713 = vcombine.high %v3667, %v3695
    %v3714 = vcombine.low %v3674, %v3702
    %v3715 = vcombine.high %v3674, %v3702
    %v3716 = vcombine.low %v3681, %v3709
    %v3717 = vcombine.high %v3681, %v3709
    %v3718 = vcombine.low %v3304, %v3306
    %v3719 = vcombine.low %v3390, %v3392
    %v3720 = vcombine.low %v3476, %v3478
    %v3721 = vcombine.low %v3562, %v3564
    %v3723 = vunpack.c.l.s4 1966171168
    %v3724 = vunpack.c.0.s8 %v3723
    %v3725 = vlaneseq
    %v3726 = vshrl.u32 %v3725, 7
    %v3727 = vsub.s32 %v3724, %v3726
    %v3728 = vrot.slane %v3718, %v3727
    %v3730 = vunpack.c.l.s4 1966171168
    %v3731 = vunpack.c.0.s8 %v3730
    %v3732 = vlaneseq
    %v3733 = vshrl.u32 %v3732, 7
    %v3734 = vsub.s32 %v3731, %v3733
    %v3735 = vrot.slane %v3719, %v3734
    %v3737 = vunpack.c.l.s4 1966171168
    %v3738 = vunpack.c.0.s8 %v3737
    %v3739 = vlaneseq
    %v3740 = vshrl.u32 %v3739, 7
    %v3741 = vsub.s32 %v3738, %v3740
    %v3742 = vrot.slane %v3720, %v3741
    %v3744 = vunpack.c.l.s4 1966171168
    %v3745 = vunpack.c.0.s8 %v3744
    %v3746 = vlaneseq
    %v3747 = vshrl.u32 %v3746, 7
    %v3748 = vsub.s32 %v3745, %v3747
    %v3749 = vrot.slane %v3721, %v3748
    %v3750 = vcombine.low %v3728, %v3735
    %v3751 = vcombine.high %v3728, %v3735
    %v3752 = vcombine.low %v3742, %v3749
    %v3753 = vcombine.high %v3742, %v3749
    %v3755 = vunpack.c.l.s4 1966171168
    %v3756 = vunpack.c.0.s8 %v3755
    %v3757 = vlaneseq
    %v3758 = vshrl.u32 %v3757, 7
    %v3759 = vsub.s32 %v3756, %v3758
    %v3760 = vrot.slane %v3750, %v3759
    %v3762 = vunpack.c.l.s4 1966171168
    %v3763 = vunpack.c.0.s8 %v3762
    %v3764 = vlaneseq
    %v3765 = vshrl.u32 %v3764, 7
    %v3766 = vsub.s32 %v3763, %v3765
    %v3767 = vrot.slane %v3751, %v3766
    %v3769 = vunpack.c.l.s4 1966171168
    %v3770 = vunpack.c.0.s8 %v3769
    %v3771 = vlaneseq
    %v3772 = vshrl.u32 %v3771, 7
    %v3773 = vsub.s32 %v3770, %v3772
    %v3774 = vrot.slane %v3752, %v3773
    %v3776 = vunpack.c.l.s4 1966171168
    %v3777 = vunpack.c.0.s8 %v3776
    %v3778 = vlaneseq
    %v3779 = vshrl.u32 %v3778, 7
    %v3780 = vsub.s32 %v3777, %v3779
    %v3781 = vrot.slane %v3753, %v3780
    %v3782 = vcombine.low %v3760, %v3774
    %v3783 = vcombine.low %v3767, %v3781
    %v3794 = vld [vmem:[#allocation6] sm:$0xff]
    %v3795 = vld [vmem:[#allocation6 + $0x8] sm:$0xff]
    %v3796 = vld [vmem:[#allocation6 + $0x10] sm:$0xff]
    %v3797 = vld [vmem:[#allocation6 + $0x18] sm:$0xff]
    %v3798 = vld [vmem:[#allocation6 + $0x20] sm:$0xff]
    %v3799 = vld [vmem:[#allocation6 + $0x28] sm:$0xff]
    %v3800 = vld [vmem:[#allocation6 + $0x30] sm:$0xff]
    %v3801 = vld [vmem:[#allocation6 + $0x38] sm:$0xff]
    %v3802 = vld [vmem:[#allocation6 + $0x40] sm:$0xff]
    %v3803 = vld [vmem:[#allocation6 + $0x48] sm:$0xff]
    %v3804 = vld [vmem:[#allocation6 + $0x50] sm:$0xff]
    %v3805 = vld [vmem:[#allocation6 + $0x58] sm:$0xff]
    %v3806 = vld [vmem:[#allocation6 + $0x60] sm:$0xff]
    %v3807 = vld [vmem:[#allocation6 + $0x68] sm:$0xff]
    %v3808 = vld [vmem:[#allocation6 + $0x70] sm:$0xff]
    %v3809 = vld [vmem:[#allocation6 + $0x78] sm:$0xff]
    %v3810 = vld [vmem:[#allocation6 + $0x80] sm:$0xff]
    %v3811 = vld [vmem:[#allocation6 + $0x88] sm:$0xff]
    %v3812 = vld [vmem:[#allocation6 + $0x90] sm:$0xff]
    %v3813 = vld [vmem:[#allocation6 + $0x98] sm:$0xff]
    %v3814 = vld [vmem:[#allocation6 + $0xa0] sm:$0xff]
    %v3815 = vld [vmem:[#allocation6 + $0xa8] sm:$0xff]
    %v3816 = vld [vmem:[#allocation6 + $0xb0] sm:$0xff]
    %v3817 = vld [vmem:[#allocation6 + $0xb8] sm:$0xff]
    %v3818 = vld [vmem:[#allocation6 + $0xc0] sm:$0xff]
    %v3819 = vld [vmem:[#allocation6 + $0xc8] sm:$0xff]
    %v3820 = vld [vmem:[#allocation6 + $0xd0] sm:$0xff]
    %v3821 = vld [vmem:[#allocation6 + $0xd8] sm:$0xff]
    %v3822 = vld [vmem:[#allocation6 + $0xe0] sm:$0xff]
    %v3823 = vld [vmem:[#allocation6 + $0xe8] sm:$0xff]
    %v3824 = vld [vmem:[#allocation6 + $0xf0] sm:$0xff]
    %v3825 = vld [vmem:[#allocation6 + $0xf8] sm:$0xff]
    %v3826 = vld [vmem:[#allocation6 + $0x100] sm:$0xff]
    %v3827 = vld [vmem:[#allocation6 + $0x108] sm:$0xff]
    %v3828 = vld [vmem:[#allocation6 + $0x110] sm:$0xff]
    %v3829 = vld [vmem:[#allocation6 + $0x118] sm:$0xff]
    %v3830 = vld [vmem:[#allocation6 + $0x120] sm:$0xff]
    %v3831 = vld [vmem:[#allocation6 + $0x128] sm:$0xff]
    %v3832 = vld [vmem:[#allocation6 + $0x130] sm:$0xff]
    %v3833 = vld [vmem:[#allocation6 + $0x138] sm:$0xff]
    %v3834 = vld [vmem:[#allocation6 + $0x140] sm:$0xff]
    %v3835 = vld [vmem:[#allocation6 + $0x148] sm:$0xff]
    %v3836 = vld [vmem:[#allocation6 + $0x150] sm:$0xff]
    %v3837 = vld [vmem:[#allocation6 + $0x158] sm:$0xff]
    %v3838 = vld [vmem:[#allocation6 + $0x160] sm:$0xff]
    %v3839 = vld [vmem:[#allocation6 + $0x168] sm:$0xff]
    %v3840 = vld [vmem:[#allocation6 + $0x170] sm:$0xff]
    %v3841 = vld [vmem:[#allocation6 + $0x178] sm:$0xff]
    %v3842 = vld [vmem:[#allocation6 + $0x180] sm:$0xff]
    %v3843 = vld [vmem:[#allocation6 + $0x188] sm:$0xff]
    %v3844 = vld [vmem:[#allocation6 + $0x190] sm:$0xff]
    %v3845 = vld [vmem:[#allocation6 + $0x198] sm:$0xff]
    %v3846 = vld [vmem:[#allocation6 + $0x1a0] sm:$0xff]
    %v3847 = vld [vmem:[#allocation6 + $0x1a8] sm:$0xff]
    %v3848 = vld [vmem:[#allocation6 + $0x1b0] sm:$0xff]
    %v3849 = vld [vmem:[#allocation6 + $0x1b8] sm:$0xff]
    %v3850 = vld [vmem:[#allocation6 + $0x1c0] sm:$0xff]
    %v3851 = vld [vmem:[#allocation6 + $0x1c8] sm:$0xff]
    %v3852 = vld [vmem:[#allocation6 + $0x1d0] sm:$0xff]
    %v3853 = vld [vmem:[#allocation6 + $0x1d8] sm:$0xff]
    %v3854 = vld [vmem:[#allocation6 + $0x1e0] sm:$0xff]
    %v3855 = vld [vmem:[#allocation6 + $0x1e8] sm:$0xff]
    %v3856 = vld [vmem:[#allocation6 + $0x1f0] sm:$0xff]
    %v3857 = vld [vmem:[#allocation6 + $0x1f8] sm:$0xff]
    %v3858 = vld [vmem:[#allocation6 + $0x200] sm:$0xff]
    %v3859 = vld [vmem:[#allocation6 + $0x208] sm:$0xff]
    %v3860 = vld [vmem:[#allocation6 + $0x210] sm:$0xff]
    %v3861 = vld [vmem:[#allocation6 + $0x218] sm:$0xff]
    %v3862 = vld [vmem:[#allocation6 + $0x220] sm:$0xff]
    %v3863 = vld [vmem:[#allocation6 + $0x228] sm:$0xff]
    %v3864 = vld [vmem:[#allocation6 + $0x230] sm:$0xff]
    %v3865 = vld [vmem:[#allocation6 + $0x238] sm:$0xff]
    %v3866 = vld [vmem:[#allocation6 + $0x240] sm:$0xff]
    %v3867 = vld [vmem:[#allocation6 + $0x248] sm:$0xff]
    %v3868 = vld [vmem:[#allocation6 + $0x250] sm:$0xff]
    %v3869 = vld [vmem:[#allocation6 + $0x258] sm:$0xff]
    %v3870 = vld [vmem:[#allocation6 + $0x260] sm:$0xff]
    %v3871 = vld [vmem:[#allocation6 + $0x268] sm:$0xff]
    %v3872 = vld [vmem:[#allocation6 + $0x270] sm:$0xff]
    %v3873 = vld [vmem:[#allocation6 + $0x278] sm:$0xff]
    %v3874 = vld [vmem:[#allocation6 + $0x280] sm:$0xff]
    %v3875 = vld [vmem:[#allocation6 + $0x288] sm:$0xff]
    %v3876 = vld [vmem:[#allocation6 + $0x290] sm:$0xff]
    %v3877 = vld [vmem:[#allocation6 + $0x298] sm:$0xff]
    %v3878 = vld [vmem:[#allocation6 + $0x2a0] sm:$0xff]
    %v3879 = vld [vmem:[#allocation6 + $0x2a8] sm:$0xff]
    %v3880 = vld [vmem:[#allocation6 + $0x2b0] sm:$0xff]
    %v3881 = vld [vmem:[#allocation6 + $0x2b8] sm:$0xff]
    %v3882 = vld [vmem:[#allocation6 + $0x2c0] sm:$0xff]
    %v3883 = vld [vmem:[#allocation6 + $0x2c8] sm:$0xff]
    %v3884 = vld [vmem:[#allocation6 + $0x2d0] sm:$0xff]
    %v3885 = vld [vmem:[#allocation6 + $0x2d8] sm:$0xff]
    %v3886 = vld [vmem:[#allocation6 + $0x2e0] sm:$0xff]
    %v3887 = vld [vmem:[#allocation6 + $0x2e8] sm:$0xff]
    %v3888 = vld [vmem:[#allocation6 + $0x2f0] sm:$0xff]
    %v3889 = vld [vmem:[#allocation6 + $0x2f8] sm:$0xff]
    %v3890 = vld [vmem:[#allocation6 + $0x300] sm:$0xff]
    %v3891 = vld [vmem:[#allocation6 + $0x308] sm:$0xff]
    %v3892 = vld [vmem:[#allocation6 + $0x310] sm:$0xff]
    %v3893 = vld [vmem:[#allocation6 + $0x318] sm:$0xff]
    %v3894 = vld [vmem:[#allocation6 + $0x320] sm:$0xff]
    %v3895 = vld [vmem:[#allocation6 + $0x328] sm:$0xff]
    %v3896 = vld [vmem:[#allocation6 + $0x330] sm:$0xff]
    %v3897 = vld [vmem:[#allocation6 + $0x338] sm:$0xff]
    %v3898 = vld [vmem:[#allocation6 + $0x340] sm:$0xff]
    %v3899 = vld [vmem:[#allocation6 + $0x348] sm:$0xff]
    %v3900 = vld [vmem:[#allocation6 + $0x350] sm:$0xff]
    %v3901 = vld [vmem:[#allocation6 + $0x358] sm:$0xff]
    %v3902 = vld [vmem:[#allocation6 + $0x360] sm:$0xff]
    %v3903 = vld [vmem:[#allocation6 + $0x368] sm:$0xff]
    %v3904 = vld [vmem:[#allocation6 + $0x370] sm:$0xff]
    %v3905 = vld [vmem:[#allocation6 + $0x378] sm:$0xff]
    %v3906 = vld [vmem:[#allocation6 + $0x380] sm:$0xff]
    %v3907 = vld [vmem:[#allocation6 + $0x388] sm:$0xff]
    %v3908 = vld [vmem:[#allocation6 + $0x390] sm:$0xff]
    %v3909 = vld [vmem:[#allocation6 + $0x398] sm:$0xff]
    %v3910 = vld [vmem:[#allocation6 + $0x3a0] sm:$0xff]
    %v3911 = vld [vmem:[#allocation6 + $0x3a8] sm:$0xff]
    %v3912 = vld [vmem:[#allocation6 + $0x3b0] sm:$0xff]
    %v3913 = vld [vmem:[#allocation6 + $0x3b8] sm:$0xff]
    %v3914 = vld [vmem:[#allocation6 + $0x3c0] sm:$0xff]
    %v3915 = vld [vmem:[#allocation6 + $0x3c8] sm:$0xff]
    %v3916 = vld [vmem:[#allocation6 + $0x3d0] sm:$0xff]
    %v3917 = vld [vmem:[#allocation6 + $0x3d8] sm:$0xff]
    %v3918 = vld [vmem:[#allocation6 + $0x3e0] sm:$0xff]
    %v3919 = vld [vmem:[#allocation6 + $0x3e8] sm:$0xff]
    %v3920 = vld [vmem:[#allocation6 + $0x3f0] sm:$0xff]
    %v3921 = vld [vmem:[#allocation6 + $0x3f8] sm:$0xff]
    %v3922 = vld [vmem:[%s8] sm:$0x1f]
    %v3923 = vld [vmem:[%s8 + $0x8] sm:$0x1f]
    %v4052 = vunpack.c.l.b16 %v3794
    %v4053 = vunpack.c.h.b16 %v3794
    %v4054 = vunpack.c.l.b16 %v3795
    %v4055 = vunpack.c.h.b16 %v3795
    %v4056 = vunpack.c.l.b16 %v3796
    %v4057 = vunpack.c.h.b16 %v3796
    %v4058 = vunpack.c.l.b16 %v3797
    %v4059 = vunpack.c.h.b16 %v3797
    %v4060 = vunpack.c.l.b16 %v3798
    %v4061 = vunpack.c.h.b16 %v3798
    %v4062 = vunpack.c.l.b16 %v3799
    %v4063 = vunpack.c.h.b16 %v3799
    %v4064 = vunpack.c.l.b16 %v3800
    %v4065 = vunpack.c.h.b16 %v3800
    %v4066 = vunpack.c.l.b16 %v3801
    %v4067 = vunpack.c.h.b16 %v3801
    %v4068 = vunpack.c.l.b16 %v3802
    %v4069 = vunpack.c.h.b16 %v3802
    %v4070 = vunpack.c.l.b16 %v3803
    %v4071 = vunpack.c.h.b16 %v3803
    %v4072 = vunpack.c.l.b16 %v3804
    %v4073 = vunpack.c.h.b16 %v3804
    %v4074 = vunpack.c.l.b16 %v3805
    %v4075 = vunpack.c.h.b16 %v3805
    %v4076 = vunpack.c.l.b16 %v3806
    %v4077 = vunpack.c.h.b16 %v3806
    %v4078 = vunpack.c.l.b16 %v3807
    %v4079 = vunpack.c.h.b16 %v3807
    %v4080 = vunpack.c.l.b16 %v3808
    %v4081 = vunpack.c.h.b16 %v3808
    %v4082 = vunpack.c.l.b16 %v3809
    %v4083 = vunpack.c.h.b16 %v3809
    %v4084 = vunpack.c.l.b16 %v3810
    %v4085 = vunpack.c.h.b16 %v3810
    %v4086 = vunpack.c.l.b16 %v3811
    %v4087 = vunpack.c.h.b16 %v3811
    %v4088 = vunpack.c.l.b16 %v3812
    %v4089 = vunpack.c.h.b16 %v3812
    %v4090 = vunpack.c.l.b16 %v3813
    %v4091 = vunpack.c.h.b16 %v3813
    %v4092 = vunpack.c.l.b16 %v3814
    %v4093 = vunpack.c.h.b16 %v3814
    %v4094 = vunpack.c.l.b16 %v3815
    %v4095 = vunpack.c.h.b16 %v3815
    %v4096 = vunpack.c.l.b16 %v3816
    %v4097 = vunpack.c.h.b16 %v3816
    %v4098 = vunpack.c.l.b16 %v3817
    %v4099 = vunpack.c.h.b16 %v3817
    %v4100 = vunpack.c.l.b16 %v3818
    %v4101 = vunpack.c.h.b16 %v3818
    %v4102 = vunpack.c.l.b16 %v3819
    %v4103 = vunpack.c.h.b16 %v3819
    %v4104 = vunpack.c.l.b16 %v3820
    %v4105 = vunpack.c.h.b16 %v3820
    %v4106 = vunpack.c.l.b16 %v3821
    %v4107 = vunpack.c.h.b16 %v3821
    %v4108 = vunpack.c.l.b16 %v3822
    %v4109 = vunpack.c.h.b16 %v3822
    %v4110 = vunpack.c.l.b16 %v3823
    %v4111 = vunpack.c.h.b16 %v3823
    %v4112 = vunpack.c.l.b16 %v3824
    %v4113 = vunpack.c.h.b16 %v3824
    %v4114 = vunpack.c.l.b16 %v3825
    %v4115 = vunpack.c.h.b16 %v3825
    %v4116 = vunpack.c.l.b16 %v3826
    %v4117 = vunpack.c.h.b16 %v3826
    %v4118 = vunpack.c.l.b16 %v3827
    %v4119 = vunpack.c.h.b16 %v3827
    %v4120 = vunpack.c.l.b16 %v3828
    %v4121 = vunpack.c.h.b16 %v3828
    %v4122 = vunpack.c.l.b16 %v3829
    %v4123 = vunpack.c.h.b16 %v3829
    %v4124 = vunpack.c.l.b16 %v3830
    %v4125 = vunpack.c.h.b16 %v3830
    %v4126 = vunpack.c.l.b16 %v3831
    %v4127 = vunpack.c.h.b16 %v3831
    %v4128 = vunpack.c.l.b16 %v3832
    %v4129 = vunpack.c.h.b16 %v3832
    %v4130 = vunpack.c.l.b16 %v3833
    %v4131 = vunpack.c.h.b16 %v3833
    %v4132 = vunpack.c.l.b16 %v3834
    %v4133 = vunpack.c.h.b16 %v3834
    %v4134 = vunpack.c.l.b16 %v3835
    %v4135 = vunpack.c.h.b16 %v3835
    %v4136 = vunpack.c.l.b16 %v3836
    %v4137 = vunpack.c.h.b16 %v3836
    %v4138 = vunpack.c.l.b16 %v3837
    %v4139 = vunpack.c.h.b16 %v3837
    %v4140 = vunpack.c.l.b16 %v3838
    %v4141 = vunpack.c.h.b16 %v3838
    %v4142 = vunpack.c.l.b16 %v3839
    %v4143 = vunpack.c.h.b16 %v3839
    %v4144 = vunpack.c.l.b16 %v3840
    %v4145 = vunpack.c.h.b16 %v3840
    %v4146 = vunpack.c.l.b16 %v3841
    %v4147 = vunpack.c.h.b16 %v3841
    %v4148 = vunpack.c.l.b16 %v3842
    %v4149 = vunpack.c.h.b16 %v3842
    %v4150 = vunpack.c.l.b16 %v3843
    %v4151 = vunpack.c.h.b16 %v3843
    %v4152 = vunpack.c.l.b16 %v3844
    %v4153 = vunpack.c.h.b16 %v3844
    %v4154 = vunpack.c.l.b16 %v3845
    %v4155 = vunpack.c.h.b16 %v3845
    %v4156 = vunpack.c.l.b16 %v3846
    %v4157 = vunpack.c.h.b16 %v3846
    %v4158 = vunpack.c.l.b16 %v3847
    %v4159 = vunpack.c.h.b16 %v3847
    %v4160 = vunpack.c.l.b16 %v3848
    %v4161 = vunpack.c.h.b16 %v3848
    %v4162 = vunpack.c.l.b16 %v3849
    %v4163 = vunpack.c.h.b16 %v3849
    %v4164 = vunpack.c.l.b16 %v3850
    %v4165 = vunpack.c.h.b16 %v3850
    %v4166 = vunpack.c.l.b16 %v3851
    %v4167 = vunpack.c.h.b16 %v3851
    %v4168 = vunpack.c.l.b16 %v3852
    %v4169 = vunpack.c.h.b16 %v3852
    %v4170 = vunpack.c.l.b16 %v3853
    %v4171 = vunpack.c.h.b16 %v3853
    %v4172 = vunpack.c.l.b16 %v3854
    %v4173 = vunpack.c.h.b16 %v3854
    %v4174 = vunpack.c.l.b16 %v3855
    %v4175 = vunpack.c.h.b16 %v3855
    %v4176 = vunpack.c.l.b16 %v3856
    %v4177 = vunpack.c.h.b16 %v3856
    %v4178 = vunpack.c.l.b16 %v3857
    %v4179 = vunpack.c.h.b16 %v3857
    %v4180 = vunpack.c.l.b16 %v3858
    %v4181 = vunpack.c.h.b16 %v3858
    %v4182 = vunpack.c.l.b16 %v3859
    %v4183 = vunpack.c.h.b16 %v3859
    %v4184 = vunpack.c.l.b16 %v3860
    %v4185 = vunpack.c.h.b16 %v3860
    %v4186 = vunpack.c.l.b16 %v3861
    %v4187 = vunpack.c.h.b16 %v3861
    %v4188 = vunpack.c.l.b16 %v3862
    %v4189 = vunpack.c.h.b16 %v3862
    %v4190 = vunpack.c.l.b16 %v3863
    %v4191 = vunpack.c.h.b16 %v3863
    %v4192 = vunpack.c.l.b16 %v3864
    %v4193 = vunpack.c.h.b16 %v3864
    %v4194 = vunpack.c.l.b16 %v3865
    %v4195 = vunpack.c.h.b16 %v3865
    %v4196 = vunpack.c.l.b16 %v3866
    %v4197 = vunpack.c.h.b16 %v3866
    %v4198 = vunpack.c.l.b16 %v3867
    %v4199 = vunpack.c.h.b16 %v3867
    %v4200 = vunpack.c.l.b16 %v3868
    %v4201 = vunpack.c.h.b16 %v3868
    %v4202 = vunpack.c.l.b16 %v3869
    %v4203 = vunpack.c.h.b16 %v3869
    %v4204 = vunpack.c.l.b16 %v3870
    %v4205 = vunpack.c.h.b16 %v3870
    %v4206 = vunpack.c.l.b16 %v3871
    %v4207 = vunpack.c.h.b16 %v3871
    %v4208 = vunpack.c.l.b16 %v3872
    %v4209 = vunpack.c.h.b16 %v3872
    %v4210 = vunpack.c.l.b16 %v3873
    %v4211 = vunpack.c.h.b16 %v3873
    %v4212 = vunpack.c.l.b16 %v3874
    %v4213 = vunpack.c.h.b16 %v3874
    %v4214 = vunpack.c.l.b16 %v3875
    %v4215 = vunpack.c.h.b16 %v3875
    %v4216 = vunpack.c.l.b16 %v3876
    %v4217 = vunpack.c.h.b16 %v3876
    %v4218 = vunpack.c.l.b16 %v3877
    %v4219 = vunpack.c.h.b16 %v3877
    %v4220 = vunpack.c.l.b16 %v3878
    %v4221 = vunpack.c.h.b16 %v3878
    %v4222 = vunpack.c.l.b16 %v3879
    %v4223 = vunpack.c.h.b16 %v3879
    %v4224 = vunpack.c.l.b16 %v3880
    %v4225 = vunpack.c.h.b16 %v3880
    %v4226 = vunpack.c.l.b16 %v3881
    %v4227 = vunpack.c.h.b16 %v3881
    %v4228 = vunpack.c.l.b16 %v3882
    %v4229 = vunpack.c.h.b16 %v3882
    %v4230 = vunpack.c.l.b16 %v3883
    %v4231 = vunpack.c.h.b16 %v3883
    %v4232 = vunpack.c.l.b16 %v3884
    %v4233 = vunpack.c.h.b16 %v3884
    %v4234 = vunpack.c.l.b16 %v3885
    %v4235 = vunpack.c.h.b16 %v3885
    %v4236 = vunpack.c.l.b16 %v3886
    %v4237 = vunpack.c.h.b16 %v3886
    %v4238 = vunpack.c.l.b16 %v3887
    %v4239 = vunpack.c.h.b16 %v3887
    %v4240 = vunpack.c.l.b16 %v3888
    %v4241 = vunpack.c.h.b16 %v3888
    %v4242 = vunpack.c.l.b16 %v3889
    %v4243 = vunpack.c.h.b16 %v3889
    %v4244 = vunpack.c.l.b16 %v3890
    %v4245 = vunpack.c.h.b16 %v3890
    %v4246 = vunpack.c.l.b16 %v3891
    %v4247 = vunpack.c.h.b16 %v3891
    %v4248 = vunpack.c.l.b16 %v3892
    %v4249 = vunpack.c.h.b16 %v3892
    %v4250 = vunpack.c.l.b16 %v3893
    %v4251 = vunpack.c.h.b16 %v3893
    %v4252 = vunpack.c.l.b16 %v3894
    %v4253 = vunpack.c.h.b16 %v3894
    %v4254 = vunpack.c.l.b16 %v3895
    %v4255 = vunpack.c.h.b16 %v3895
    %v4256 = vunpack.c.l.b16 %v3896
    %v4257 = vunpack.c.h.b16 %v3896
    %v4258 = vunpack.c.l.b16 %v3897
    %v4259 = vunpack.c.h.b16 %v3897
    %v4260 = vunpack.c.l.b16 %v3898
    %v4261 = vunpack.c.h.b16 %v3898
    %v4262 = vunpack.c.l.b16 %v3899
    %v4263 = vunpack.c.h.b16 %v3899
    %v4264 = vunpack.c.l.b16 %v3900
    %v4265 = vunpack.c.h.b16 %v3900
    %v4266 = vunpack.c.l.b16 %v3901
    %v4267 = vunpack.c.h.b16 %v3901
    %v4268 = vunpack.c.l.b16 %v3902
    %v4269 = vunpack.c.h.b16 %v3902
    %v4270 = vunpack.c.l.b16 %v3903
    %v4271 = vunpack.c.h.b16 %v3903
    %v4272 = vunpack.c.l.b16 %v3904
    %v4273 = vunpack.c.h.b16 %v3904
    %v4274 = vunpack.c.l.b16 %v3905
    %v4275 = vunpack.c.h.b16 %v3905
    %v4276 = vunpack.c.l.b16 %v3906
    %v4277 = vunpack.c.h.b16 %v3906
    %v4278 = vunpack.c.l.b16 %v3907
    %v4279 = vunpack.c.h.b16 %v3907
    %v4280 = vunpack.c.l.b16 %v3908
    %v4281 = vunpack.c.h.b16 %v3908
    %v4282 = vunpack.c.l.b16 %v3909
    %v4283 = vunpack.c.h.b16 %v3909
    %v4284 = vunpack.c.l.b16 %v3910
    %v4285 = vunpack.c.h.b16 %v3910
    %v4286 = vunpack.c.l.b16 %v3911
    %v4287 = vunpack.c.h.b16 %v3911
    %v4288 = vunpack.c.l.b16 %v3912
    %v4289 = vunpack.c.h.b16 %v3912
    %v4290 = vunpack.c.l.b16 %v3913
    %v4291 = vunpack.c.h.b16 %v3913
    %v4292 = vunpack.c.l.b16 %v3914
    %v4293 = vunpack.c.h.b16 %v3914
    %v4294 = vunpack.c.l.b16 %v3915
    %v4295 = vunpack.c.h.b16 %v3915
    %v4296 = vunpack.c.l.b16 %v3916
    %v4297 = vunpack.c.h.b16 %v3916
    %v4298 = vunpack.c.l.b16 %v3917
    %v4299 = vunpack.c.h.b16 %v3917
    %v4300 = vunpack.c.l.b16 %v3918
    %v4301 = vunpack.c.h.b16 %v3918
    %v4302 = vunpack.c.l.b16 %v3919
    %v4303 = vunpack.c.h.b16 %v3919
    %v4304 = vunpack.c.l.b16 %v3920
    %v4305 = vunpack.c.h.b16 %v3920
    %v4306 = vunpack.c.l.b16 %v3921
    %v4307 = vunpack.c.h.b16 %v3921
    %v4308 = vpack.c.b16 %v4060, %v4052
    %v4309 = vpack.c.b16 %v4061, %v4053
    %v4310 = vpack.c.b16 %v4062, %v4054
    %v4311 = vpack.c.b16 %v4063, %v4055
    %v4312 = vpack.c.b16 %v4064, %v4056
    %v4313 = vpack.c.b16 %v4065, %v4057
    %v4314 = vpack.c.b16 %v4066, %v4058
    %v4315 = vpack.c.b16 %v4067, %v4059
    %v4316 = vpack.c.b16 %v4076, %v4068
    %v4317 = vpack.c.b16 %v4077, %v4069
    %v4318 = vpack.c.b16 %v4078, %v4070
    %v4319 = vpack.c.b16 %v4079, %v4071
    %v4320 = vpack.c.b16 %v4080, %v4072
    %v4321 = vpack.c.b16 %v4081, %v4073
    %v4322 = vpack.c.b16 %v4082, %v4074
    %v4323 = vpack.c.b16 %v4083, %v4075
    %v4324 = vpack.c.b16 %v4092, %v4084
    %v4325 = vpack.c.b16 %v4093, %v4085
    %v4326 = vpack.c.b16 %v4094, %v4086
    %v4327 = vpack.c.b16 %v4095, %v4087
    %v4328 = vpack.c.b16 %v4096, %v4088
    %v4329 = vpack.c.b16 %v4097, %v4089
    %v4330 = vpack.c.b16 %v4098, %v4090
    %v4331 = vpack.c.b16 %v4099, %v4091
    %v4332 = vpack.c.b16 %v4108, %v4100
    %v4333 = vpack.c.b16 %v4109, %v4101
    %v4334 = vpack.c.b16 %v4110, %v4102
    %v4335 = vpack.c.b16 %v4111, %v4103
    %v4336 = vpack.c.b16 %v4112, %v4104
    %v4337 = vpack.c.b16 %v4113, %v4105
    %v4338 = vpack.c.b16 %v4114, %v4106
    %v4339 = vpack.c.b16 %v4115, %v4107
    %v4340 = vpack.c.b16 %v4124, %v4116
    %v4341 = vpack.c.b16 %v4125, %v4117
    %v4342 = vpack.c.b16 %v4126, %v4118
    %v4343 = vpack.c.b16 %v4127, %v4119
    %v4344 = vpack.c.b16 %v4128, %v4120
    %v4345 = vpack.c.b16 %v4129, %v4121
    %v4346 = vpack.c.b16 %v4130, %v4122
    %v4347 = vpack.c.b16 %v4131, %v4123
    %v4348 = vpack.c.b16 %v4140, %v4132
    %v4349 = vpack.c.b16 %v4141, %v4133
    %v4350 = vpack.c.b16 %v4142, %v4134
    %v4351 = vpack.c.b16 %v4143, %v4135
    %v4352 = vpack.c.b16 %v4144, %v4136
    %v4353 = vpack.c.b16 %v4145, %v4137
    %v4354 = vpack.c.b16 %v4146, %v4138
    %v4355 = vpack.c.b16 %v4147, %v4139
    %v4356 = vpack.c.b16 %v4156, %v4148
    %v4357 = vpack.c.b16 %v4157, %v4149
    %v4358 = vpack.c.b16 %v4158, %v4150
    %v4359 = vpack.c.b16 %v4159, %v4151
    %v4360 = vpack.c.b16 %v4160, %v4152
    %v4361 = vpack.c.b16 %v4161, %v4153
    %v4362 = vpack.c.b16 %v4162, %v4154
    %v4363 = vpack.c.b16 %v4163, %v4155
    %v4364 = vpack.c.b16 %v4172, %v4164
    %v4365 = vpack.c.b16 %v4173, %v4165
    %v4366 = vpack.c.b16 %v4174, %v4166
    %v4367 = vpack.c.b16 %v4175, %v4167
    %v4368 = vpack.c.b16 %v4176, %v4168
    %v4369 = vpack.c.b16 %v4177, %v4169
    %v4370 = vpack.c.b16 %v4178, %v4170
    %v4371 = vpack.c.b16 %v4179, %v4171
    %v4372 = vpack.c.b16 %v4188, %v4180
    %v4373 = vpack.c.b16 %v4189, %v4181
    %v4374 = vpack.c.b16 %v4190, %v4182
    %v4375 = vpack.c.b16 %v4191, %v4183
    %v4376 = vpack.c.b16 %v4192, %v4184
    %v4377 = vpack.c.b16 %v4193, %v4185
    %v4378 = vpack.c.b16 %v4194, %v4186
    %v4379 = vpack.c.b16 %v4195, %v4187
    %v4380 = vpack.c.b16 %v4204, %v4196
    %v4381 = vpack.c.b16 %v4205, %v4197
    %v4382 = vpack.c.b16 %v4206, %v4198
    %v4383 = vpack.c.b16 %v4207, %v4199
    %v4384 = vpack.c.b16 %v4208, %v4200
    %v4385 = vpack.c.b16 %v4209, %v4201
    %v4386 = vpack.c.b16 %v4210, %v4202
    %v4387 = vpack.c.b16 %v4211, %v4203
    %v4388 = vpack.c.b16 %v4220, %v4212
    %v4389 = vpack.c.b16 %v4221, %v4213
    %v4390 = vpack.c.b16 %v4222, %v4214
    %v4391 = vpack.c.b16 %v4223, %v4215
    %v4392 = vpack.c.b16 %v4224, %v4216
    %v4393 = vpack.c.b16 %v4225, %v4217
    %v4394 = vpack.c.b16 %v4226, %v4218
    %v4395 = vpack.c.b16 %v4227, %v4219
    %v4396 = vpack.c.b16 %v4236, %v4228
    %v4397 = vpack.c.b16 %v4237, %v4229
    %v4398 = vpack.c.b16 %v4238, %v4230
    %v4399 = vpack.c.b16 %v4239, %v4231
    %v4400 = vpack.c.b16 %v4240, %v4232
    %v4401 = vpack.c.b16 %v4241, %v4233
    %v4402 = vpack.c.b16 %v4242, %v4234
    %v4403 = vpack.c.b16 %v4243, %v4235
    %v4404 = vpack.c.b16 %v4252, %v4244
    %v4405 = vpack.c.b16 %v4253, %v4245
    %v4406 = vpack.c.b16 %v4254, %v4246
    %v4407 = vpack.c.b16 %v4255, %v4247
    %v4408 = vpack.c.b16 %v4256, %v4248
    %v4409 = vpack.c.b16 %v4257, %v4249
    %v4410 = vpack.c.b16 %v4258, %v4250
    %v4411 = vpack.c.b16 %v4259, %v4251
    %v4412 = vpack.c.b16 %v4268, %v4260
    %v4413 = vpack.c.b16 %v4269, %v4261
    %v4414 = vpack.c.b16 %v4270, %v4262
    %v4415 = vpack.c.b16 %v4271, %v4263
    %v4416 = vpack.c.b16 %v4272, %v4264
    %v4417 = vpack.c.b16 %v4273, %v4265
    %v4418 = vpack.c.b16 %v4274, %v4266
    %v4419 = vpack.c.b16 %v4275, %v4267
    %v4420 = vpack.c.b16 %v4284, %v4276
    %v4421 = vpack.c.b16 %v4285, %v4277
    %v4422 = vpack.c.b16 %v4286, %v4278
    %v4423 = vpack.c.b16 %v4287, %v4279
    %v4424 = vpack.c.b16 %v4288, %v4280
    %v4425 = vpack.c.b16 %v4289, %v4281
    %v4426 = vpack.c.b16 %v4290, %v4282
    %v4427 = vpack.c.b16 %v4291, %v4283
    %v4428 = vpack.c.b16 %v4300, %v4292
    %v4429 = vpack.c.b16 %v4301, %v4293
    %v4430 = vpack.c.b16 %v4302, %v4294
    %v4431 = vpack.c.b16 %v4303, %v4295
    %v4432 = vpack.c.b16 %v4304, %v4296
    %v4433 = vpack.c.b16 %v4305, %v4297
    %v4434 = vpack.c.b16 %v4306, %v4298
    %v4435 = vpack.c.b16 %v4307, %v4299
    %4564 = vmatprep.subr.bf16.mxu0 %v4365
    %4565 = vmatpush1.bf16.msra.mxu0 %v4364
    %4566 = vmatprep.subr.bf16.mxu0 %v4357
    %4567 = vmatpush1.bf16.msra.mxu0 %v4356
    %4568 = vmatprep.subr.bf16.mxu0 %v4349
    %4569 = vmatpush1.bf16.msra.mxu0 %v4348
    %4570 = vmatprep.subr.bf16.mxu0 %v4341
    %4571 = vmatpush1.bf16.msra.mxu0 %v4340
    %4572 = vmatprep.subr.bf16.mxu0 %v4333
    %4573 = vmatpush1.bf16.msra.mxu0 %v4332
    %4574 = vmatprep.subr.bf16.mxu0 %v4325
    %4575 = vmatpush1.bf16.msra.mxu0 %v4324
    %4576 = vmatprep.subr.bf16.mxu0 %v4317
    %4577 = vmatpush1.bf16.msra.mxu0 %v4316
    %4578 = vmatprep.subr.bf16.mxu0 %v4309
    %4579 = vmatpush1.bf16.msra.mxu0 %v4308
    %4580 = vmatprep.subr.bf16.mxu0 %v4429
    %4581 = vmatpush2.bf16.msra.mxu0 %v4428
    %4582 = vmatprep.subr.bf16.mxu0 %v4421
    %4583 = vmatpush2.bf16.msra.mxu0 %v4420
    %4584 = vmatprep.subr.bf16.mxu0 %v4413
    %4585 = vmatpush2.bf16.msra.mxu0 %v4412
    %4586 = vmatprep.subr.bf16.mxu0 %v4405
    %4587 = vmatpush2.bf16.msra.mxu0 %v4404
    %4588 = vmatprep.subr.bf16.mxu0 %v4397
    %4589 = vmatpush2.bf16.msra.mxu0 %v4396
    %4590 = vmatprep.subr.bf16.mxu0 %v4389
    %4591 = vmatpush2.bf16.msra.mxu0 %v4388
    %4592 = vmatprep.subr.bf16.mxu0 %v4381
    %4593 = vmatpush2.bf16.msra.mxu0 %v4380
    %4594 = vmatprep.subr.bf16.mxu0 %v4373
    %4595 = vmatpush2.bf16.msra.mxu0 %v4372
    %4596 = vmatprep.mubr.bf16.mxu0 0
    %4597 = vmatmul.mubr.bf16.gmra.mxu0 0
    %v4598 = vpop.f32.mrf.mxu0
    %v4599 = vadd.f32 0.0, %v4598
    %v4600 = vpop.f32.mrf.mxu0
    %v4601 = vadd.f32 0.0, %v4600
    %v4602 = vpop.f32.mrf.mxu0
    %v4603 = vpop.f32.mrf.mxu0
    %4604 = vdwg.mxu0
    %4605 = vmatprep.subr.bf16.mxu0 %v4367
    %4606 = vmatpush1.bf16.msra.mxu0 %v4366
    %4607 = vmatprep.subr.bf16.mxu0 %v4359
    %4608 = vmatpush1.bf16.msra.mxu0 %v4358
    %4609 = vmatprep.subr.bf16.mxu0 %v4351
    %4610 = vmatpush1.bf16.msra.mxu0 %v4350
    %4611 = vmatprep.subr.bf16.mxu0 %v4343
    %4612 = vmatpush1.bf16.msra.mxu0 %v4342
    %4613 = vmatprep.subr.bf16.mxu0 %v4335
    %4614 = vmatpush1.bf16.msra.mxu0 %v4334
    %4615 = vmatprep.subr.bf16.mxu0 %v4327
    %4616 = vmatpush1.bf16.msra.mxu0 %v4326
    %4617 = vmatprep.subr.bf16.mxu0 %v4319
    %4618 = vmatpush1.bf16.msra.mxu0 %v4318
    %4619 = vmatprep.subr.bf16.mxu0 %v4311
    %4620 = vmatpush1.bf16.msra.mxu0 %v4310
    %4621 = vmatprep.subr.bf16.mxu0 %v4431
    %4622 = vmatpush2.bf16.msra.mxu0 %v4430
    %4623 = vmatprep.subr.bf16.mxu0 %v4423
    %4624 = vmatpush2.bf16.msra.mxu0 %v4422
    %4625 = vmatprep.subr.bf16.mxu0 %v4415
    %4626 = vmatpush2.bf16.msra.mxu0 %v4414
    %4627 = vmatprep.subr.bf16.mxu0 %v4407
    %4628 = vmatpush2.bf16.msra.mxu0 %v4406
    %4629 = vmatprep.subr.bf16.mxu0 %v4399
    %4630 = vmatpush2.bf16.msra.mxu0 %v4398
    %4631 = vmatprep.subr.bf16.mxu0 %v4391
    %4632 = vmatpush2.bf16.msra.mxu0 %v4390
    %4633 = vmatprep.subr.bf16.mxu0 %v4383
    %4634 = vmatpush2.bf16.msra.mxu0 %v4382
    %4635 = vmatprep.subr.bf16.mxu0 %v4375
    %4636 = vmatpush2.bf16.msra.mxu0 %v4374
    %4637 = vmatprep.mubr.bf16.mxu0 0
    %4638 = vmatmul.mubr.bf16.gmra.mxu0 0
    %v4639 = vpop.f32.mrf.mxu0
    %v4640 = vadd.f32 0.0, %v4639
    %v4641 = vpop.f32.mrf.mxu0
    %v4642 = vadd.f32 0.0, %v4641
    %v4643 = vpop.f32.mrf.mxu0
    %v4644 = vpop.f32.mrf.mxu0
    %4645 = vdwg.mxu0
    %4646 = vmatprep.subr.bf16.mxu0 %v4369
    %4647 = vmatpush1.bf16.msra.mxu0 %v4368
    %4648 = vmatprep.subr.bf16.mxu0 %v4361
    %4649 = vmatpush1.bf16.msra.mxu0 %v4360
    %4650 = vmatprep.subr.bf16.mxu0 %v4353
    %4651 = vmatpush1.bf16.msra.mxu0 %v4352
    %4652 = vmatprep.subr.bf16.mxu0 %v4345
    %4653 = vmatpush1.bf16.msra.mxu0 %v4344
    %4654 = vmatprep.subr.bf16.mxu0 %v4337
    %4655 = vmatpush1.bf16.msra.mxu0 %v4336
    %4656 = vmatprep.subr.bf16.mxu0 %v4329
    %4657 = vmatpush1.bf16.msra.mxu0 %v4328
    %4658 = vmatprep.subr.bf16.mxu0 %v4321
    %4659 = vmatpush1.bf16.msra.mxu0 %v4320
    %4660 = vmatprep.subr.bf16.mxu0 %v4313
    %4661 = vmatpush1.bf16.msra.mxu0 %v4312
    %4662 = vmatprep.subr.bf16.mxu0 %v4433
    %4663 = vmatpush2.bf16.msra.mxu0 %v4432
    %4664 = vmatprep.subr.bf16.mxu0 %v4425
    %4665 = vmatpush2.bf16.msra.mxu0 %v4424
    %4666 = vmatprep.subr.bf16.mxu0 %v4417
    %4667 = vmatpush2.bf16.msra.mxu0 %v4416
    %4668 = vmatprep.subr.bf16.mxu0 %v4409
    %4669 = vmatpush2.bf16.msra.mxu0 %v4408
    %4670 = vmatprep.subr.bf16.mxu0 %v4401
    %4671 = vmatpush2.bf16.msra.mxu0 %v4400
    %4672 = vmatprep.subr.bf16.mxu0 %v4393
    %4673 = vmatpush2.bf16.msra.mxu0 %v4392
    %4674 = vmatprep.subr.bf16.mxu0 %v4385
    %4675 = vmatpush2.bf16.msra.mxu0 %v4384
    %4676 = vmatprep.subr.bf16.mxu0 %v4377
    %4677 = vmatpush2.bf16.msra.mxu0 %v4376
    %4678 = vmatprep.mubr.bf16.mxu0 0
    %4679 = vmatmul.mubr.bf16.gmra.mxu0 0
    %v4680 = vpop.f32.mrf.mxu0
    %v4681 = vadd.f32 0.0, %v4680
    %v4682 = vpop.f32.mrf.mxu0
    %v4683 = vadd.f32 0.0, %v4682
    %v4684 = vpop.f32.mrf.mxu0
    %v4685 = vpop.f32.mrf.mxu0
    %4686 = vdwg.mxu0
    %4687 = vmatprep.subr.bf16.mxu0 %v4371
    %4688 = vmatpush1.bf16.msra.mxu0 %v4370
    %4689 = vmatprep.subr.bf16.mxu0 %v4363
    %4690 = vmatpush1.bf16.msra.mxu0 %v4362
    %4691 = vmatprep.subr.bf16.mxu0 %v4355
    %4692 = vmatpush1.bf16.msra.mxu0 %v4354
    %4693 = vmatprep.subr.bf16.mxu0 %v4347
    %4694 = vmatpush1.bf16.msra.mxu0 %v4346
    %4695 = vmatprep.subr.bf16.mxu0 %v4339
    %4696 = vmatpush1.bf16.msra.mxu0 %v4338
    %4697 = vmatprep.subr.bf16.mxu0 %v4331
    %4698 = vmatpush1.bf16.msra.mxu0 %v4330
    %4699 = vmatprep.subr.bf16.mxu0 %v4323
    %4700 = vmatpush1.bf16.msra.mxu0 %v4322
    %4701 = vmatprep.subr.bf16.mxu0 %v4315
    %4702 = vmatpush1.bf16.msra.mxu0 %v4314
    %4703 = vmatprep.subr.bf16.mxu0 %v4435
    %4704 = vmatpush2.bf16.msra.mxu0 %v4434
    %4705 = vmatprep.subr.bf16.mxu0 %v4427
    %4706 = vmatpush2.bf16.msra.mxu0 %v4426
    %4707 = vmatprep.subr.bf16.mxu0 %v4419
    %4708 = vmatpush2.bf16.msra.mxu0 %v4418
    %4709 = vmatprep.subr.bf16.mxu0 %v4411
    %4710 = vmatpush2.bf16.msra.mxu0 %v4410
    %4711 = vmatprep.subr.bf16.mxu0 %v4403
    %4712 = vmatpush2.bf16.msra.mxu0 %v4402
    %4713 = vmatprep.subr.bf16.mxu0 %v4395
    %4714 = vmatpush2.bf16.msra.mxu0 %v4394
    %4715 = vmatprep.subr.bf16.mxu0 %v4387
    %4716 = vmatpush2.bf16.msra.mxu0 %v4386
    %4717 = vmatprep.subr.bf16.mxu0 %v4379
    %4718 = vmatpush2.bf16.msra.mxu0 %v4378
    %4719 = vmatprep.mubr.bf16.mxu0 0
    %4720 = vmatmul.mubr.bf16.gmra.mxu0 0
    %v4721 = vpop.f32.mrf.mxu0
    %v4722 = vadd.f32 0.0, %v4721
    %v4723 = vpop.f32.mrf.mxu0
    %v4724 = vadd.f32 0.0, %v4723
    %v4725 = vpop.f32.mrf.mxu0
    %v4726 = vpop.f32.mrf.mxu0
    %4727 = vdwg.mxu0
    %v4736 = vcombine.low %v4599, %v4601
    %v4737 = vcombine.low %v4640, %v4642
    %v4738 = vcombine.low %v4681, %v4683
    %v4739 = vcombine.low %v4722, %v4724
    %v4741 = vunpack.c.l.s4 1966171168
    %v4742 = vunpack.c.0.s8 %v4741
    %v4743 = vlaneseq
    %v4744 = vshrl.u32 %v4743, 7
    %v4745 = vsub.s32 %v4742, %v4744
    %v4746 = vrot.slane %v4736, %v4745
    %v4748 = vunpack.c.l.s4 1966171168
    %v4749 = vunpack.c.0.s8 %v4748
    %v4750 = vlaneseq
    %v4751 = vshrl.u32 %v4750, 7
    %v4752 = vsub.s32 %v4749, %v4751
    %v4753 = vrot.slane %v4737, %v4752
    %v4755 = vunpack.c.l.s4 1966171168
    %v4756 = vunpack.c.0.s8 %v4755
    %v4757 = vlaneseq
    %v4758 = vshrl.u32 %v4757, 7
    %v4759 = vsub.s32 %v4756, %v4758
    %v4760 = vrot.slane %v4738, %v4759
    %v4762 = vunpack.c.l.s4 1966171168
    %v4763 = vunpack.c.0.s8 %v4762
    %v4764 = vlaneseq
    %v4765 = vshrl.u32 %v4764, 7
    %v4766 = vsub.s32 %v4763, %v4765
    %v4767 = vrot.slane %v4739, %v4766
    %v4768 = vcombine.low %v4746, %v4753
    %v4769 = vcombine.high %v4746, %v4753
    %v4770 = vcombine.low %v4760, %v4767
    %v4771 = vcombine.high %v4760, %v4767
    %v4773 = vunpack.c.l.s4 1966171168
    %v4774 = vunpack.c.0.s8 %v4773
    %v4775 = vlaneseq
    %v4776 = vshrl.u32 %v4775, 7
    %v4777 = vsub.s32 %v4774, %v4776
    %v4778 = vrot.slane %v4768, %v4777
    %v4780 = vunpack.c.l.s4 1966171168
    %v4781 = vunpack.c.0.s8 %v4780
    %v4782 = vlaneseq
    %v4783 = vshrl.u32 %v4782, 7
    %v4784 = vsub.s32 %v4781, %v4783
    %v4785 = vrot.slane %v4769, %v4784
    %v4787 = vunpack.c.l.s4 1966171168
    %v4788 = vunpack.c.0.s8 %v4787
    %v4789 = vlaneseq
    %v4790 = vshrl.u32 %v4789, 7
    %v4791 = vsub.s32 %v4788, %v4790
    %v4792 = vrot.slane %v4770, %v4791
    %v4794 = vunpack.c.l.s4 1966171168
    %v4795 = vunpack.c.0.s8 %v4794
    %v4796 = vlaneseq
    %v4797 = vshrl.u32 %v4796, 7
    %v4798 = vsub.s32 %v4795, %v4797
    %v4799 = vrot.slane %v4771, %v4798
    %v4800 = vcombine.low %v4778, %v4792
    %v4801 = vcombine.low %v4785, %v4799
    %v4804 = vadd.f32 %v3710, %v4800
    %v4805 = vadd.f32 %v3716, %v4801
    %v4806 = vmul.f32 %v4804, 0.5
    %v4807 = vmul.f32 %v4805, 0.5
    %v4808 = vtanh.pop %v4806
    %v4809 = vtanh.pop %v4807
    %v4810 = vmul.f32 %v4808, 0.5
    %v4811 = vmul.f32 %v4809, 0.5
    %v4812 = vadd.f32 %v4810, 0.5
    %v4813 = vadd.f32 %v4811, 0.5
    %v4816 = vrot.slane %v4804, 6
    %v4817 = vrot.slane %v4805, 6
    %v4820 = vtanh.pop %v4816
    %v4821 = vtanh.pop %v4817
    %v4824 = vrot.slane %v4812, 2
    %v4825 = vrot.slane %v4813, 2
    %v4828 = vmul.f32 %v4824, 0.0
    %v4829 = vmul.f32 %v4825, 0.0
    %v4830 = vmul.f32 %v4812, %v4820
    %v4831 = vmul.f32 %v4813, %v4821
    %v4832 = vadd.f32 %v4828, %v4830
    %v4833 = vadd.f32 %v4829, %v4831
    %v4834 = vtanh.pop %v4832
    %v4835 = vtanh.pop %v4833
    %v4836 = vrot.slane %v4812, 4
    %v4837 = vrot.slane %v4813, 4
    %v4840 = vmul.f32 %v4836, %v4834
    %v4841 = vmul.f32 %v4837, %v4835
    %v4842 = vlaneseq
    %v4843 = vshrl.u32 %v4842, 7
    %v4844 = vsub.s32 0, %v4843
    %v4845 = vrot.slane %v3922, %v4844
    %v4846 = vlaneseq
    %v4847 = vshrl.u32 %v4846, 7
    %v4848 = vsub.s32 0, %v4847
    %v4849 = vrot.slane %v3923, %v4848
    %v4852 = vcombine.low %v4845, %v4849
    %v4854 = vunpack.c.l.s4 1966171168
    %v4855 = vunpack.c.0.s8 %v4854
    %v4856 = vlaneseq
    %v4857 = vshrl.u32 %v4856, 7
    %v4858 = vsub.s32 %v4855, %v4857
    %v4859 = vrot.slane %v4852, %v4858
    %v4860 = vcombine.high %v4859, %v4859
    %v4862 = vunpack.c.l.s4 1966171168
    %v4863 = vunpack.c.0.s8 %v4862
    %v4864 = vlaneseq
    %v4865 = vshrl.u32 %v4864, 7
    %v4866 = vsub.s32 %v4863, %v4865
    %v4867 = vrot.slane %v4859, %v4866
    %v4869 = vunpack.c.l.s4 1966171168
    %v4870 = vunpack.c.0.s8 %v4869
    %v4871 = vlaneseq
    %v4872 = vshrl.u32 %v4871, 7
    %v4873 = vsub.s32 %v4870, %v4872
    %v4874 = vrot.slane %v4860, %v4873
    %v4877 = vmul.f32 %v4840, %v4867
    %v4878 = vmul.f32 %v4841, %v4874
    %v4879 = vadd.f32 %v4877, 0.0
    %v4880 = vadd.f32 %v4878, 0.0
    %v4883 = vlaneseq
    %v4884 = vshrl.u32 %v4883, 7
    %v4885 = vsub.s32 0, %v4884
    %v4886 = vrot.slane %v4840, %v4885
    %v4887 = vlaneseq
    %v4888 = vshrl.u32 %v4887, 7
    %v4889 = vsub.s32 1, %v4888
    %v4890 = vrot.slane %v4840, %v4889
    %v4891 = vlaneseq
    %v4892 = vshrl.u32 %v4891, 7
    %v4893 = vsub.s32 0, %v4892
    %v4894 = vrot.slane %v4841, %v4893
    %v4895 = vlaneseq
    %v4896 = vshrl.u32 %v4895, 7
    %v4897 = vsub.s32 1, %v4896
    %v4898 = vrot.slane %v4841, %v4897
    %v4903 = vpack.c.bf16 %v4886, %v4886
    %v4904 = vpack.c.bf16 %v4890, %v4890
    %v4905 = vpack.c.bf16 %v4894, %v4894
    %v4906 = vpack.c.bf16 %v4898, %v4898
    %v4911 = vunpack.c.l.b16 %v4903
    %v4912 = vunpack.c.l.b16 %v4904
    %v4913 = vunpack.c.l.b16 %v4905
    %v4914 = vunpack.c.l.b16 %v4906
    %v4915 = vrot.slane %v4913, 7
    %vm4916 = vcmask 1041409
    %v4917 = vsel %vm4916, %v4915, %v4911
    %v4918 = vrot.slane %v4914, 7
    %v4919 = vsel %vm4916, %v4918, %v4912
    %v4920 = vpack.c.b16 %v4917, %v4917
    %v4921 = vpack.c.b16 %v4919, %v4919
    %4924 = vmatprep.subr.bf16.mxu0 %v4365
    %4925 = vmatpush1.bf16.msra.mxu0 %v4364
    %4926 = vmatprep.subr.bf16.mxu0 %v4357
    %4927 = vmatpush1.bf16.msra.mxu0 %v4356
    %4928 = vmatprep.subr.bf16.mxu0 %v4349
    %4929 = vmatpush1.bf16.msra.mxu0 %v4348
    %4930 = vmatprep.subr.bf16.mxu0 %v4341
    %4931 = vmatpush1.bf16.msra.mxu0 %v4340
    %4932 = vmatprep.subr.bf16.mxu0 %v4333
    %4933 = vmatpush1.bf16.msra.mxu0 %v4332
    %4934 = vmatprep.subr.bf16.mxu0 %v4325
    %4935 = vmatpush1.bf16.msra.mxu0 %v4324
    %4936 = vmatprep.subr.bf16.mxu0 %v4317
    %4937 = vmatpush1.bf16.msra.mxu0 %v4316
    %4938 = vmatprep.subr.bf16.mxu0 %v4309
    %4939 = vmatpush1.bf16.msra.mxu0 %v4308
    %4940 = vmatprep.subr.bf16.mxu0 %v4429
    %4941 = vmatpush2.bf16.msra.mxu0 %v4428
    %4942 = vmatprep.subr.bf16.mxu0 %v4421
    %4943 = vmatpush2.bf16.msra.mxu0 %v4420
    %4944 = vmatprep.subr.bf16.mxu0 %v4413
    %4945 = vmatpush2.bf16.msra.mxu0 %v4412
    %4946 = vmatprep.subr.bf16.mxu0 %v4405
    %4947 = vmatpush2.bf16.msra.mxu0 %v4404
    %4948 = vmatprep.subr.bf16.mxu0 %v4397
    %4949 = vmatpush2.bf16.msra.mxu0 %v4396
    %4950 = vmatprep.subr.bf16.mxu0 %v4389
    %4951 = vmatpush2.bf16.msra.mxu0 %v4388
    %4952 = vmatprep.subr.bf16.mxu0 %v4381
    %4953 = vmatpush2.bf16.msra.mxu0 %v4380
    %4954 = vmatprep.subr.bf16.mxu0 %v4373
    %4955 = vmatpush2.bf16.msra.mxu0 %v4372
    %4956 = vmatprep.mubr.bf16.mxu0 %v4921
    %4957 = vmatmul.mubr.bf16.gmra.mxu0 %v4920
    %v4958 = vpop.f32.mrf.mxu0
    %v4959 = vadd.f32 0.0, %v4958
    %v4960 = vpop.f32.mrf.mxu0
    %v4961 = vadd.f32 0.0, %v4960
    %v4962 = vpop.f32.mrf.mxu0
    %v4963 = vpop.f32.mrf.mxu0
    %4964 = vdwg.mxu0
    %4965 = vmatprep.subr.bf16.mxu0 %v4367
    %4966 = vmatpush1.bf16.msra.mxu0 %v4366
    %4967 = vmatprep.subr.bf16.mxu0 %v4359
    %4968 = vmatpush1.bf16.msra.mxu0 %v4358
    %4969 = vmatprep.subr.bf16.mxu0 %v4351
    %4970 = vmatpush1.bf16.msra.mxu0 %v4350
    %4971 = vmatprep.subr.bf16.mxu0 %v4343
    %4972 = vmatpush1.bf16.msra.mxu0 %v4342
    %4973 = vmatprep.subr.bf16.mxu0 %v4335
    %4974 = vmatpush1.bf16.msra.mxu0 %v4334
    %4975 = vmatprep.subr.bf16.mxu0 %v4327
    %4976 = vmatpush1.bf16.msra.mxu0 %v4326
    %4977 = vmatprep.subr.bf16.mxu0 %v4319
    %4978 = vmatpush1.bf16.msra.mxu0 %v4318
    %4979 = vmatprep.subr.bf16.mxu0 %v4311
    %4980 = vmatpush1.bf16.msra.mxu0 %v4310
    %4981 = vmatprep.subr.bf16.mxu0 %v4431
    %4982 = vmatpush2.bf16.msra.mxu0 %v4430
    %4983 = vmatprep.subr.bf16.mxu0 %v4423
    %4984 = vmatpush2.bf16.msra.mxu0 %v4422
    %4985 = vmatprep.subr.bf16.mxu0 %v4415
    %4986 = vmatpush2.bf16.msra.mxu0 %v4414
    %4987 = vmatprep.subr.bf16.mxu0 %v4407
    %4988 = vmatpush2.bf16.msra.mxu0 %v4406
    %4989 = vmatprep.subr.bf16.mxu0 %v4399
    %4990 = vmatpush2.bf16.msra.mxu0 %v4398
    %4991 = vmatprep.subr.bf16.mxu0 %v4391
    %4992 = vmatpush2.bf16.msra.mxu0 %v4390
    %4993 = vmatprep.subr.bf16.mxu0 %v4383
    %4994 = vmatpush2.bf16.msra.mxu0 %v4382
    %4995 = vmatprep.subr.bf16.mxu0 %v4375
    %4996 = vmatpush2.bf16.msra.mxu0 %v4374
    %4997 = vmatprep.mubr.bf16.mxu0 %v4921
    %4998 = vmatmul.mubr.bf16.gmra.mxu0 %v4920
    %v4999 = vpop.f32.mrf.mxu0
    %v5000 = vadd.f32 0.0, %v4999
    %v5001 = vpop.f32.mrf.mxu0
    %v5002 = vadd.f32 0.0, %v5001
    %v5003 = vpop.f32.mrf.mxu0
    %v5004 = vpop.f32.mrf.mxu0
    %5005 = vdwg.mxu0
    %5006 = vmatprep.subr.bf16.mxu0 %v4369
    %5007 = vmatpush1.bf16.msra.mxu0 %v4368
    %5008 = vmatprep.subr.bf16.mxu0 %v4361
    %5009 = vmatpush1.bf16.msra.mxu0 %v4360
    %5010 = vmatprep.subr.bf16.mxu0 %v4353
    %5011 = vmatpush1.bf16.msra.mxu0 %v4352
    %5012 = vmatprep.subr.bf16.mxu0 %v4345
    %5013 = vmatpush1.bf16.msra.mxu0 %v4344
    %5014 = vmatprep.subr.bf16.mxu0 %v4337
    %5015 = vmatpush1.bf16.msra.mxu0 %v4336
    %5016 = vmatprep.subr.bf16.mxu0 %v4329
    %5017 = vmatpush1.bf16.msra.mxu0 %v4328
    %5018 = vmatprep.subr.bf16.mxu0 %v4321
    %5019 = vmatpush1.bf16.msra.mxu0 %v4320
    %5020 = vmatprep.subr.bf16.mxu0 %v4313
    %5021 = vmatpush1.bf16.msra.mxu0 %v4312
    %5022 = vmatprep.subr.bf16.mxu0 %v4433
    %5023 = vmatpush2.bf16.msra.mxu0 %v4432
    %5024 = vmatprep.subr.bf16.mxu0 %v4425
    %5025 = vmatpush2.bf16.msra.mxu0 %v4424
    %5026 = vmatprep.subr.bf16.mxu0 %v4417
    %5027 = vmatpush2.bf16.msra.mxu0 %v4416
    %5028 = vmatprep.subr.bf16.mxu0 %v4409
    %5029 = vmatpush2.bf16.msra.mxu0 %v4408
    %5030 = vmatprep.subr.bf16.mxu0 %v4401
    %5031 = vmatpush2.bf16.msra.mxu0 %v4400
    %5032 = vmatprep.subr.bf16.mxu0 %v4393
    %5033 = vmatpush2.bf16.msra.mxu0 %v4392
    %5034 = vmatprep.subr.bf16.mxu0 %v4385
    %5035 = vmatpush2.bf16.msra.mxu0 %v4384
    %5036 = vmatprep.subr.bf16.mxu0 %v4377
    %5037 = vmatpush2.bf16.msra.mxu0 %v4376
    %5038 = vmatprep.mubr.bf16.mxu0 %v4921
    %5039 = vmatmul.mubr.bf16.gmra.mxu0 %v4920
    %v5040 = vpop.f32.mrf.mxu0
    %v5041 = vadd.f32 0.0, %v5040
    %v5042 = vpop.f32.mrf.mxu0
    %v5043 = vadd.f32 0.0, %v5042
    %v5044 = vpop.f32.mrf.mxu0
    %v5045 = vpop.f32.mrf.mxu0
    %5046 = vdwg.mxu0
    %5047 = vmatprep.subr.bf16.mxu0 %v4371
    %5048 = vmatpush1.bf16.msra.mxu0 %v4370
    %5049 = vmatprep.subr.bf16.mxu0 %v4363
    %5050 = vmatpush1.bf16.msra.mxu0 %v4362
    %5051 = vmatprep.subr.bf16.mxu0 %v4355
    %5052 = vmatpush1.bf16.msra.mxu0 %v4354
    %5053 = vmatprep.subr.bf16.mxu0 %v4347
    %5054 = vmatpush1.bf16.msra.mxu0 %v4346
    %5055 = vmatprep.subr.bf16.mxu0 %v4339
    %5056 = vmatpush1.bf16.msra.mxu0 %v4338
    %5057 = vmatprep.subr.bf16.mxu0 %v4331
    %5058 = vmatpush1.bf16.msra.mxu0 %v4330
    %5059 = vmatprep.subr.bf16.mxu0 %v4323
    %5060 = vmatpush1.bf16.msra.mxu0 %v4322
    %5061 = vmatprep.subr.bf16.mxu0 %v4315
    %5062 = vmatpush1.bf16.msra.mxu0 %v4314
    %5063 = vmatprep.subr.bf16.mxu0 %v4435
    %5064 = vmatpush2.bf16.msra.mxu0 %v4434
    %5065 = vmatprep.subr.bf16.mxu0 %v4427
    %5066 = vmatpush2.bf16.msra.mxu0 %v4426
    %5067 = vmatprep.subr.bf16.mxu0 %v4419
    %5068 = vmatpush2.bf16.msra.mxu0 %v4418
    %5069 = vmatprep.subr.bf16.mxu0 %v4411
    %5070 = vmatpush2.bf16.msra.mxu0 %v4410
    %5071 = vmatprep.subr.bf16.mxu0 %v4403
    %5072 = vmatpush2.bf16.msra.mxu0 %v4402
    %5073 = vmatprep.subr.bf16.mxu0 %v4395
    %5074 = vmatpush2.bf16.msra.mxu0 %v4394
    %5075 = vmatprep.subr.bf16.mxu0 %v4387
    %5076 = vmatpush2.bf16.msra.mxu0 %v4386
    %5077 = vmatprep.subr.bf16.mxu0 %v4379
    %5078 = vmatpush2.bf16.msra.mxu0 %v4378
    %5079 = vmatprep.mubr.bf16.mxu0 %v4921
    %5080 = vmatmul.mubr.bf16.gmra.mxu0 %v4920
    %v5081 = vpop.f32.mrf.mxu0
    %v5082 = vadd.f32 0.0, %v5081
    %v5083 = vpop.f32.mrf.mxu0
    %v5084 = vadd.f32 0.0, %v5083
    %v5085 = vpop.f32.mrf.mxu0
    %v5086 = vpop.f32.mrf.mxu0
    %5087 = vdwg.mxu0
    %v5096 = vcombine.low %v4959, %v4961
    %v5097 = vcombine.low %v5000, %v5002
    %v5098 = vcombine.low %v5041, %v5043
    %v5099 = vcombine.low %v5082, %v5084
    %v5101 = vunpack.c.l.s4 1966171168
    %v5102 = vunpack.c.0.s8 %v5101
    %v5103 = vlaneseq
    %v5104 = vshrl.u32 %v5103, 7
    %v5105 = vsub.s32 %v5102, %v5104
    %v5106 = vrot.slane %v5096, %v5105
    %v5108 = vunpack.c.l.s4 1966171168
    %v5109 = vunpack.c.0.s8 %v5108
    %v5110 = vlaneseq
    %v5111 = vshrl.u32 %v5110, 7
    %v5112 = vsub.s32 %v5109, %v5111
    %v5113 = vrot.slane %v5097, %v5112
    %v5115 = vunpack.c.l.s4 1966171168
    %v5116 = vunpack.c.0.s8 %v5115
    %v5117 = vlaneseq
    %v5118 = vshrl.u32 %v5117, 7
    %v5119 = vsub.s32 %v5116, %v5118
    %v5120 = vrot.slane %v5098, %v5119
    %v5122 = vunpack.c.l.s4 1966171168
    %v5123 = vunpack.c.0.s8 %v5122
    %v5124 = vlaneseq
    %v5125 = vshrl.u32 %v5124, 7
    %v5126 = vsub.s32 %v5123, %v5125
    %v5127 = vrot.slane %v5099, %v5126
    %v5128 = vcombine.low %v5106, %v5113
    %v5129 = vcombine.high %v5106, %v5113
    %v5130 = vcombine.low %v5120, %v5127
    %v5131 = vcombine.high %v5120, %v5127
    %v5133 = vunpack.c.l.s4 1966171168
    %v5134 = vunpack.c.0.s8 %v5133
    %v5135 = vlaneseq
    %v5136 = vshrl.u32 %v5135, 7
    %v5137 = vsub.s32 %v5134, %v5136
    %v5138 = vrot.slane %v5128, %v5137
    %v5140 = vunpack.c.l.s4 1966171168
    %v5141 = vunpack.c.0.s8 %v5140
    %v5142 = vlaneseq
    %v5143 = vshrl.u32 %v5142, 7
    %v5144 = vsub.s32 %v5141, %v5143
    %v5145 = vrot.slane %v5129, %v5144
    %v5147 = vunpack.c.l.s4 1966171168
    %v5148 = vunpack.c.0.s8 %v5147
    %v5149 = vlaneseq
    %v5150 = vshrl.u32 %v5149, 7
    %v5151 = vsub.s32 %v5148, %v5150
    %v5152 = vrot.slane %v5130, %v5151
    %v5154 = vunpack.c.l.s4 1966171168
    %v5155 = vunpack.c.0.s8 %v5154
    %v5156 = vlaneseq
    %v5157 = vshrl.u32 %v5156, 7
    %v5158 = vsub.s32 %v5155, %v5157
    %v5159 = vrot.slane %v5131, %v5158
    %v5160 = vcombine.low %v5138, %v5152
    %v5161 = vcombine.low %v5145, %v5159
    %v5164 = vadd.f32 %v3714, %v5160
    %v5165 = vadd.f32 %v3713, %v5161
    %v5166 = vmul.f32 %v5164, 0.5
    %v5167 = vmul.f32 %v5165, 0.5
    %v5168 = vtanh.pop %v5166
    %v5169 = vtanh.pop %v5167
    %v5170 = vmul.f32 %v5168, 0.5
    %v5171 = vmul.f32 %v5169, 0.5
    %v5172 = vadd.f32 %v5170, 0.5
    %v5173 = vadd.f32 %v5171, 0.5
    %v5176 = vrot.slane %v5164, 6
    %v5177 = vrot.slane %v5165, 6
    %v5180 = vtanh.pop %v5176
    %v5181 = vtanh.pop %v5177
    %v5184 = vrot.slane %v5172, 2
    %v5185 = vrot.slane %v5173, 2
    %v5188 = vmul.f32 %v5184, %v4832
    %v5189 = vmul.f32 %v5185, %v4833
    %v5190 = vmul.f32 %v5172, %v5180
    %v5191 = vmul.f32 %v5173, %v5181
    %v5192 = vadd.f32 %v5188, %v5190
    %v5193 = vadd.f32 %v5189, %v5191
    %v5194 = vtanh.pop %v5192
    %v5195 = vtanh.pop %v5193
    %v5196 = vrot.slane %v5172, 4
    %v5197 = vrot.slane %v5173, 4
    %v5200 = vmul.f32 %v5196, %v5194
    %v5201 = vmul.f32 %v5197, %v5195
    %v5202 = vlaneseq
    %v5203 = vshrl.u32 %v5202, 7
    %v5204 = vsub.s32 1, %v5203
    %v5205 = vrot.slane %v3922, %v5204
    %v5206 = vlaneseq
    %v5207 = vshrl.u32 %v5206, 7
    %v5208 = vsub.s32 1, %v5207
    %v5209 = vrot.slane %v3923, %v5208
    %v5212 = vcombine.low %v5205, %v5209
    %v5214 = vunpack.c.l.s4 1966171168
    %v5215 = vunpack.c.0.s8 %v5214
    %v5216 = vlaneseq
    %v5217 = vshrl.u32 %v5216, 7
    %v5218 = vsub.s32 %v5215, %v5217
    %v5219 = vrot.slane %v5212, %v5218
    %v5220 = vcombine.high %v5219, %v5219
    %v5222 = vunpack.c.l.s4 1966171168
    %v5223 = vunpack.c.0.s8 %v5222
    %v5224 = vlaneseq
    %v5225 = vshrl.u32 %v5224, 7
    %v5226 = vsub.s32 %v5223, %v5225
    %v5227 = vrot.slane %v5219, %v5226
    %v5229 = vunpack.c.l.s4 1966171168
    %v5230 = vunpack.c.0.s8 %v5229
    %v5231 = vlaneseq
    %v5232 = vshrl.u32 %v5231, 7
    %v5233 = vsub.s32 %v5230, %v5232
    %v5234 = vrot.slane %v5220, %v5233
    %v5237 = vmul.f32 %v5200, %v5227
    %v5238 = vmul.f32 %v5201, %v5234
    %v5239 = vadd.f32 %v4879, %v5237
    %v5240 = vadd.f32 %v4880, %v5238
    %v5243 = vlaneseq
    %v5244 = vshrl.u32 %v5243, 7
    %v5245 = vsub.s32 0, %v5244
    %v5246 = vrot.slane %v5200, %v5245
    %v5247 = vlaneseq
    %v5248 = vshrl.u32 %v5247, 7
    %v5249 = vsub.s32 1, %v5248
    %v5250 = vrot.slane %v5200, %v5249
    %v5251 = vlaneseq
    %v5252 = vshrl.u32 %v5251, 7
    %v5253 = vsub.s32 0, %v5252
    %v5254 = vrot.slane %v5201, %v5253
    %v5255 = vlaneseq
    %v5256 = vshrl.u32 %v5255, 7
    %v5257 = vsub.s32 1, %v5256
    %v5258 = vrot.slane %v5201, %v5257
    %v5263 = vpack.c.bf16 %v5246, %v5246
    %v5264 = vpack.c.bf16 %v5250, %v5250
    %v5265 = vpack.c.bf16 %v5254, %v5254
    %v5266 = vpack.c.bf16 %v5258, %v5258
    %v5271 = vunpack.c.l.b16 %v5263
    %v5272 = vunpack.c.l.b16 %v5264
    %v5273 = vunpack.c.l.b16 %v5265
    %v5274 = vunpack.c.l.b16 %v5266
    %v5275 = vrot.slane %v5273, 7
    %v5276 = vsel %vm4916, %v5275, %v5271
    %v5277 = vrot.slane %v5274, 7
    %v5278 = vsel %vm4916, %v5277, %v5272
    %v5279 = vpack.c.b16 %v5276, %v5276
    %v5280 = vpack.c.b16 %v5278, %v5278
    %5283 = vmatprep.subr.bf16.mxu0 %v4365
    %5284 = vmatpush1.bf16.msra.mxu0 %v4364
    %5285 = vmatprep.subr.bf16.mxu0 %v4357
    %5286 = vmatpush1.bf16.msra.mxu0 %v4356
    %5287 = vmatprep.subr.bf16.mxu0 %v4349
    %5288 = vmatpush1.bf16.msra.mxu0 %v4348
    %5289 = vmatprep.subr.bf16.mxu0 %v4341
    %5290 = vmatpush1.bf16.msra.mxu0 %v4340
    %5291 = vmatprep.subr.bf16.mxu0 %v4333
    %5292 = vmatpush1.bf16.msra.mxu0 %v4332
    %5293 = vmatprep.subr.bf16.mxu0 %v4325
    %5294 = vmatpush1.bf16.msra.mxu0 %v4324
    %5295 = vmatprep.subr.bf16.mxu0 %v4317
    %5296 = vmatpush1.bf16.msra.mxu0 %v4316
    %5297 = vmatprep.subr.bf16.mxu0 %v4309
    %5298 = vmatpush1.bf16.msra.mxu0 %v4308
    %5299 = vmatprep.subr.bf16.mxu0 %v4429
    %5300 = vmatpush2.bf16.msra.mxu0 %v4428
    %5301 = vmatprep.subr.bf16.mxu0 %v4421
    %5302 = vmatpush2.bf16.msra.mxu0 %v4420
    %5303 = vmatprep.subr.bf16.mxu0 %v4413
    %5304 = vmatpush2.bf16.msra.mxu0 %v4412
    %5305 = vmatprep.subr.bf16.mxu0 %v4405
    %5306 = vmatpush2.bf16.msra.mxu0 %v4404
    %5307 = vmatprep.subr.bf16.mxu0 %v4397
    %5308 = vmatpush2.bf16.msra.mxu0 %v4396
    %5309 = vmatprep.subr.bf16.mxu0 %v4389
    %5310 = vmatpush2.bf16.msra.mxu0 %v4388
    %5311 = vmatprep.subr.bf16.mxu0 %v4381
    %5312 = vmatpush2.bf16.msra.mxu0 %v4380
    %5313 = vmatprep.subr.bf16.mxu0 %v4373
    %5314 = vmatpush2.bf16.msra.mxu0 %v4372
    %5315 = vmatprep.mubr.bf16.mxu0 %v5280
    %5316 = vmatmul.mubr.bf16.gmra.mxu0 %v5279
    %v5317 = vpop.f32.mrf.mxu0
    %v5318 = vadd.f32 0.0, %v5317
    %v5319 = vpop.f32.mrf.mxu0
    %v5320 = vadd.f32 0.0, %v5319
    %v5321 = vpop.f32.mrf.mxu0
    %v5322 = vpop.f32.mrf.mxu0
    %5323 = vdwg.mxu0
    %5324 = vmatprep.subr.bf16.mxu0 %v4367
    %5325 = vmatpush1.bf16.msra.mxu0 %v4366
    %5326 = vmatprep.subr.bf16.mxu0 %v4359
    %5327 = vmatpush1.bf16.msra.mxu0 %v4358
    %5328 = vmatprep.subr.bf16.mxu0 %v4351
    %5329 = vmatpush1.bf16.msra.mxu0 %v4350
    %5330 = vmatprep.subr.bf16.mxu0 %v4343
    %5331 = vmatpush1.bf16.msra.mxu0 %v4342
    %5332 = vmatprep.subr.bf16.mxu0 %v4335
    %5333 = vmatpush1.bf16.msra.mxu0 %v4334
    %5334 = vmatprep.subr.bf16.mxu0 %v4327
    %5335 = vmatpush1.bf16.msra.mxu0 %v4326
    %5336 = vmatprep.subr.bf16.mxu0 %v4319
    %5337 = vmatpush1.bf16.msra.mxu0 %v4318
    %5338 = vmatprep.subr.bf16.mxu0 %v4311
    %5339 = vmatpush1.bf16.msra.mxu0 %v4310
    %5340 = vmatprep.subr.bf16.mxu0 %v4431
    %5341 = vmatpush2.bf16.msra.mxu0 %v4430
    %5342 = vmatprep.subr.bf16.mxu0 %v4423
    %5343 = vmatpush2.bf16.msra.mxu0 %v4422
    %5344 = vmatprep.subr.bf16.mxu0 %v4415
    %5345 = vmatpush2.bf16.msra.mxu0 %v4414
    %5346 = vmatprep.subr.bf16.mxu0 %v4407
    %5347 = vmatpush2.bf16.msra.mxu0 %v4406
    %5348 = vmatprep.subr.bf16.mxu0 %v4399
    %5349 = vmatpush2.bf16.msra.mxu0 %v4398
    %5350 = vmatprep.subr.bf16.mxu0 %v4391
    %5351 = vmatpush2.bf16.msra.mxu0 %v4390
    %5352 = vmatprep.subr.bf16.mxu0 %v4383
    %5353 = vmatpush2.bf16.msra.mxu0 %v4382
    %5354 = vmatprep.subr.bf16.mxu0 %v4375
    %5355 = vmatpush2.bf16.msra.mxu0 %v4374
    %5356 = vmatprep.mubr.bf16.mxu0 %v5280
    %5357 = vmatmul.mubr.bf16.gmra.mxu0 %v5279
    %v5358 = vpop.f32.mrf.mxu0
    %v5359 = vadd.f32 0.0, %v5358
    %v5360 = vpop.f32.mrf.mxu0
    %v5361 = vadd.f32 0.0, %v5360
    %v5362 = vpop.f32.mrf.mxu0
    %v5363 = vpop.f32.mrf.mxu0
    %5364 = vdwg.mxu0
    %5365 = vmatprep.subr.bf16.mxu0 %v4369
    %5366 = vmatpush1.bf16.msra.mxu0 %v4368
    %5367 = vmatprep.subr.bf16.mxu0 %v4361
    %5368 = vmatpush1.bf16.msra.mxu0 %v4360
    %5369 = vmatprep.subr.bf16.mxu0 %v4353
    %5370 = vmatpush1.bf16.msra.mxu0 %v4352
    %5371 = vmatprep.subr.bf16.mxu0 %v4345
    %5372 = vmatpush1.bf16.msra.mxu0 %v4344
    %5373 = vmatprep.subr.bf16.mxu0 %v4337
    %5374 = vmatpush1.bf16.msra.mxu0 %v4336
    %5375 = vmatprep.subr.bf16.mxu0 %v4329
    %5376 = vmatpush1.bf16.msra.mxu0 %v4328
    %5377 = vmatprep.subr.bf16.mxu0 %v4321
    %5378 = vmatpush1.bf16.msra.mxu0 %v4320
    %5379 = vmatprep.subr.bf16.mxu0 %v4313
    %5380 = vmatpush1.bf16.msra.mxu0 %v4312
    %5381 = vmatprep.subr.bf16.mxu0 %v4433
    %5382 = vmatpush2.bf16.msra.mxu0 %v4432
    %5383 = vmatprep.subr.bf16.mxu0 %v4425
    %5384 = vmatpush2.bf16.msra.mxu0 %v4424
    %5385 = vmatprep.subr.bf16.mxu0 %v4417
    %5386 = vmatpush2.bf16.msra.mxu0 %v4416
    %5387 = vmatprep.subr.bf16.mxu0 %v4409
    %5388 = vmatpush2.bf16.msra.mxu0 %v4408
    %5389 = vmatprep.subr.bf16.mxu0 %v4401
    %5390 = vmatpush2.bf16.msra.mxu0 %v4400
    %5391 = vmatprep.subr.bf16.mxu0 %v4393
    %5392 = vmatpush2.bf16.msra.mxu0 %v4392
    %5393 = vmatprep.subr.bf16.mxu0 %v4385
    %5394 = vmatpush2.bf16.msra.mxu0 %v4384
    %5395 = vmatprep.subr.bf16.mxu0 %v4377
    %5396 = vmatpush2.bf16.msra.mxu0 %v4376
    %5397 = vmatprep.mubr.bf16.mxu0 %v5280
    %5398 = vmatmul.mubr.bf16.gmra.mxu0 %v5279
    %v5399 = vpop.f32.mrf.mxu0
    %v5400 = vadd.f32 0.0, %v5399
    %v5401 = vpop.f32.mrf.mxu0
    %v5402 = vadd.f32 0.0, %v5401
    %v5403 = vpop.f32.mrf.mxu0
    %v5404 = vpop.f32.mrf.mxu0
    %5405 = vdwg.mxu0
    %5406 = vmatprep.subr.bf16.mxu0 %v4371
    %5407 = vmatpush1.bf16.msra.mxu0 %v4370
    %5408 = vmatprep.subr.bf16.mxu0 %v4363
    %5409 = vmatpush1.bf16.msra.mxu0 %v4362
    %5410 = vmatprep.subr.bf16.mxu0 %v4355
    %5411 = vmatpush1.bf16.msra.mxu0 %v4354
    %5412 = vmatprep.subr.bf16.mxu0 %v4347
    %5413 = vmatpush1.bf16.msra.mxu0 %v4346
    %5414 = vmatprep.subr.bf16.mxu0 %v4339
    %5415 = vmatpush1.bf16.msra.mxu0 %v4338
    %5416 = vmatprep.subr.bf16.mxu0 %v4331
    %5417 = vmatpush1.bf16.msra.mxu0 %v4330
    %5418 = vmatprep.subr.bf16.mxu0 %v4323
    %5419 = vmatpush1.bf16.msra.mxu0 %v4322
    %5420 = vmatprep.subr.bf16.mxu0 %v4315
    %5421 = vmatpush1.bf16.msra.mxu0 %v4314
    %5422 = vmatprep.subr.bf16.mxu0 %v4435
    %5423 = vmatpush2.bf16.msra.mxu0 %v4434
    %5424 = vmatprep.subr.bf16.mxu0 %v4427
    %5425 = vmatpush2.bf16.msra.mxu0 %v4426
    %5426 = vmatprep.subr.bf16.mxu0 %v4419
    %5427 = vmatpush2.bf16.msra.mxu0 %v4418
    %5428 = vmatprep.subr.bf16.mxu0 %v4411
    %5429 = vmatpush2.bf16.msra.mxu0 %v4410
    %5430 = vmatprep.subr.bf16.mxu0 %v4403
    %5431 = vmatpush2.bf16.msra.mxu0 %v4402
    %5432 = vmatprep.subr.bf16.mxu0 %v4395
    %5433 = vmatpush2.bf16.msra.mxu0 %v4394
    %5434 = vmatprep.subr.bf16.mxu0 %v4387
    %5435 = vmatpush2.bf16.msra.mxu0 %v4386
    %5436 = vmatprep.subr.bf16.mxu0 %v4379
    %5437 = vmatpush2.bf16.msra.mxu0 %v4378
    %5438 = vmatprep.mubr.bf16.mxu0 %v5280
    %5439 = vmatmul.mubr.bf16.gmra.mxu0 %v5279
    %v5440 = vpop.f32.mrf.mxu0
    %v5441 = vadd.f32 0.0, %v5440
    %v5442 = vpop.f32.mrf.mxu0
    %v5443 = vadd.f32 0.0, %v5442
    %v5444 = vpop.f32.mrf.mxu0
    %v5445 = vpop.f32.mrf.mxu0
    %5446 = vdwg.mxu0
    %v5455 = vcombine.low %v5318, %v5320
    %v5456 = vcombine.low %v5359, %v5361
    %v5457 = vcombine.low %v5400, %v5402
    %v5458 = vcombine.low %v5441, %v5443
    %v5460 = vunpack.c.l.s4 1966171168
    %v5461 = vunpack.c.0.s8 %v5460
    %v5462 = vlaneseq
    %v5463 = vshrl.u32 %v5462, 7
    %v5464 = vsub.s32 %v5461, %v5463
    %v5465 = vrot.slane %v5455, %v5464
    %v5467 = vunpack.c.l.s4 1966171168
    %v5468 = vunpack.c.0.s8 %v5467
    %v5469 = vlaneseq
    %v5470 = vshrl.u32 %v5469, 7
    %v5471 = vsub.s32 %v5468, %v5470
    %v5472 = vrot.slane %v5456, %v5471
    %v5474 = vunpack.c.l.s4 1966171168
    %v5475 = vunpack.c.0.s8 %v5474
    %v5476 = vlaneseq
    %v5477 = vshrl.u32 %v5476, 7
    %v5478 = vsub.s32 %v5475, %v5477
    %v5479 = vrot.slane %v5457, %v5478
    %v5481 = vunpack.c.l.s4 1966171168
    %v5482 = vunpack.c.0.s8 %v5481
    %v5483 = vlaneseq
    %v5484 = vshrl.u32 %v5483, 7
    %v5485 = vsub.s32 %v5482, %v5484
    %v5486 = vrot.slane %v5458, %v5485
    %v5487 = vcombine.low %v5465, %v5472
    %v5488 = vcombine.high %v5465, %v5472
    %v5489 = vcombine.low %v5479, %v5486
    %v5490 = vcombine.high %v5479, %v5486
    %v5492 = vunpack.c.l.s4 1966171168
    %v5493 = vunpack.c.0.s8 %v5492
    %v5494 = vlaneseq
    %v5495 = vshrl.u32 %v5494, 7
    %v5496 = vsub.s32 %v5493, %v5495
    %v5497 = vrot.slane %v5487, %v5496
    %v5499 = vunpack.c.l.s4 1966171168
    %v5500 = vunpack.c.0.s8 %v5499
    %v5501 = vlaneseq
    %v5502 = vshrl.u32 %v5501, 7
    %v5503 = vsub.s32 %v5500, %v5502
    %v5504 = vrot.slane %v5488, %v5503
    %v5506 = vunpack.c.l.s4 1966171168
    %v5507 = vunpack.c.0.s8 %v5506
    %v5508 = vlaneseq
    %v5509 = vshrl.u32 %v5508, 7
    %v5510 = vsub.s32 %v5507, %v5509
    %v5511 = vrot.slane %v5489, %v5510
    %v5513 = vunpack.c.l.s4 1966171168
    %v5514 = vunpack.c.0.s8 %v5513
    %v5515 = vlaneseq
    %v5516 = vshrl.u32 %v5515, 7
    %v5517 = vsub.s32 %v5514, %v5516
    %v5518 = vrot.slane %v5490, %v5517
    %v5519 = vcombine.low %v5497, %v5511
    %v5520 = vcombine.low %v5504, %v5518
    %v5523 = vadd.f32 %v3711, %v5519
    %v5524 = vadd.f32 %v3717, %v5520
    %v5525 = vmul.f32 %v5523, 0.5
    %v5526 = vmul.f32 %v5524, 0.5
    %v5527 = vtanh.pop %v5525
    %v5528 = vtanh.pop %v5526
    %v5529 = vmul.f32 %v5527, 0.5
    %v5530 = vmul.f32 %v5528, 0.5
    %v5531 = vadd.f32 %v5529, 0.5
    %v5532 = vadd.f32 %v5530, 0.5
    %v5535 = vrot.slane %v5523, 6
    %v5536 = vrot.slane %v5524, 6
    %v5539 = vtanh.pop %v5535
    %v5540 = vtanh.pop %v5536
    %v5543 = vrot.slane %v5531, 2
    %v5544 = vrot.slane %v5532, 2
    %v5547 = vmul.f32 %v5543, %v5192
    %v5548 = vmul.f32 %v5544, %v5193
    %v5549 = vmul.f32 %v5531, %v5539
    %v5550 = vmul.f32 %v5532, %v5540
    %v5551 = vadd.f32 %v5547, %v5549
    %v5552 = vadd.f32 %v5548, %v5550
    %v5553 = vtanh.pop %v5551
    %v5554 = vtanh.pop %v5552
    %v5555 = vrot.slane %v5531, 4
    %v5556 = vrot.slane %v5532, 4
    %v5559 = vmul.f32 %v5555, %v5553
    %v5560 = vmul.f32 %v5556, %v5554
    %v5561 = vlaneseq
    %v5562 = vshrl.u32 %v5561, 7
    %v5563 = vsub.s32 2, %v5562
    %v5564 = vrot.slane %v3922, %v5563
    %v5565 = vlaneseq
    %v5566 = vshrl.u32 %v5565, 7
    %v5567 = vsub.s32 2, %v5566
    %v5568 = vrot.slane %v3923, %v5567
    %v5571 = vcombine.low %v5564, %v5568
    %v5573 = vunpack.c.l.s4 1966171168
    %v5574 = vunpack.c.0.s8 %v5573
    %v5575 = vlaneseq
    %v5576 = vshrl.u32 %v5575, 7
    %v5577 = vsub.s32 %v5574, %v5576
    %v5578 = vrot.slane %v5571, %v5577
    %v5579 = vcombine.high %v5578, %v5578
    %v5581 = vunpack.c.l.s4 1966171168
    %v5582 = vunpack.c.0.s8 %v5581
    %v5583 = vlaneseq
    %v5584 = vshrl.u32 %v5583, 7
    %v5585 = vsub.s32 %v5582, %v5584
    %v5586 = vrot.slane %v5578, %v5585
    %v5588 = vunpack.c.l.s4 1966171168
    %v5589 = vunpack.c.0.s8 %v5588
    %v5590 = vlaneseq
    %v5591 = vshrl.u32 %v5590, 7
    %v5592 = vsub.s32 %v5589, %v5591
    %v5593 = vrot.slane %v5579, %v5592
    %v5596 = vmul.f32 %v5559, %v5586
    %v5597 = vmul.f32 %v5560, %v5593
    %v5598 = vadd.f32 %v5239, %v5596
    %v5599 = vadd.f32 %v5240, %v5597
    %v5602 = vlaneseq
    %v5603 = vshrl.u32 %v5602, 7
    %v5604 = vsub.s32 0, %v5603
    %v5605 = vrot.slane %v5559, %v5604
    %v5606 = vlaneseq
    %v5607 = vshrl.u32 %v5606, 7
    %v5608 = vsub.s32 1, %v5607
    %v5609 = vrot.slane %v5559, %v5608
    %v5610 = vlaneseq
    %v5611 = vshrl.u32 %v5610, 7
    %v5612 = vsub.s32 0, %v5611
    %v5613 = vrot.slane %v5560, %v5612
    %v5614 = vlaneseq
    %v5615 = vshrl.u32 %v5614, 7
    %v5616 = vsub.s32 1, %v5615
    %v5617 = vrot.slane %v5560, %v5616
    %v5622 = vpack.c.bf16 %v5605, %v5605
    %v5623 = vpack.c.bf16 %v5609, %v5609
    %v5624 = vpack.c.bf16 %v5613, %v5613
    %v5625 = vpack.c.bf16 %v5617, %v5617
    %v5630 = vunpack.c.l.b16 %v5622
    %v5631 = vunpack.c.l.b16 %v5623
    %v5632 = vunpack.c.l.b16 %v5624
    %v5633 = vunpack.c.l.b16 %v5625
    %v5634 = vrot.slane %v5632, 7
    %v5635 = vsel %vm4916, %v5634, %v5630
    %v5636 = vrot.slane %v5633, 7
    %v5637 = vsel %vm4916, %v5636, %v5631
    %v5638 = vpack.c.b16 %v5635, %v5635
    %v5639 = vpack.c.b16 %v5637, %v5637
    %5642 = vmatprep.subr.bf16.mxu0 %v4365
    %5643 = vmatpush1.bf16.msra.mxu0 %v4364
    %5644 = vmatprep.subr.bf16.mxu0 %v4357
    %5645 = vmatpush1.bf16.msra.mxu0 %v4356
    %5646 = vmatprep.subr.bf16.mxu0 %v4349
    %5647 = vmatpush1.bf16.msra.mxu0 %v4348
    %5648 = vmatprep.subr.bf16.mxu0 %v4341
    %5649 = vmatpush1.bf16.msra.mxu0 %v4340
    %5650 = vmatprep.subr.bf16.mxu0 %v4333
    %5651 = vmatpush1.bf16.msra.mxu0 %v4332
    %5652 = vmatprep.subr.bf16.mxu0 %v4325
    %5653 = vmatpush1.bf16.msra.mxu0 %v4324
    %5654 = vmatprep.subr.bf16.mxu0 %v4317
    %5655 = vmatpush1.bf16.msra.mxu0 %v4316
    %5656 = vmatprep.subr.bf16.mxu0 %v4309
    %5657 = vmatpush1.bf16.msra.mxu0 %v4308
    %5658 = vmatprep.subr.bf16.mxu0 %v4429
    %5659 = vmatpush2.bf16.msra.mxu0 %v4428
    %5660 = vmatprep.subr.bf16.mxu0 %v4421
    %5661 = vmatpush2.bf16.msra.mxu0 %v4420
    %5662 = vmatprep.subr.bf16.mxu0 %v4413
    %5663 = vmatpush2.bf16.msra.mxu0 %v4412
    %5664 = vmatprep.subr.bf16.mxu0 %v4405
    %5665 = vmatpush2.bf16.msra.mxu0 %v4404
    %5666 = vmatprep.subr.bf16.mxu0 %v4397
    %5667 = vmatpush2.bf16.msra.mxu0 %v4396
    %5668 = vmatprep.subr.bf16.mxu0 %v4389
    %5669 = vmatpush2.bf16.msra.mxu0 %v4388
    %5670 = vmatprep.subr.bf16.mxu0 %v4381
    %5671 = vmatpush2.bf16.msra.mxu0 %v4380
    %5672 = vmatprep.subr.bf16.mxu0 %v4373
    %5673 = vmatpush2.bf16.msra.mxu0 %v4372
    %5674 = vmatprep.mubr.bf16.mxu0 %v5639
    %5675 = vmatmul.mubr.bf16.gmra.mxu0 %v5638
    %v5676 = vpop.f32.mrf.mxu0
    %v5677 = vadd.f32 0.0, %v5676
    %v5678 = vpop.f32.mrf.mxu0
    %v5679 = vadd.f32 0.0, %v5678
    %v5680 = vpop.f32.mrf.mxu0
    %v5681 = vpop.f32.mrf.mxu0
    %5682 = vdwg.mxu0
    %5683 = vmatprep.subr.bf16.mxu0 %v4367
    %5684 = vmatpush1.bf16.msra.mxu0 %v4366
    %5685 = vmatprep.subr.bf16.mxu0 %v4359
    %5686 = vmatpush1.bf16.msra.mxu0 %v4358
    %5687 = vmatprep.subr.bf16.mxu0 %v4351
    %5688 = vmatpush1.bf16.msra.mxu0 %v4350
    %5689 = vmatprep.subr.bf16.mxu0 %v4343
    %5690 = vmatpush1.bf16.msra.mxu0 %v4342
    %5691 = vmatprep.subr.bf16.mxu0 %v4335
    %5692 = vmatpush1.bf16.msra.mxu0 %v4334
    %5693 = vmatprep.subr.bf16.mxu0 %v4327
    %5694 = vmatpush1.bf16.msra.mxu0 %v4326
    %5695 = vmatprep.subr.bf16.mxu0 %v4319
    %5696 = vmatpush1.bf16.msra.mxu0 %v4318
    %5697 = vmatprep.subr.bf16.mxu0 %v4311
    %5698 = vmatpush1.bf16.msra.mxu0 %v4310
    %5699 = vmatprep.subr.bf16.mxu0 %v4431
    %5700 = vmatpush2.bf16.msra.mxu0 %v4430
    %5701 = vmatprep.subr.bf16.mxu0 %v4423
    %5702 = vmatpush2.bf16.msra.mxu0 %v4422
    %5703 = vmatprep.subr.bf16.mxu0 %v4415
    %5704 = vmatpush2.bf16.msra.mxu0 %v4414
    %5705 = vmatprep.subr.bf16.mxu0 %v4407
    %5706 = vmatpush2.bf16.msra.mxu0 %v4406
    %5707 = vmatprep.subr.bf16.mxu0 %v4399
    %5708 = vmatpush2.bf16.msra.mxu0 %v4398
    %5709 = vmatprep.subr.bf16.mxu0 %v4391
    %5710 = vmatpush2.bf16.msra.mxu0 %v4390
    %5711 = vmatprep.subr.bf16.mxu0 %v4383
    %5712 = vmatpush2.bf16.msra.mxu0 %v4382
    %5713 = vmatprep.subr.bf16.mxu0 %v4375
    %5714 = vmatpush2.bf16.msra.mxu0 %v4374
    %5715 = vmatprep.mubr.bf16.mxu0 %v5639
    %5716 = vmatmul.mubr.bf16.gmra.mxu0 %v5638
    %v5717 = vpop.f32.mrf.mxu0
    %v5718 = vadd.f32 0.0, %v5717
    %v5719 = vpop.f32.mrf.mxu0
    %v5720 = vadd.f32 0.0, %v5719
    %v5721 = vpop.f32.mrf.mxu0
    %v5722 = vpop.f32.mrf.mxu0
    %5723 = vdwg.mxu0
    %5724 = vmatprep.subr.bf16.mxu0 %v4369
    %5725 = vmatpush1.bf16.msra.mxu0 %v4368
    %5726 = vmatprep.subr.bf16.mxu0 %v4361
    %5727 = vmatpush1.bf16.msra.mxu0 %v4360
    %5728 = vmatprep.subr.bf16.mxu0 %v4353
    %5729 = vmatpush1.bf16.msra.mxu0 %v4352
    %5730 = vmatprep.subr.bf16.mxu0 %v4345
    %5731 = vmatpush1.bf16.msra.mxu0 %v4344
    %5732 = vmatprep.subr.bf16.mxu0 %v4337
    %5733 = vmatpush1.bf16.msra.mxu0 %v4336
    %5734 = vmatprep.subr.bf16.mxu0 %v4329
    %5735 = vmatpush1.bf16.msra.mxu0 %v4328
    %5736 = vmatprep.subr.bf16.mxu0 %v4321
    %5737 = vmatpush1.bf16.msra.mxu0 %v4320
    %5738 = vmatprep.subr.bf16.mxu0 %v4313
    %5739 = vmatpush1.bf16.msra.mxu0 %v4312
    %5740 = vmatprep.subr.bf16.mxu0 %v4433
    %5741 = vmatpush2.bf16.msra.mxu0 %v4432
    %5742 = vmatprep.subr.bf16.mxu0 %v4425
    %5743 = vmatpush2.bf16.msra.mxu0 %v4424
    %5744 = vmatprep.subr.bf16.mxu0 %v4417
    %5745 = vmatpush2.bf16.msra.mxu0 %v4416
    %5746 = vmatprep.subr.bf16.mxu0 %v4409
    %5747 = vmatpush2.bf16.msra.mxu0 %v4408
    %5748 = vmatprep.subr.bf16.mxu0 %v4401
    %5749 = vmatpush2.bf16.msra.mxu0 %v4400
    %5750 = vmatprep.subr.bf16.mxu0 %v4393
    %5751 = vmatpush2.bf16.msra.mxu0 %v4392
    %5752 = vmatprep.subr.bf16.mxu0 %v4385
    %5753 = vmatpush2.bf16.msra.mxu0 %v4384
    %5754 = vmatprep.subr.bf16.mxu0 %v4377
    %5755 = vmatpush2.bf16.msra.mxu0 %v4376
    %5756 = vmatprep.mubr.bf16.mxu0 %v5639
    %5757 = vmatmul.mubr.bf16.gmra.mxu0 %v5638
    %v5758 = vpop.f32.mrf.mxu0
    %v5759 = vadd.f32 0.0, %v5758
    %v5760 = vpop.f32.mrf.mxu0
    %v5761 = vadd.f32 0.0, %v5760
    %v5762 = vpop.f32.mrf.mxu0
    %v5763 = vpop.f32.mrf.mxu0
    %5764 = vdwg.mxu0
    %5765 = vmatprep.subr.bf16.mxu0 %v4371
    %5766 = vmatpush1.bf16.msra.mxu0 %v4370
    %5767 = vmatprep.subr.bf16.mxu0 %v4363
    %5768 = vmatpush1.bf16.msra.mxu0 %v4362
    %5769 = vmatprep.subr.bf16.mxu0 %v4355
    %5770 = vmatpush1.bf16.msra.mxu0 %v4354
    %5771 = vmatprep.subr.bf16.mxu0 %v4347
    %5772 = vmatpush1.bf16.msra.mxu0 %v4346
    %5773 = vmatprep.subr.bf16.mxu0 %v4339
    %5774 = vmatpush1.bf16.msra.mxu0 %v4338
    %5775 = vmatprep.subr.bf16.mxu0 %v4331
    %5776 = vmatpush1.bf16.msra.mxu0 %v4330
    %5777 = vmatprep.subr.bf16.mxu0 %v4323
    %5778 = vmatpush1.bf16.msra.mxu0 %v4322
    %5779 = vmatprep.subr.bf16.mxu0 %v4315
    %5780 = vmatpush1.bf16.msra.mxu0 %v4314
    %5781 = vmatprep.subr.bf16.mxu0 %v4435
    %5782 = vmatpush2.bf16.msra.mxu0 %v4434
    %5783 = vmatprep.subr.bf16.mxu0 %v4427
    %5784 = vmatpush2.bf16.msra.mxu0 %v4426
    %5785 = vmatprep.subr.bf16.mxu0 %v4419
    %5786 = vmatpush2.bf16.msra.mxu0 %v4418
    %5787 = vmatprep.subr.bf16.mxu0 %v4411
    %5788 = vmatpush2.bf16.msra.mxu0 %v4410
    %5789 = vmatprep.subr.bf16.mxu0 %v4403
    %5790 = vmatpush2.bf16.msra.mxu0 %v4402
    %5791 = vmatprep.subr.bf16.mxu0 %v4395
    %5792 = vmatpush2.bf16.msra.mxu0 %v4394
    %5793 = vmatprep.subr.bf16.mxu0 %v4387
    %5794 = vmatpush2.bf16.msra.mxu0 %v4386
    %5795 = vmatprep.subr.bf16.mxu0 %v4379
    %5796 = vmatpush2.bf16.msra.mxu0 %v4378
    %5797 = vmatprep.mubr.bf16.mxu0 %v5639
    %5798 = vmatmul.mubr.bf16.gmra.mxu0 %v5638
    %v5799 = vpop.f32.mrf.mxu0
    %v5800 = vadd.f32 0.0, %v5799
    %v5801 = vpop.f32.mrf.mxu0
    %v5802 = vadd.f32 0.0, %v5801
    %v5803 = vpop.f32.mrf.mxu0
    %v5804 = vpop.f32.mrf.mxu0
    %5805 = vdwg.mxu0
    %v5814 = vcombine.low %v5677, %v5679
    %v5815 = vcombine.low %v5718, %v5720
    %v5816 = vcombine.low %v5759, %v5761
    %v5817 = vcombine.low %v5800, %v5802
    %v5819 = vunpack.c.l.s4 1966171168
    %v5820 = vunpack.c.0.s8 %v5819
    %v5821 = vlaneseq
    %v5822 = vshrl.u32 %v5821, 7
    %v5823 = vsub.s32 %v5820, %v5822
    %v5824 = vrot.slane %v5814, %v5823
    %v5826 = vunpack.c.l.s4 1966171168
    %v5827 = vunpack.c.0.s8 %v5826
    %v5828 = vlaneseq
    %v5829 = vshrl.u32 %v5828, 7
    %v5830 = vsub.s32 %v5827, %v5829
    %v5831 = vrot.slane %v5815, %v5830
    %v5833 = vunpack.c.l.s4 1966171168
    %v5834 = vunpack.c.0.s8 %v5833
    %v5835 = vlaneseq
    %v5836 = vshrl.u32 %v5835, 7
    %v5837 = vsub.s32 %v5834, %v5836
    %v5838 = vrot.slane %v5816, %v5837
    %v5840 = vunpack.c.l.s4 1966171168
    %v5841 = vunpack.c.0.s8 %v5840
    %v5842 = vlaneseq
    %v5843 = vshrl.u32 %v5842, 7
    %v5844 = vsub.s32 %v5841, %v5843
    %v5845 = vrot.slane %v5817, %v5844
    %v5846 = vcombine.low %v5824, %v5831
    %v5847 = vcombine.high %v5824, %v5831
    %v5848 = vcombine.low %v5838, %v5845
    %v5849 = vcombine.high %v5838, %v5845
    %v5851 = vunpack.c.l.s4 1966171168
    %v5852 = vunpack.c.0.s8 %v5851
    %v5853 = vlaneseq
    %v5854 = vshrl.u32 %v5853, 7
    %v5855 = vsub.s32 %v5852, %v5854
    %v5856 = vrot.slane %v5846, %v5855
    %v5858 = vunpack.c.l.s4 1966171168
    %v5859 = vunpack.c.0.s8 %v5858
    %v5860 = vlaneseq
    %v5861 = vshrl.u32 %v5860, 7
    %v5862 = vsub.s32 %v5859, %v5861
    %v5863 = vrot.slane %v5847, %v5862
    %v5865 = vunpack.c.l.s4 1966171168
    %v5866 = vunpack.c.0.s8 %v5865
    %v5867 = vlaneseq
    %v5868 = vshrl.u32 %v5867, 7
    %v5869 = vsub.s32 %v5866, %v5868
    %v5870 = vrot.slane %v5848, %v5869
    %v5872 = vunpack.c.l.s4 1966171168
    %v5873 = vunpack.c.0.s8 %v5872
    %v5874 = vlaneseq
    %v5875 = vshrl.u32 %v5874, 7
    %v5876 = vsub.s32 %v5873, %v5875
    %v5877 = vrot.slane %v5849, %v5876
    %v5878 = vcombine.low %v5856, %v5870
    %v5879 = vcombine.low %v5863, %v5877
    %v5882 = vadd.f32 %v3715, %v5878
    %v5883 = vadd.f32 %v3782, %v5879
    %v5884 = vmul.f32 %v5882, 0.5
    %v5885 = vmul.f32 %v5883, 0.5
    %v5886 = vtanh.pop %v5884
    %v5887 = vtanh.pop %v5885
    %v5888 = vmul.f32 %v5886, 0.5
    %v5889 = vmul.f32 %v5887, 0.5
    %v5890 = vadd.f32 %v5888, 0.5
    %v5891 = vadd.f32 %v5889, 0.5
    %v5894 = vrot.slane %v5882, 6
    %v5895 = vrot.slane %v5883, 6
    %v5898 = vtanh.pop %v5894
    %v5899 = vtanh.pop %v5895
    %v5902 = vrot.slane %v5890, 2
    %v5903 = vrot.slane %v5891, 2
    %v5906 = vmul.f32 %v5902, %v5551
    %v5907 = vmul.f32 %v5903, %v5552
    %v5908 = vmul.f32 %v5890, %v5898
    %v5909 = vmul.f32 %v5891, %v5899
    %v5910 = vadd.f32 %v5906, %v5908
    %v5911 = vadd.f32 %v5907, %v5909
    %v5912 = vtanh.pop %v5910
    %v5913 = vtanh.pop %v5911
    %v5914 = vrot.slane %v5890, 4
    %v5915 = vrot.slane %v5891, 4
    %v5918 = vmul.f32 %v5914, %v5912
    %v5919 = vmul.f32 %v5915, %v5913
    %v5920 = vlaneseq
    %v5921 = vshrl.u32 %v5920, 7
    %v5922 = vsub.s32 3, %v5921
    %v5923 = vrot.slane %v3922, %v5922
    %v5924 = vlaneseq
    %v5925 = vshrl.u32 %v5924, 7
    %v5926 = vsub.s32 3, %v5925
    %v5927 = vrot.slane %v3923, %v5926
    %v5930 = vcombine.low %v5923, %v5927
    %v5932 = vunpack.c.l.s4 1966171168
    %v5933 = vunpack.c.0.s8 %v5932
    %v5934 = vlaneseq
    %v5935 = vshrl.u32 %v5934, 7
    %v5936 = vsub.s32 %v5933, %v5935
    %v5937 = vrot.slane %v5930, %v5936
    %v5938 = vcombine.high %v5937, %v5937
    %v5940 = vunpack.c.l.s4 1966171168
    %v5941 = vunpack.c.0.s8 %v5940
    %v5942 = vlaneseq
    %v5943 = vshrl.u32 %v5942, 7
    %v5944 = vsub.s32 %v5941, %v5943
    %v5945 = vrot.slane %v5937, %v5944
    %v5947 = vunpack.c.l.s4 1966171168
    %v5948 = vunpack.c.0.s8 %v5947
    %v5949 = vlaneseq
    %v5950 = vshrl.u32 %v5949, 7
    %v5951 = vsub.s32 %v5948, %v5950
    %v5952 = vrot.slane %v5938, %v5951
    %v5955 = vmul.f32 %v5918, %v5945
    %v5956 = vmul.f32 %v5919, %v5952
    %v5957 = vadd.f32 %v5598, %v5955
    %v5958 = vadd.f32 %v5599, %v5956
    %v5961 = vlaneseq
    %v5962 = vshrl.u32 %v5961, 7
    %v5963 = vsub.s32 0, %v5962
    %v5964 = vrot.slane %v5918, %v5963
    %v5965 = vlaneseq
    %v5966 = vshrl.u32 %v5965, 7
    %v5967 = vsub.s32 1, %v5966
    %v5968 = vrot.slane %v5918, %v5967
    %v5969 = vlaneseq
    %v5970 = vshrl.u32 %v5969, 7
    %v5971 = vsub.s32 0, %v5970
    %v5972 = vrot.slane %v5919, %v5971
    %v5973 = vlaneseq
    %v5974 = vshrl.u32 %v5973, 7
    %v5975 = vsub.s32 1, %v5974
    %v5976 = vrot.slane %v5919, %v5975
    %v5981 = vpack.c.bf16 %v5964, %v5964
    %v5982 = vpack.c.bf16 %v5968, %v5968
    %v5983 = vpack.c.bf16 %v5972, %v5972
    %v5984 = vpack.c.bf16 %v5976, %v5976
    %v5989 = vunpack.c.l.b16 %v5981
    %v5990 = vunpack.c.l.b16 %v5982
    %v5991 = vunpack.c.l.b16 %v5983
    %v5992 = vunpack.c.l.b16 %v5984
    %v5993 = vrot.slane %v5991, 7
    %v5994 = vsel %vm4916, %v5993, %v5989
    %v5995 = vrot.slane %v5992, 7
    %v5996 = vsel %vm4916, %v5995, %v5990
    %v5997 = vpack.c.b16 %v5994, %v5994
    %v5998 = vpack.c.b16 %v5996, %v5996
    %6001 = vmatprep.subr.bf16.mxu0 %v4365
    %6002 = vmatpush1.bf16.msra.mxu0 %v4364
    %6003 = vmatprep.subr.bf16.mxu0 %v4357
    %6004 = vmatpush1.bf16.msra.mxu0 %v4356
    %6005 = vmatprep.subr.bf16.mxu0 %v4349
    %6006 = vmatpush1.bf16.msra.mxu0 %v4348
    %6007 = vmatprep.subr.bf16.mxu0 %v4341
    %6008 = vmatpush1.bf16.msra.mxu0 %v4340
    %6009 = vmatprep.subr.bf16.mxu0 %v4333
    %6010 = vmatpush1.bf16.msra.mxu0 %v4332
    %6011 = vmatprep.subr.bf16.mxu0 %v4325
    %6012 = vmatpush1.bf16.msra.mxu0 %v4324
    %6013 = vmatprep.subr.bf16.mxu0 %v4317
    %6014 = vmatpush1.bf16.msra.mxu0 %v4316
    %6015 = vmatprep.subr.bf16.mxu0 %v4309
    %6016 = vmatpush1.bf16.msra.mxu0 %v4308
    %6017 = vmatprep.subr.bf16.mxu0 %v4429
    %6018 = vmatpush2.bf16.msra.mxu0 %v4428
    %6019 = vmatprep.subr.bf16.mxu0 %v4421
    %6020 = vmatpush2.bf16.msra.mxu0 %v4420
    %6021 = vmatprep.subr.bf16.mxu0 %v4413
    %6022 = vmatpush2.bf16.msra.mxu0 %v4412
    %6023 = vmatprep.subr.bf16.mxu0 %v4405
    %6024 = vmatpush2.bf16.msra.mxu0 %v4404
    %6025 = vmatprep.subr.bf16.mxu0 %v4397
    %6026 = vmatpush2.bf16.msra.mxu0 %v4396
    %6027 = vmatprep.subr.bf16.mxu0 %v4389
    %6028 = vmatpush2.bf16.msra.mxu0 %v4388
    %6029 = vmatprep.subr.bf16.mxu0 %v4381
    %6030 = vmatpush2.bf16.msra.mxu0 %v4380
    %6031 = vmatprep.subr.bf16.mxu0 %v4373
    %6032 = vmatpush2.bf16.msra.mxu0 %v4372
    %6033 = vmatprep.mubr.bf16.mxu0 %v5998
    %6034 = vmatmul.mubr.bf16.gmra.mxu0 %v5997
    %v6035 = vpop.f32.mrf.mxu0
    %v6036 = vadd.f32 0.0, %v6035
    %v6037 = vpop.f32.mrf.mxu0
    %v6038 = vadd.f32 0.0, %v6037
    %v6039 = vpop.f32.mrf.mxu0
    %v6040 = vpop.f32.mrf.mxu0
    %6041 = vdwg.mxu0
    %6042 = vmatprep.subr.bf16.mxu0 %v4367
    %6043 = vmatpush1.bf16.msra.mxu0 %v4366
    %6044 = vmatprep.subr.bf16.mxu0 %v4359
    %6045 = vmatpush1.bf16.msra.mxu0 %v4358
    %6046 = vmatprep.subr.bf16.mxu0 %v4351
    %6047 = vmatpush1.bf16.msra.mxu0 %v4350
    %6048 = vmatprep.subr.bf16.mxu0 %v4343
    %6049 = vmatpush1.bf16.msra.mxu0 %v4342
    %6050 = vmatprep.subr.bf16.mxu0 %v4335
    %6051 = vmatpush1.bf16.msra.mxu0 %v4334
    %6052 = vmatprep.subr.bf16.mxu0 %v4327
    %6053 = vmatpush1.bf16.msra.mxu0 %v4326
    %6054 = vmatprep.subr.bf16.mxu0 %v4319
    %6055 = vmatpush1.bf16.msra.mxu0 %v4318
    %6056 = vmatprep.subr.bf16.mxu0 %v4311
    %6057 = vmatpush1.bf16.msra.mxu0 %v4310
    %6058 = vmatprep.subr.bf16.mxu0 %v4431
    %6059 = vmatpush2.bf16.msra.mxu0 %v4430
    %6060 = vmatprep.subr.bf16.mxu0 %v4423
    %6061 = vmatpush2.bf16.msra.mxu0 %v4422
    %6062 = vmatprep.subr.bf16.mxu0 %v4415
    %6063 = vmatpush2.bf16.msra.mxu0 %v4414
    %6064 = vmatprep.subr.bf16.mxu0 %v4407
    %6065 = vmatpush2.bf16.msra.mxu0 %v4406
    %6066 = vmatprep.subr.bf16.mxu0 %v4399
    %6067 = vmatpush2.bf16.msra.mxu0 %v4398
    %6068 = vmatprep.subr.bf16.mxu0 %v4391
    %6069 = vmatpush2.bf16.msra.mxu0 %v4390
    %6070 = vmatprep.subr.bf16.mxu0 %v4383
    %6071 = vmatpush2.bf16.msra.mxu0 %v4382
    %6072 = vmatprep.subr.bf16.mxu0 %v4375
    %6073 = vmatpush2.bf16.msra.mxu0 %v4374
    %6074 = vmatprep.mubr.bf16.mxu0 %v5998
    %6075 = vmatmul.mubr.bf16.gmra.mxu0 %v5997
    %v6076 = vpop.f32.mrf.mxu0
    %v6077 = vadd.f32 0.0, %v6076
    %v6078 = vpop.f32.mrf.mxu0
    %v6079 = vadd.f32 0.0, %v6078
    %v6080 = vpop.f32.mrf.mxu0
    %v6081 = vpop.f32.mrf.mxu0
    %6082 = vdwg.mxu0
    %6083 = vmatprep.subr.bf16.mxu0 %v4369
    %6084 = vmatpush1.bf16.msra.mxu0 %v4368
    %6085 = vmatprep.subr.bf16.mxu0 %v4361
    %6086 = vmatpush1.bf16.msra.mxu0 %v4360
    %6087 = vmatprep.subr.bf16.mxu0 %v4353
    %6088 = vmatpush1.bf16.msra.mxu0 %v4352
    %6089 = vmatprep.subr.bf16.mxu0 %v4345
    %6090 = vmatpush1.bf16.msra.mxu0 %v4344
    %6091 = vmatprep.subr.bf16.mxu0 %v4337
    %6092 = vmatpush1.bf16.msra.mxu0 %v4336
    %6093 = vmatprep.subr.bf16.mxu0 %v4329
    %6094 = vmatpush1.bf16.msra.mxu0 %v4328
    %6095 = vmatprep.subr.bf16.mxu0 %v4321
    %6096 = vmatpush1.bf16.msra.mxu0 %v4320
    %6097 = vmatprep.subr.bf16.mxu0 %v4313
    %6098 = vmatpush1.bf16.msra.mxu0 %v4312
    %6099 = vmatprep.subr.bf16.mxu0 %v4433
    %6100 = vmatpush2.bf16.msra.mxu0 %v4432
    %6101 = vmatprep.subr.bf16.mxu0 %v4425
    %6102 = vmatpush2.bf16.msra.mxu0 %v4424
    %6103 = vmatprep.subr.bf16.mxu0 %v4417
    %6104 = vmatpush2.bf16.msra.mxu0 %v4416
    %6105 = vmatprep.subr.bf16.mxu0 %v4409
    %6106 = vmatpush2.bf16.msra.mxu0 %v4408
    %6107 = vmatprep.subr.bf16.mxu0 %v4401
    %6108 = vmatpush2.bf16.msra.mxu0 %v4400
    %6109 = vmatprep.subr.bf16.mxu0 %v4393
    %6110 = vmatpush2.bf16.msra.mxu0 %v4392
    %6111 = vmatprep.subr.bf16.mxu0 %v4385
    %6112 = vmatpush2.bf16.msra.mxu0 %v4384
    %6113 = vmatprep.subr.bf16.mxu0 %v4377
    %6114 = vmatpush2.bf16.msra.mxu0 %v4376
    %6115 = vmatprep.mubr.bf16.mxu0 %v5998
    %6116 = vmatmul.mubr.bf16.gmra.mxu0 %v5997
    %v6117 = vpop.f32.mrf.mxu0
    %v6118 = vadd.f32 0.0, %v6117
    %v6119 = vpop.f32.mrf.mxu0
    %v6120 = vadd.f32 0.0, %v6119
    %v6121 = vpop.f32.mrf.mxu0
    %v6122 = vpop.f32.mrf.mxu0
    %6123 = vdwg.mxu0
    %6124 = vmatprep.subr.bf16.mxu0 %v4371
    %6125 = vmatpush1.bf16.msra.mxu0 %v4370
    %6126 = vmatprep.subr.bf16.mxu0 %v4363
    %6127 = vmatpush1.bf16.msra.mxu0 %v4362
    %6128 = vmatprep.subr.bf16.mxu0 %v4355
    %6129 = vmatpush1.bf16.msra.mxu0 %v4354
    %6130 = vmatprep.subr.bf16.mxu0 %v4347
    %6131 = vmatpush1.bf16.msra.mxu0 %v4346
    %6132 = vmatprep.subr.bf16.mxu0 %v4339
    %6133 = vmatpush1.bf16.msra.mxu0 %v4338
    %6134 = vmatprep.subr.bf16.mxu0 %v4331
    %6135 = vmatpush1.bf16.msra.mxu0 %v4330
    %6136 = vmatprep.subr.bf16.mxu0 %v4323
    %6137 = vmatpush1.bf16.msra.mxu0 %v4322
    %6138 = vmatprep.subr.bf16.mxu0 %v4315
    %6139 = vmatpush1.bf16.msra.mxu0 %v4314
    %6140 = vmatprep.subr.bf16.mxu0 %v4435
    %6141 = vmatpush2.bf16.msra.mxu0 %v4434
    %6142 = vmatprep.subr.bf16.mxu0 %v4427
    %6143 = vmatpush2.bf16.msra.mxu0 %v4426
    %6144 = vmatprep.subr.bf16.mxu0 %v4419
    %6145 = vmatpush2.bf16.msra.mxu0 %v4418
    %6146 = vmatprep.subr.bf16.mxu0 %v4411
    %6147 = vmatpush2.bf16.msra.mxu0 %v4410
    %6148 = vmatprep.subr.bf16.mxu0 %v4403
    %6149 = vmatpush2.bf16.msra.mxu0 %v4402
    %6150 = vmatprep.subr.bf16.mxu0 %v4395
    %6151 = vmatpush2.bf16.msra.mxu0 %v4394
    %6152 = vmatprep.subr.bf16.mxu0 %v4387
    %6153 = vmatpush2.bf16.msra.mxu0 %v4386
    %6154 = vmatprep.subr.bf16.mxu0 %v4379
    %6155 = vmatpush2.bf16.msra.mxu0 %v4378
    %6156 = vmatprep.mubr.bf16.mxu0 %v5998
    %6157 = vmatmul.mubr.bf16.gmra.mxu0 %v5997
    %v6158 = vpop.f32.mrf.mxu0
    %v6159 = vadd.f32 0.0, %v6158
    %v6160 = vpop.f32.mrf.mxu0
    %v6161 = vadd.f32 0.0, %v6160
    %v6162 = vpop.f32.mrf.mxu0
    %v6163 = vpop.f32.mrf.mxu0
    %6164 = vdwg.mxu0
    %v6173 = vcombine.low %v6036, %v6038
    %v6174 = vcombine.low %v6077, %v6079
    %v6175 = vcombine.low %v6118, %v6120
    %v6176 = vcombine.low %v6159, %v6161
    %v6178 = vunpack.c.l.s4 1966171168
    %v6179 = vunpack.c.0.s8 %v6178
    %v6180 = vlaneseq
    %v6181 = vshrl.u32 %v6180, 7
    %v6182 = vsub.s32 %v6179, %v6181
    %v6183 = vrot.slane %v6173, %v6182
    %v6185 = vunpack.c.l.s4 1966171168
    %v6186 = vunpack.c.0.s8 %v6185
    %v6187 = vlaneseq
    %v6188 = vshrl.u32 %v6187, 7
    %v6189 = vsub.s32 %v6186, %v6188
    %v6190 = vrot.slane %v6174, %v6189
    %v6192 = vunpack.c.l.s4 1966171168
    %v6193 = vunpack.c.0.s8 %v6192
    %v6194 = vlaneseq
    %v6195 = vshrl.u32 %v6194, 7
    %v6196 = vsub.s32 %v6193, %v6195
    %v6197 = vrot.slane %v6175, %v6196
    %v6199 = vunpack.c.l.s4 1966171168
    %v6200 = vunpack.c.0.s8 %v6199
    %v6201 = vlaneseq
    %v6202 = vshrl.u32 %v6201, 7
    %v6203 = vsub.s32 %v6200, %v6202
    %v6204 = vrot.slane %v6176, %v6203
    %v6205 = vcombine.low %v6183, %v6190
    %v6206 = vcombine.high %v6183, %v6190
    %v6207 = vcombine.low %v6197, %v6204
    %v6208 = vcombine.high %v6197, %v6204
    %v6210 = vunpack.c.l.s4 1966171168
    %v6211 = vunpack.c.0.s8 %v6210
    %v6212 = vlaneseq
    %v6213 = vshrl.u32 %v6212, 7
    %v6214 = vsub.s32 %v6211, %v6213
    %v6215 = vrot.slane %v6205, %v6214
    %v6217 = vunpack.c.l.s4 1966171168
    %v6218 = vunpack.c.0.s8 %v6217
    %v6219 = vlaneseq
    %v6220 = vshrl.u32 %v6219, 7
    %v6221 = vsub.s32 %v6218, %v6220
    %v6222 = vrot.slane %v6206, %v6221
    %v6224 = vunpack.c.l.s4 1966171168
    %v6225 = vunpack.c.0.s8 %v6224
    %v6226 = vlaneseq
    %v6227 = vshrl.u32 %v6226, 7
    %v6228 = vsub.s32 %v6225, %v6227
    %v6229 = vrot.slane %v6207, %v6228
    %v6231 = vunpack.c.l.s4 1966171168
    %v6232 = vunpack.c.0.s8 %v6231
    %v6233 = vlaneseq
    %v6234 = vshrl.u32 %v6233, 7
    %v6235 = vsub.s32 %v6232, %v6234
    %v6236 = vrot.slane %v6208, %v6235
    %v6237 = vcombine.low %v6215, %v6229
    %v6238 = vcombine.low %v6222, %v6236
    %v6241 = vadd.f32 %v3712, %v6237
    %v6242 = vadd.f32 %v3783, %v6238
    %v6243 = vmul.f32 %v6241, 0.5
    %v6244 = vmul.f32 %v6242, 0.5
    %v6245 = vtanh.pop %v6243
    %v6246 = vtanh.pop %v6244
    %v6247 = vmul.f32 %v6245, 0.5
    %v6248 = vmul.f32 %v6246, 0.5
    %v6249 = vadd.f32 %v6247, 0.5
    %v6250 = vadd.f32 %v6248, 0.5
    %v6253 = vrot.slane %v6241, 6
    %v6254 = vrot.slane %v6242, 6
    %v6257 = vtanh.pop %v6253
    %v6258 = vtanh.pop %v6254
    %v6261 = vrot.slane %v6249, 2
    %v6262 = vrot.slane %v6250, 2
    %v6265 = vmul.f32 %v6261, %v5910
    %v6266 = vmul.f32 %v6262, %v5911
    %v6267 = vmul.f32 %v6249, %v6257
    %v6268 = vmul.f32 %v6250, %v6258
    %v6269 = vadd.f32 %v6265, %v6267
    %v6270 = vadd.f32 %v6266, %v6268
    %v6271 = vtanh.pop %v6269
    %v6272 = vtanh.pop %v6270
    %v6273 = vrot.slane %v6249, 4
    %v6274 = vrot.slane %v6250, 4
    %v6277 = vmul.f32 %v6273, %v6271
    %v6278 = vmul.f32 %v6274, %v6272
    %v6279 = vlaneseq
    %v6280 = vshrl.u32 %v6279, 7
    %v6281 = vsub.s32 4, %v6280
    %v6282 = vrot.slane %v3922, %v6281
    %v6283 = vlaneseq
    %v6284 = vshrl.u32 %v6283, 7
    %v6285 = vsub.s32 4, %v6284
    %v6286 = vrot.slane %v3923, %v6285
    %v6289 = vcombine.low %v6282, %v6286
    %v6291 = vunpack.c.l.s4 1966171168
    %v6292 = vunpack.c.0.s8 %v6291
    %v6293 = vlaneseq
    %v6294 = vshrl.u32 %v6293, 7
    %v6295 = vsub.s32 %v6292, %v6294
    %v6296 = vrot.slane %v6289, %v6295
    %v6297 = vcombine.high %v6296, %v6296
    %v6299 = vunpack.c.l.s4 1966171168
    %v6300 = vunpack.c.0.s8 %v6299
    %v6301 = vlaneseq
    %v6302 = vshrl.u32 %v6301, 7
    %v6303 = vsub.s32 %v6300, %v6302
    %v6304 = vrot.slane %v6296, %v6303
    %v6306 = vunpack.c.l.s4 1966171168
    %v6307 = vunpack.c.0.s8 %v6306
    %v6308 = vlaneseq
    %v6309 = vshrl.u32 %v6308, 7
    %v6310 = vsub.s32 %v6307, %v6309
    %v6311 = vrot.slane %v6297, %v6310
    %v6314 = vmul.f32 %v6277, %v6304
    %v6315 = vmul.f32 %v6278, %v6311
    %v6316 = vadd.f32 %v5957, %v6314
    %v6317 = vadd.f32 %v5958, %v6315
    %v6320 = vcombine.low %v6316, %v6317
    %v6322 = vunpack.c.l.s4 1966171168
    %v6323 = vunpack.c.0.s8 %v6322
    %v6324 = vlaneseq
    %v6325 = vshrl.u32 %v6324, 7
    %v6326 = vsub.s32 %v6323, %v6325
    %v6327 = vrot.slane %v6320, %v6326
    %v6328 = vcombine.high %v6327, %v6327
    %v6330 = vunpack.c.l.s4 1966171168
    %v6331 = vunpack.c.0.s8 %v6330
    %v6332 = vlaneseq
    %v6333 = vshrl.u32 %v6332, 7
    %v6334 = vsub.s32 %v6331, %v6333
    %v6335 = vrot.slane %v6327, %v6334
    %v6337 = vunpack.c.l.s4 1966171168
    %v6338 = vunpack.c.0.s8 %v6337
    %v6339 = vlaneseq
    %v6340 = vshrl.u32 %v6339, 7
    %v6341 = vsub.s32 %v6338, %v6340
    %v6342 = vrot.slane %v6328, %v6341
    %v6345 = vsel %vm246, %v6335, 0.0
    %v6346 = vsel %vm246, %v6342, 0.0
    %v6347 = vadd.f32 %v6345, %v6346
    %6348 = vadd.xlane.f32.xlu0 %v6347
    %v6349 = vpop.xlane.xlu0 %6348
    %v6350 = vld [vmem:[#allocation2] sm:$0x1]
    %v6352 = vlaneseq
    %v6353 = vshrl.u32 %v6352, 7
    %v6354 = vsub.s32 0, %v6353
    %v6355 = vrot.slane %v6350, %v6354
    %v6357 = vadd.f32 %v6349, %v6355
    %6359 = vset.pattern.permute.xlu0 0
    %6360 = vperm.xlu0 %6359, %v6357
    %v6361 = vpop.permute.xlu0 %6360
    %v6362 = vlaneseq
    %v6363 = vand.u32 %v6362, 127
    %v6364 = vlaneseq
    %v6365 = vshrl.u32 %v6364, 7
    %v6366 = vsub.s32 %v6363, %v6365
    %v6367 = vrot.slane %v6361, %v6366
    %vm6369 = vcmask 8192
    %6370 = vst.msk [vmem:[#allocation8] sm:$0x1] %vm6369, %v6367
    // Predicated region
    $region50: #{promoter_net_forward.1} parent=1 // pred_check
      _
    $region51: #{promoter_net_forward.1} parent=1 // pred_check_branch
      %6372 = sbr.rel (0) target = $region53
    $region52: #{promoter_net_forward.1} parent=1 // pred_region
      %s6374 = ssub.s32 16, 16
      %6375 = vsyncadd [#allocation5], %s6374
      %s6377 = sshll.u32 [#allocation8], 4
      %s6378 = int_to_ptr.vmem [resolvable:$true] %s6377
      %6380 = dma.vmem_to_hbm [thread:$0]  %s6378, 16, %s10, [#allocation5]
    $region53: #{promoter_net_forward.1} parent=1 // pred_fallthru
      _
    // Predicated region
    $region54: #{promoter_net_forward.1} parent=1 // pred_check
      _
    $region55: #{promoter_net_forward.1} parent=1 // pred_check_branch
      %6382 = sbr.rel (0) target = $region57
    $region56: #{promoter_net_forward.1} parent=1 // pred_region
      %6383 = dma.done [#allocation5], 16
    $region57: #{promoter_net_forward.1} parent=1 // pred_fallthru
      _
    %6384 = vsyncpa [#allocation4], 1
    %6385 = vsyncpa [#allocation7], 1
    %6386 = vsyncpa [#allocation5], 1

</llo_original>
